<compile_context>
chip_gen: v7x
topology: tpu7x:2x2x1
jax: 0.10.0
libtpu: 0.0.40
codegen_flags: <defaults>
</compile_context>

<pallas_src>
import jax
import jax.numpy as jnp
from jax.experimental import pallas as pl
from jax.experimental.pallas import tpu as pltpu

_VMEM = pl.BlockSpec(memory_space=pltpu.MemorySpace.VMEM)


# ----------------------------- Pallas kernels ------------------------------

def _linear_kernel(x_ref, w_ref, b_ref, o_ref):
    o_ref[...] = (jnp.dot(x_ref[...], w_ref[...],
                          preferred_element_type=jnp.float32) + b_ref[...])


def linear(x, w, b):
    n = x.shape[0]
    out = w.shape[1]
    return pl.pallas_call(
        _linear_kernel,
        in_specs=[_VMEM] * 3,
        out_specs=_VMEM,
        out_shape=jax.ShapeDtypeStruct((n, out), jnp.float32),
    )(x, w, b)


def _lstm_gates(gates, c, H):
    """PyTorch gate order i, f, g, o."""
    i = jax.nn.sigmoid(gates[:, 0 * H:1 * H])
    f = jax.nn.sigmoid(gates[:, 1 * H:2 * H])
    g = jnp.tanh(gates[:, 2 * H:3 * H])
    o = jax.nn.sigmoid(gates[:, 3 * H:4 * H])
    c_new = f * c + i * g
    h_new = o * jnp.tanh(c_new)
    return h_new, c_new


def _bilstm_kernel(xpf_ref, xpb_ref, whhf_ref, whhb_ref,
                   encf_ref, encb_ref, h_ref, c_ref):
    """Fused bidirectional LSTM recurrence, one grid step per timestep.

    xpf/xpb: (1,N,4H) pre-projected inputs (x@Wih + b) for fwd / bwd direction
             (bwd block index runs S-1-t).  whh*: (H,4H) resident weights.
    encf/encb: (1,N,H) per-step hidden outputs.  h/c: (2,N,H) resident state
    ([0]=fwd, [1]=bwd) that doubles as the final-hidden/cell output."""
    t = pl.program_id(0)
    H = whhf_ref.shape[0]

    @pl.when(t == 0)
    def _():
        h_ref[...] = jnp.zeros_like(h_ref)
        c_ref[...] = jnp.zeros_like(c_ref)

    gates_f = xpf_ref[0] + jnp.dot(h_ref[0], whhf_ref[...],
                                   preferred_element_type=jnp.float32)
    hf, cf = _lstm_gates(gates_f, c_ref[0], H)
    gates_b = xpb_ref[0] + jnp.dot(h_ref[1], whhb_ref[...],
                                   preferred_element_type=jnp.float32)
    hb, cb = _lstm_gates(gates_b, c_ref[1], H)

    h_ref[0] = hf
    c_ref[0] = cf
    h_ref[1] = hb
    c_ref[1] = cb
    encf_ref[...] = hf[None]
    encb_ref[...] = hb[None]


def bilstm_encode(xp_f, xp_b, whh_f, whh_b):
    S, N, G = xp_f.shape          # G = 4H
    H = whh_f.shape[0]
    grid_spec = pltpu.PrefetchScalarGridSpec(
        num_scalar_prefetch=0,
        grid=(S,),
        in_specs=[
            pl.BlockSpec((1, N, G), lambda t: (t, 0, 0)),
            pl.BlockSpec((1, N, G), lambda t: (S - 1 - t, 0, 0)),
            pl.BlockSpec((H, G), lambda t: (0, 0)),
            pl.BlockSpec((H, G), lambda t: (0, 0)),
        ],
        out_specs=[
            pl.BlockSpec((1, N, H), lambda t: (t, 0, 0)),
            pl.BlockSpec((1, N, H), lambda t: (S - 1 - t, 0, 0)),
            pl.BlockSpec((2, N, H), lambda t: (0, 0, 0)),
            pl.BlockSpec((2, N, H), lambda t: (0, 0, 0)),
        ],
    )
    return pl.pallas_call(
        _bilstm_kernel,
        grid_spec=grid_spec,
        out_shape=(jax.ShapeDtypeStruct((S, N, H), jnp.float32),
                   jax.ShapeDtypeStruct((S, N, H), jnp.float32),
                   jax.ShapeDtypeStruct((2, N, H), jnp.float32),
                   jax.ShapeDtypeStruct((2, N, H), jnp.float32)),
        compiler_params=pltpu.CompilerParams(
            dimension_semantics=("arbitrary",)),
    )(xp_f, xp_b, whh_f, whh_b)


def _decoder_kernel(tf_ref,                                   # scalar prefetch
                    tgt_oh_ref, enc_ref, e_enc_ref, emb_ref,  # data
                    wh_ref, be_ref,                           # attention
                    wih_ctx_ref, wih_emb_ref, whh_ref, b_ref,  # LSTM cell
                    ow_ref, ob_ref,                            # vocab proj
                    h0_ref, c0_ref, bhw_ref, bhb_ref, bcw_ref, bcb_ref,  # bridge
                    out_ref,
                    h_scr, c_scr, x_scr):
    """One fused decoder step per grid index j (producing outputs[j+1])."""
    j = pl.program_id(0)
    H = whh_ref.shape[0]
    V = out_ref.shape[2]

    @pl.when(j == 0)
    def _():
        # bridge the bidirectional final states and load the <sos> token.
        h_scr[...] = (jnp.dot(h0_ref[...], bhw_ref[...],
                              preferred_element_type=jnp.float32) + bhb_ref[...])
        c_scr[...] = (jnp.dot(c0_ref[...], bcw_ref[...],
                              preferred_element_type=jnp.float32) + bcb_ref[...])
        x_scr[...] = tgt_oh_ref[0]

    h = h_scr[...]
    c = c_scr[...]
    # embedding lookup as one-hot @ table (MXU friendly, no dynamic gather).
    x_emb = jnp.dot(x_scr[...], emb_ref[...],
                    preferred_element_type=jnp.float32)              # (N, E)

    # additive attention: energy = relu(W[h_rep ; enc] + b); softmax over seq.
    # The hidden-independent term (enc @ W_enc) is precomputed -> e_enc_ref.
    e_h = jnp.dot(h, wh_ref[...], preferred_element_type=jnp.float32)  # (N,1)
    energy = jnp.maximum(e_enc_ref[...] + e_h[None, :, :] + be_ref[...], 0.0)
    energy = energy - jnp.max(energy, axis=0, keepdims=True)         # stable
    p = jnp.exp(energy)
    attn = p / jnp.sum(p, axis=0, keepdims=True)                     # (S,N,1)
    ctx = jnp.sum(attn * enc_ref[...], axis=0)                       # (N,2H)

    gates = (jnp.dot(ctx, wih_ctx_ref[...], preferred_element_type=jnp.float32)
             + jnp.dot(x_emb, wih_emb_ref[...], preferred_element_type=jnp.float32)
             + jnp.dot(h, whh_ref[...], preferred_element_type=jnp.float32)
             + b_ref[...])
    h_new, c_new = _lstm_gates(gates, c, H)
    h_scr[...] = h_new
    c_scr[...] = c_new

    preds = (jnp.dot(h_new, ow_ref[...], preferred_element_type=jnp.float32)
             + ob_ref[...])                                          # (N, V)
    out_ref[...] = preds[None]

    # next input token: teacher forcing vs argmax (first-max tie-break).
    m = jnp.max(preds, axis=-1, keepdims=True)
    idx = jax.lax.broadcasted_iota(jnp.int32, preds.shape, 1)
    cand = jnp.where(preds == m, idx, V)
    best = jnp.min(cand, axis=-1, keepdims=True)
    bg_oh = (idx == best).astype(jnp.float32)                        # (N, V)
    use_tf = (tf_ref[j + 1] == 1).astype(jnp.float32)
    x_scr[...] = use_tf * tgt_oh_ref[j + 1] + (1.0 - use_tf) * bg_oh


def decoder_run(tf_flags, tgt_oh, enc, e_enc, dec_emb, wh, be,
                wih_ctx, wih_emb, whh, b_dec, fc_w, fc_b,
                h0, c0, bhw, bhb, bcw, bcb):
    T, N, V = tgt_oh.shape
    H = whh.shape[0]
    operands = (tgt_oh, enc, e_enc, dec_emb, wh, be, wih_ctx, wih_emb, whh,
                b_dec, fc_w, fc_b, h0, c0, bhw, bhb, bcw, bcb)

    def const_spec(a):
        nd = a.ndim
        return pl.BlockSpec(a.shape, lambda j, tf, nd=nd: (0,) * nd)

    grid_spec = pltpu.PrefetchScalarGridSpec(
        num_scalar_prefetch=1,
        grid=(T - 1,),
        in_specs=[const_spec(a) for a in operands],
        out_specs=pl.BlockSpec((1, N, V), lambda j, tf: (j, 0, 0)),
        scratch_shapes=[pltpu.VMEM((N, H), jnp.float32),
                        pltpu.VMEM((N, H), jnp.float32),
                        pltpu.VMEM((N, V), jnp.float32)],
    )
    return pl.pallas_call(
        _decoder_kernel,
        grid_spec=grid_spec,
        out_shape=jax.ShapeDtypeStruct((T - 1, N, V), jnp.float32),
        compiler_params=pltpu.CompilerParams(
            dimension_semantics=("arbitrary",)),
    )(tf_flags, *operands)


# ------------------------------ model (glue) -------------------------------

def init_params(key, src_vocab, tgt_vocab, emb, hid):
    ks = iter(jax.random.split(key, 32))

    def w(shape, scale=0.1):
        return (scale * jax.random.normal(next(ks), shape)).astype(jnp.float32)

    return {
        # encoder
        'enc_emb':   w((src_vocab, emb)),
        'enc_wih_f': w((emb, 4 * hid)), 'enc_whh_f': w((hid, 4 * hid)), 'enc_b_f': w((1, 4 * hid)),
        'enc_wih_b': w((emb, 4 * hid)), 'enc_whh_b': w((hid, 4 * hid)), 'enc_b_b': w((1, 4 * hid)),
        'fc_hidden_w': w((2 * hid, hid)), 'fc_hidden_b': w((1, hid)),
        'fc_cell_w':   w((2 * hid, hid)), 'fc_cell_b':   w((1, hid)),
        # decoder
        'dec_emb':   w((tgt_vocab, emb)),
        'dec_wih':   w((2 * hid + emb, 4 * hid)), 'dec_whh': w((hid, 4 * hid)), 'dec_b': w((1, 4 * hid)),
        'energy_wh':   w((hid, 1)),
        'energy_wenc': w((1, 1, 2 * hid)),
        'energy_b':    w((1, 1, 1)),
        'fc_w': w((hid, tgt_vocab)), 'fc_b': w((1, tgt_vocab)),
    }


def encoder_forward(params, source):
    """source: (S, N) int32 -> encoder_states (S,N,2H), h_cat (N,2H), c_cat (N,2H)."""
    S, N = source.shape
    H = params['enc_whh_f'].shape[0]
    E = params['enc_emb'].shape[1]
    emb = jnp.take(params['enc_emb'], source, axis=0)          # (S, N, E)  (dropout: eval mode)

    # hoisted input projection for BOTH directions: one lane-dense matmul.
    wih_cat = jnp.concatenate([params['enc_wih_f'], params['enc_wih_b']], axis=1)  # (E, 8H)
    b_cat = jnp.concatenate([params['enc_b_f'], params['enc_b_b']], axis=1)        # (1, 8H)
    xp = linear(emb.reshape(S * N, E), wih_cat, b_cat).reshape(S, N, 8 * H)
    xp_f = xp[:, :, :4 * H]
    xp_b = xp[:, :, 4 * H:]

    enc_f, enc_b, h_fin, c_fin = bilstm_encode(
        xp_f, xp_b, params['enc_whh_f'], params['enc_whh_b'])

    encoder_states = jnp.concatenate([enc_f, enc_b], axis=-1)   # (S, N, 2H)
    h_cat = jnp.concatenate([h_fin[0], h_fin[1]], axis=-1)      # (N, 2H)
    c_cat = jnp.concatenate([c_fin[0], c_fin[1]], axis=-1)      # (N, 2H)
    return encoder_states, h_cat, c_cat


def seq2seq_forward(params, source, target, rng, teacher_force_ratio=0.5):
    """Mirrors Seq2Seq.forward: outputs[t] for t in [1, T); outputs[0] stays zero."""
    T, N = target.shape
    V = params['fc_w'].shape[1]
    H = params['dec_whh'].shape[0]

    encoder_states, h_cat, c_cat = encoder_forward(params, source)

    # hidden-independent part of the attention energy, computed once.
    e_enc = jnp.sum(encoder_states * params['energy_wenc'], axis=2, keepdims=True)  # (S,N,1)

    tgt_oh = jax.nn.one_hot(target, V, dtype=jnp.float32)       # (T, N, V)
    # TODO(synk): PyTorch uses Python random.random() per step for teacher forcing;
    # replaced with precomputed per-step jax.random flags for reproducibility.
    tf_flags = (jax.random.uniform(rng, (T,)) < teacher_force_ratio).astype(jnp.int32)

    wih_ctx = params['dec_wih'][:2 * H]                         # rnn_in = [ctx ; emb]
    wih_emb = params['dec_wih'][2 * H:]

    outs = decoder_run(tf_flags, tgt_oh, encoder_states, e_enc,
                       params['dec_emb'], params['energy_wh'], params['energy_b'],
                       wih_ctx, wih_emb, params['dec_whh'], params['dec_b'],
                       params['fc_w'], params['fc_b'],
                       h_cat, c_cat,
                       params['fc_hidden_w'], params['fc_hidden_b'],
                       params['fc_cell_w'], params['fc_cell_b'])   # (T-1, N, V)

    return jnp.concatenate([jnp.zeros((1, N, V), jnp.float32), outs], axis=0)  # (T, N, V)


# ---------------------------------- main ------------------------------------

if __name__ == "__main__":
    SRC_VOCAB, TGT_VOCAB = 32, 32
    EMB, HID = 16, 16            # 8*HID = 128 -> full-lane encoder projection
    S, T, N = 8, 6, 8            # src len, tgt len, batch (sublane-aligned)

    key = jax.random.PRNGKey(0)
    kp, ks, kt, kr = jax.random.split(key, 4)
    params = init_params(kp, SRC_VOCAB, TGT_VOCAB, EMB, HID)
    source = jax.random.randint(ks, (S, N), 0, SRC_VOCAB, dtype=jnp.int32)
    target = jax.random.randint(kt, (T, N), 0, TGT_VOCAB, dtype=jnp.int32)

    fwd = jax.jit(seq2seq_forward, static_argnames=("teacher_force_ratio",))
    out = fwd(params, source, target, kr, teacher_force_ratio=0.5)
    out = jax.block_until_ready(out)

    assert out.shape == (T, N, TGT_VOCAB), out.shape
    assert bool(jnp.all(jnp.isfinite(out)))
    print("KERNEL_OK")
</pallas_src>

<mosaic_0001>
module attributes {stable_mosaic.version = 11 : i64} {
  func.func @_bilstm_kernel(%arg0: i32, %arg1: memref<1x8x64xf32, #tpu.memory_space<vmem>>, %arg2: memref<1x8x64xf32, #tpu.memory_space<vmem>>, %arg3: memref<16x64xf32, #tpu.memory_space<vmem>>, %arg4: memref<16x64xf32, #tpu.memory_space<vmem>>, %arg5: memref<1x8x16xf32, #tpu.memory_space<vmem>>, %arg6: memref<1x8x16xf32, #tpu.memory_space<vmem>>, %arg7: memref<2x8x16xf32, #tpu.memory_space<vmem>>, %arg8: memref<2x8x16xf32, #tpu.memory_space<vmem>>) attributes {dimension_semantics = [#tpu.dimension_semantics<arbitrary>], iteration_bounds = array<i64: 8>, scalar_prefetch = 0 : i64, scratch_operands = 0 : i64, tpu.core_type = #tpu.core_type<tc>, window_params = [{transform_indices = @transform_0, window_bounds = array<i64: 1, 8, 64>}, {transform_indices = @transform_1, window_bounds = array<i64: 1, 8, 64>}, {pipeline_mode = #tpu.pipeline_mode<synchronous>, transform_indices = @transform_2, window_bounds = array<i64: 16, 64>}, {pipeline_mode = #tpu.pipeline_mode<synchronous>, transform_indices = @transform_3, window_bounds = array<i64: 16, 64>}, {transform_indices = @transform_4, window_bounds = array<i64: 1, 8, 16>}, {transform_indices = @transform_5, window_bounds = array<i64: 1, 8, 16>}, {pipeline_mode = #tpu.pipeline_mode<synchronous>, transform_indices = @transform_6, window_bounds = array<i64: 2, 8, 16>}, {pipeline_mode = #tpu.pipeline_mode<synchronous>, transform_indices = @transform_7, window_bounds = array<i64: 2, 8, 16>}]} {
    %c0_i32 = arith.constant 0 : i32
    %0 = arith.cmpi eq, %arg0, %c0_i32 : i32
    %1 = arith.extui %0 : i1 to i32
    %c0_i32_0 = arith.constant 0 : i32
    %2 = arith.cmpi ne, %1, %c0_i32_0 : i32
    scf.if %2 {
      %cst_46 = arith.constant 0.000000e+00 : f32
      %87 = vector.broadcast %cst_46 : f32 to vector<2x8x16xf32>
      %c0_47 = arith.constant 0 : index
      %c0_48 = arith.constant 0 : index
      %c0_49 = arith.constant 0 : index
      %88 = vector.load %arg7[%c0_47, %c0_48, %c0_49] : memref<2x8x16xf32, #tpu.memory_space<vmem>>, vector<2x8x16xf32>
      tpu.vector_store %arg7[%c0_47, %c0_48, %c0_49], %87 {strides = array<i32>} : memref<2x8x16xf32, #tpu.memory_space<vmem>>, vector<2x8x16xf32>,
      %cst_50 = arith.constant 0.000000e+00 : f32
      %89 = vector.broadcast %cst_50 : f32 to vector<2x8x16xf32>
      %c0_51 = arith.constant 0 : index
      %c0_52 = arith.constant 0 : index
      %c0_53 = arith.constant 0 : index
      %90 = vector.load %arg8[%c0_51, %c0_52, %c0_53] : memref<2x8x16xf32, #tpu.memory_space<vmem>>, vector<2x8x16xf32>
      tpu.vector_store %arg8[%c0_51, %c0_52, %c0_53], %89 {strides = array<i32>} : memref<2x8x16xf32, #tpu.memory_space<vmem>>, vector<2x8x16xf32>,
    } else {
    }
    %c0 = arith.constant 0 : index
    %c0_1 = arith.constant 0 : index
    %c0_2 = arith.constant 0 : index
    %3 = vector.load %arg1[%c0, %c0_1, %c0_2] : memref<1x8x64xf32, #tpu.memory_space<vmem>>, vector<1x8x64xf32>
    %4 = vector.shape_cast %3 : vector<1x8x64xf32> to vector<8x64xf32>
    %c0_3 = arith.constant 0 : index
    %c0_4 = arith.constant 0 : index
    %c0_5 = arith.constant 0 : index
    %5 = vector.load %arg7[%c0_3, %c0_4, %c0_5] : memref<2x8x16xf32, #tpu.memory_space<vmem>>, vector<1x8x16xf32>
    %6 = vector.shape_cast %5 : vector<1x8x16xf32> to vector<8x16xf32>
    %c0_6 = arith.constant 0 : index
    %c0_7 = arith.constant 0 : index
    %7 = vector.load %arg3[%c0_6, %c0_7] : memref<16x64xf32, #tpu.memory_space<vmem>>, vector<16x64xf32>
    %cst = arith.constant dense<0.000000e+00> : vector<8x64xf32>
    %8 = tpu.matmul %6, %7, %cst {dimension_numbers = #tpu.dot_dimension_numbers<[1], [0], [0], [1], [0, 0, 1, 1], [], []>} : vector<8x16xf32>, vector<16x64xf32>, vector<8x64xf32> -> vector<8x64xf32>
    %9 = arith.addf %4, %8 : vector<8x64xf32>
    %c0_8 = arith.constant 0 : index
    %c0_9 = arith.constant 0 : index
    %c0_10 = arith.constant 0 : index
    %10 = vector.load %arg8[%c0_8, %c0_9, %c0_10] : memref<2x8x16xf32, #tpu.memory_space<vmem>>, vector<1x8x16xf32>
    %11 = vector.shape_cast %10 : vector<1x8x16xf32> to vector<8x16xf32>
    %12 = vector.extract_strided_slice %9 {offsets = [0, 0], sizes = [8, 16], strides = [1, 1]} : vector<8x64xf32> to vector<8x16xf32>
    %13 = arith.negf %12 : vector<8x16xf32>
    %14 = math.exp %13 : vector<8x16xf32>
    %cst_11 = arith.constant 1.000000e+00 : f32
    %15 = vector.broadcast %cst_11 : f32 to vector<8x16xf32>
    %16 = arith.addf %15, %14 : vector<8x16xf32>
    %17 = arith.divf %15, %16 : vector<8x16xf32>
    %18 = vector.extract_strided_slice %9 {offsets = [0, 16], sizes = [8, 16], strides = [1, 1]} : vector<8x64xf32> to vector<8x16xf32>
    %19 = arith.negf %18 : vector<8x16xf32>
    %20 = math.exp %19 : vector<8x16xf32>
    %cst_12 = arith.constant 1.000000e+00 : f32
    %21 = vector.broadcast %cst_12 : f32 to vector<8x16xf32>
    %22 = arith.addf %21, %20 : vector<8x16xf32>
    %23 = arith.divf %21, %22 : vector<8x16xf32>
    %24 = vector.extract_strided_slice %9 {offsets = [0, 32], sizes = [8, 16], strides = [1, 1]} : vector<8x64xf32> to vector<8x16xf32>
    %25 = math.tanh %24 : vector<8x16xf32>
    %26 = vector.extract_strided_slice %9 {offsets = [0, 48], sizes = [8, 16], strides = [1, 1]} : vector<8x64xf32> to vector<8x16xf32>
    %27 = arith.negf %26 : vector<8x16xf32>
    %28 = math.exp %27 : vector<8x16xf32>
    %cst_13 = arith.constant 1.000000e+00 : f32
    %29 = vector.broadcast %cst_13 : f32 to vector<8x16xf32>
    %30 = arith.addf %29, %28 : vector<8x16xf32>
    %31 = arith.divf %29, %30 : vector<8x16xf32>
    %32 = arith.mulf %23, %11 : vector<8x16xf32>
    %33 = arith.mulf %17, %25 : vector<8x16xf32>
    %34 = arith.addf %32, %33 : vector<8x16xf32>
    %35 = math.tanh %34 : vector<8x16xf32>
    %36 = arith.mulf %31, %35 : vector<8x16xf32>
    %c0_14 = arith.constant 0 : index
    %c0_15 = arith.constant 0 : index
    %c0_16 = arith.constant 0 : index
    %37 = vector.load %arg2[%c0_14, %c0_15, %c0_16] : memref<1x8x64xf32, #tpu.memory_space<vmem>>, vector<1x8x64xf32>
    %38 = vector.shape_cast %37 : vector<1x8x64xf32> to vector<8x64xf32>
    %c1 = arith.constant 1 : index
    %c0_17 = arith.constant 0 : index
    %c0_18 = arith.constant 0 : index
    %39 = vector.load %arg7[%c1, %c0_17, %c0_18] : memref<2x8x16xf32, #tpu.memory_space<vmem>>, vector<1x8x16xf32>
    %40 = vector.shape_cast %39 : vector<1x8x16xf32> to vector<8x16xf32>
    %c0_19 = arith.constant 0 : index
    %c0_20 = arith.constant 0 : index
    %41 = vector.load %arg4[%c0_19, %c0_20] : memref<16x64xf32, #tpu.memory_space<vmem>>, vector<16x64xf32>
    %cst_21 = arith.constant dense<0.000000e+00> : vector<8x64xf32>
    %42 = tpu.matmul %40, %41, %cst_21 {dimension_numbers = #tpu.dot_dimension_numbers<[1], [0], [0], [1], [0, 0, 1, 1], [], []>} : vector<8x16xf32>, vector<16x64xf32>, vector<8x64xf32> -> vector<8x64xf32>
    %43 = arith.addf %38, %42 : vector<8x64xf32>
    %c1_22 = arith.constant 1 : index
    %c0_23 = arith.constant 0 : index
    %c0_24 = arith.constant 0 : index
    %44 = vector.load %arg8[%c1_22, %c0_23, %c0_24] : memref<2x8x16xf32, #tpu.memory_space<vmem>>, vector<1x8x16xf32>
    %45 = vector.shape_cast %44 : vector<1x8x16xf32> to vector<8x16xf32>
    %46 = vector.extract_strided_slice %43 {offsets = [0, 0], sizes = [8, 16], strides = [1, 1]} : vector<8x64xf32> to vector<8x16xf32>
    %47 = arith.negf %46 : vector<8x16xf32>
    %48 = math.exp %47 : vector<8x16xf32>
    %cst_25 = arith.constant 1.000000e+00 : f32
    %49 = vector.broadcast %cst_25 : f32 to vector<8x16xf32>
    %50 = arith.addf %49, %48 : vector<8x16xf32>
    %51 = arith.divf %49, %50 : vector<8x16xf32>
    %52 = vector.extract_strided_slice %43 {offsets = [0, 16], sizes = [8, 16], strides = [1, 1]} : vector<8x64xf32> to vector<8x16xf32>
    %53 = arith.negf %52 : vector<8x16xf32>
    %54 = math.exp %53 : vector<8x16xf32>
    %cst_26 = arith.constant 1.000000e+00 : f32
    %55 = vector.broadcast %cst_26 : f32 to vector<8x16xf32>
    %56 = arith.addf %55, %54 : vector<8x16xf32>
    %57 = arith.divf %55, %56 : vector<8x16xf32>
    %58 = vector.extract_strided_slice %43 {offsets = [0, 32], sizes = [8, 16], strides = [1, 1]} : vector<8x64xf32> to vector<8x16xf32>
    %59 = math.tanh %58 : vector<8x16xf32>
    %60 = vector.extract_strided_slice %43 {offsets = [0, 48], sizes = [8, 16], strides = [1, 1]} : vector<8x64xf32> to vector<8x16xf32>
    %61 = arith.negf %60 : vector<8x16xf32>
    %62 = math.exp %61 : vector<8x16xf32>
    %cst_27 = arith.constant 1.000000e+00 : f32
    %63 = vector.broadcast %cst_27 : f32 to vector<8x16xf32>
    %64 = arith.addf %63, %62 : vector<8x16xf32>
    %65 = arith.divf %63, %64 : vector<8x16xf32>
    %66 = arith.mulf %57, %45 : vector<8x16xf32>
    %67 = arith.mulf %51, %59 : vector<8x16xf32>
    %68 = arith.addf %66, %67 : vector<8x16xf32>
    %69 = math.tanh %68 : vector<8x16xf32>
    %70 = arith.mulf %65, %69 : vector<8x16xf32>
    %c0_28 = arith.constant 0 : index
    %c0_29 = arith.constant 0 : index
    %c0_30 = arith.constant 0 : index
    %71 = vector.load %arg7[%c0_28, %c0_29, %c0_30] : memref<2x8x16xf32, #tpu.memory_space<vmem>>, vector<1x8x16xf32>
    %72 = vector.shape_cast %71 : vector<1x8x16xf32> to vector<8x16xf32>
    %73 = vector.shape_cast %36 : vector<8x16xf32> to vector<1x8x16xf32>
    tpu.vector_store %arg7[%c0_28, %c0_29, %c0_30], %73 {strides = array<i32>} : memref<2x8x16xf32, #tpu.memory_space<vmem>>, vector<1x8x16xf32>,
    %c0_31 = arith.constant 0 : index
    %c0_32 = arith.constant 0 : index
    %c0_33 = arith.constant 0 : index
    %74 = vector.load %arg8[%c0_31, %c0_32, %c0_33] : memref<2x8x16xf32, #tpu.memory_space<vmem>>, vector<1x8x16xf32>
    %75 = vector.shape_cast %74 : vector<1x8x16xf32> to vector<8x16xf32>
    %76 = vector.shape_cast %34 : vector<8x16xf32> to vector<1x8x16xf32>
    tpu.vector_store %arg8[%c0_31, %c0_32, %c0_33], %76 {strides = array<i32>} : memref<2x8x16xf32, #tpu.memory_space<vmem>>, vector<1x8x16xf32>,
    %c1_34 = arith.constant 1 : index
    %c0_35 = arith.constant 0 : index
    %c0_36 = arith.constant 0 : index
    %77 = vector.load %arg7[%c1_34, %c0_35, %c0_36] : memref<2x8x16xf32, #tpu.memory_space<vmem>>, vector<1x8x16xf32>
    %78 = vector.shape_cast %77 : vector<1x8x16xf32> to vector<8x16xf32>
    %79 = vector.shape_cast %70 : vector<8x16xf32> to vector<1x8x16xf32>
    tpu.vector_store %arg7[%c1_34, %c0_35, %c0_36], %79 {strides = array<i32>} : memref<2x8x16xf32, #tpu.memory_space<vmem>>, vector<1x8x16xf32>,
    %c1_37 = arith.constant 1 : index
    %c0_38 = arith.constant 0 : index
    %c0_39 = arith.constant 0 : index
    %80 = vector.load %arg8[%c1_37, %c0_38, %c0_39] : memref<2x8x16xf32, #tpu.memory_space<vmem>>, vector<1x8x16xf32>
    %81 = vector.shape_cast %80 : vector<1x8x16xf32> to vector<8x16xf32>
    %82 = vector.shape_cast %68 : vector<8x16xf32> to vector<1x8x16xf32>
    tpu.vector_store %arg8[%c1_37, %c0_38, %c0_39], %82 {strides = array<i32>} : memref<2x8x16xf32, #tpu.memory_space<vmem>>, vector<1x8x16xf32>,
    %83 = vector.shape_cast %36 : vector<8x16xf32> to vector<1x8x16xf32>
    %c0_40 = arith.constant 0 : index
    %c0_41 = arith.constant 0 : index
    %c0_42 = arith.constant 0 : index
    %84 = vector.load %arg5[%c0_40, %c0_41, %c0_42] : memref<1x8x16xf32, #tpu.memory_space<vmem>>, vector<1x8x16xf32>
    tpu.vector_store %arg5[%c0_40, %c0_41, %c0_42], %83 {strides = array<i32>} : memref<1x8x16xf32, #tpu.memory_space<vmem>>, vector<1x8x16xf32>,
    %85 = vector.shape_cast %70 : vector<8x16xf32> to vector<1x8x16xf32>
    %c0_43 = arith.constant 0 : index
    %c0_44 = arith.constant 0 : index
    %c0_45 = arith.constant 0 : index
    %86 = vector.load %arg6[%c0_43, %c0_44, %c0_45] : memref<1x8x16xf32, #tpu.memory_space<vmem>>, vector<1x8x16xf32>
    tpu.vector_store %arg6[%c0_43, %c0_44, %c0_45], %85 {strides = array<i32>} : memref<1x8x16xf32, #tpu.memory_space<vmem>>, vector<1x8x16xf32>,
    return
  }
  func.func @transform_0(%arg0: i32) -> (i32, i32, i32) {
    %c0_i32 = arith.constant 0 : i32
    %c0_i32_0 = arith.constant 0 : i32
    %c0_i32_1 = arith.constant 0 : i32
    return %arg0, %c0_i32, %c0_i32_0 : i32, i32, i32
  }
  func.func @transform_1(%arg0: i32) -> (i32, i32, i32) {
    %c7_i32 = arith.constant 7 : i32
    %0 = arith.subi %c7_i32, %arg0 : i32
    %c0_i32 = arith.constant 0 : i32
    %c0_i32_0 = arith.constant 0 : i32
    %c0_i32_1 = arith.constant 0 : i32
    return %0, %c0_i32, %c0_i32_0 : i32, i32, i32
  }
  func.func @transform_2(%arg0: i32) -> (i32, i32) {
    %c0_i32 = arith.constant 0 : i32
    %c0_i32_0 = arith.constant 0 : i32
    %c0_i32_1 = arith.constant 0 : i32
    return %c0_i32, %c0_i32_0 : i32, i32
  }
  func.func @transform_3(%arg0: i32) -> (i32, i32) {
    %c0_i32 = arith.constant 0 : i32
    %c0_i32_0 = arith.constant 0 : i32
    %c0_i32_1 = arith.constant 0 : i32
    return %c0_i32, %c0_i32_0 : i32, i32
  }
  func.func @transform_4(%arg0: i32) -> (i32, i32, i32) {
    %c0_i32 = arith.constant 0 : i32
    %c0_i32_0 = arith.constant 0 : i32
    %c0_i32_1 = arith.constant 0 : i32
    return %arg0, %c0_i32, %c0_i32_0 : i32, i32, i32
  }
  func.func @transform_5(%arg0: i32) -> (i32, i32, i32) {
    %c7_i32 = arith.constant 7 : i32
    %0 = arith.subi %c7_i32, %arg0 : i32
    %c0_i32 = arith.constant 0 : i32
    %c0_i32_0 = arith.constant 0 : i32
    %c0_i32_1 = arith.constant 0 : i32
    return %0, %c0_i32, %c0_i32_0 : i32, i32, i32
  }
  func.func @transform_6(%arg0: i32) -> (i32, i32, i32) {
    %c0_i32 = arith.constant 0 : i32
    %c0_i32_0 = arith.constant 0 : i32
    %c0_i32_1 = arith.constant 0 : i32
    %c0_i32_2 = arith.constant 0 : i32
    return %c0_i32, %c0_i32_0, %c0_i32_1 : i32, i32, i32
  }
  func.func @transform_7(%arg0: i32) -> (i32, i32, i32) {
    %c0_i32 = arith.constant 0 : i32
    %c0_i32_0 = arith.constant 0 : i32
    %c0_i32_1 = arith.constant 0 : i32
    %c0_i32_2 = arith.constant 0 : i32
    return %c0_i32, %c0_i32_0, %c0_i32_1 : i32, i32, i32
  }
}

module attributes {stable_mosaic.version = 11 : i64} {
  func.func @_linear_kernel(%arg0: memref<64x16xf32, #tpu.memory_space<vmem>>, %arg1: memref<16x128xf32, #tpu.memory_space<vmem>>, %arg2: memref<1x128xf32, #tpu.memory_space<vmem>>, %arg3: memref<64x128xf32, #tpu.memory_space<vmem>>) attributes {dimension_semantics = [], scalar_prefetch = 0 : i64, scratch_operands = 0 : i64, tpu.core_type = #tpu.core_type<tc>} {
    %c0 = arith.constant 0 : index
    %c0_0 = arith.constant 0 : index
    %0 = vector.load %arg0[%c0, %c0_0] : memref<64x16xf32, #tpu.memory_space<vmem>>, vector<64x16xf32>
    %c0_1 = arith.constant 0 : index
    %c0_2 = arith.constant 0 : index
    %1 = vector.load %arg1[%c0_1, %c0_2] : memref<16x128xf32, #tpu.memory_space<vmem>>, vector<16x128xf32>
    %cst = arith.constant dense<0.000000e+00> : vector<64x128xf32>
    %2 = tpu.matmul %0, %1, %cst {dimension_numbers = #tpu.dot_dimension_numbers<[1], [0], [0], [1], [0, 0, 1, 1], [], []>} : vector<64x16xf32>, vector<16x128xf32>, vector<64x128xf32> -> vector<64x128xf32>
    %c0_3 = arith.constant 0 : index
    %c0_4 = arith.constant 0 : index
    %3 = vector.load %arg2[%c0_3, %c0_4] : memref<1x128xf32, #tpu.memory_space<vmem>>, vector<1x128xf32>
    %4 = vector.broadcast %3 : vector<1x128xf32> to vector<64x128xf32>
    %5 = arith.addf %2, %4 : vector<64x128xf32>
    %c0_5 = arith.constant 0 : index
    %c0_6 = arith.constant 0 : index
    %6 = vector.load %arg3[%c0_5, %c0_6] : memref<64x128xf32, #tpu.memory_space<vmem>>, vector<64x128xf32>
    tpu.vector_store %arg3[%c0_5, %c0_6], %5 {strides = array<i32>} : memref<64x128xf32, #tpu.memory_space<vmem>>, vector<64x128xf32>,
    return
  }
}

module attributes {stable_mosaic.version = 11 : i64} {
  func.func @_decoder_kernel(%arg0: i32, %arg1: memref<6xi32, #tpu.memory_space<smem>>, %arg2: memref<6x8x32xf32, #tpu.memory_space<vmem>>, %arg3: memref<8x8x32xf32, #tpu.memory_space<vmem>>, %arg4: memref<8x8x1xf32, #tpu.memory_space<vmem>>, %arg5: memref<32x16xf32, #tpu.memory_space<vmem>>, %arg6: memref<16x1xf32, #tpu.memory_space<vmem>>, %arg7: memref<1x1x1xf32, #tpu.memory_space<vmem>>, %arg8: memref<32x64xf32, #tpu.memory_space<vmem>>, %arg9: memref<16x64xf32, #tpu.memory_space<vmem>>, %arg10: memref<16x64xf32, #tpu.memory_space<vmem>>, %arg11: memref<1x64xf32, #tpu.memory_space<vmem>>, %arg12: memref<16x32xf32, #tpu.memory_space<vmem>>, %arg13: memref<1x32xf32, #tpu.memory_space<vmem>>, %arg14: memref<8x32xf32, #tpu.memory_space<vmem>>, %arg15: memref<8x32xf32, #tpu.memory_space<vmem>>, %arg16: memref<32x16xf32, #tpu.memory_space<vmem>>, %arg17: memref<1x16xf32, #tpu.memory_space<vmem>>, %arg18: memref<32x16xf32, #tpu.memory_space<vmem>>, %arg19: memref<1x16xf32, #tpu.memory_space<vmem>>, %arg20: memref<1x8x32xf32, #tpu.memory_space<vmem>>, %arg21: memref<8x16xf32, #tpu.memory_space<vmem>>, %arg22: memref<8x16xf32, #tpu.memory_space<vmem>>, %arg23: memref<8x32xf32, #tpu.memory_space<vmem>>) attributes {dimension_semantics = [#tpu.dimension_semantics<arbitrary>], iteration_bounds = array<i64: 5>, scalar_prefetch = 1 : i64, scratch_operands = 3 : i64, tpu.core_type = #tpu.core_type<tc>, window_params = [{pipeline_mode = #tpu.pipeline_mode<synchronous>, transform_indices = @transform_0, window_bounds = array<i64: 6, 8, 32>}, {pipeline_mode = #tpu.pipeline_mode<synchronous>, transform_indices = @transform_1, window_bounds = array<i64: 8, 8, 32>}, {pipeline_mode = #tpu.pipeline_mode<synchronous>, transform_indices = @transform_2, window_bounds = array<i64: 8, 8, 1>}, {pipeline_mode = #tpu.pipeline_mode<synchronous>, transform_indices = @transform_3, window_bounds = array<i64: 32, 16>}, {pipeline_mode = #tpu.pipeline_mode<synchronous>, transform_indices = @transform_4, window_bounds = array<i64: 16, 1>}, {pipeline_mode = #tpu.pipeline_mode<synchronous>, transform_indices = @transform_5, window_bounds = array<i64: 1, 1, 1>}, {pipeline_mode = #tpu.pipeline_mode<synchronous>, transform_indices = @transform_6, window_bounds = array<i64: 32, 64>}, {pipeline_mode = #tpu.pipeline_mode<synchronous>, transform_indices = @transform_7, window_bounds = array<i64: 16, 64>}, {pipeline_mode = #tpu.pipeline_mode<synchronous>, transform_indices = @transform_8, window_bounds = array<i64: 16, 64>}, {pipeline_mode = #tpu.pipeline_mode<synchronous>, transform_indices = @transform_9, window_bounds = array<i64: 1, 64>}, {pipeline_mode = #tpu.pipeline_mode<synchronous>, transform_indices = @transform_10, window_bounds = array<i64: 16, 32>}, {pipeline_mode = #tpu.pipeline_mode<synchronous>, transform_indices = @transform_11, window_bounds = array<i64: 1, 32>}, {pipeline_mode = #tpu.pipeline_mode<synchronous>, transform_indices = @transform_12, window_bounds = array<i64: 8, 32>}, {pipeline_mode = #tpu.pipeline_mode<synchronous>, transform_indices = @transform_13, window_bounds = array<i64: 8, 32>}, {pipeline_mode = #tpu.pipeline_mode<synchronous>, transform_indices = @transform_14, window_bounds = array<i64: 32, 16>}, {pipeline_mode = #tpu.pipeline_mode<synchronous>, transform_indices = @transform_15, window_bounds = array<i64: 1, 16>}, {pipeline_mode = #tpu.pipeline_mode<synchronous>, transform_indices = @transform_16, window_bounds = array<i64: 32, 16>}, {pipeline_mode = #tpu.pipeline_mode<synchronous>, transform_indices = @transform_17, window_bounds = array<i64: 1, 16>}, {transform_indices = @transform_18, window_bounds = array<i64: 1, 8, 32>}]} {
    %c0_i32 = arith.constant 0 : i32
    %0 = arith.cmpi eq, %arg0, %c0_i32 : i32
    %1 = arith.extui %0 : i1 to i32
    %c0_i32_0 = arith.constant 0 : i32
    %2 = arith.cmpi ne, %1, %c0_i32_0 : i32
    scf.if %2 {
      %c0_59 = arith.constant 0 : index
      %c0_60 = arith.constant 0 : index
      %107 = vector.load %arg14[%c0_59, %c0_60] : memref<8x32xf32, #tpu.memory_space<vmem>>, vector<8x32xf32>
      %c0_61 = arith.constant 0 : index
      %c0_62 = arith.constant 0 : index
      %108 = vector.load %arg16[%c0_61, %c0_62] : memref<32x16xf32, #tpu.memory_space<vmem>>, vector<32x16xf32>
      %cst_63 = arith.constant dense<0.000000e+00> : vector<8x16xf32>
      %109 = tpu.matmul %107, %108, %cst_63 {dimension_numbers = #tpu.dot_dimension_numbers<[1], [0], [0], [1], [0, 0, 1, 1], [], []>} : vector<8x32xf32>, vector<32x16xf32>, vector<8x16xf32> -> vector<8x16xf32>
      %c0_64 = arith.constant 0 : index
      %c0_65 = arith.constant 0 : index
      %110 = vector.load %arg17[%c0_64, %c0_65] : memref<1x16xf32, #tpu.memory_space<vmem>>, vector<1x16xf32>
      %111 = vector.broadcast %110 : vector<1x16xf32> to vector<8x16xf32>
      %112 = arith.addf %109, %111 : vector<8x16xf32>
      %c0_66 = arith.constant 0 : index
      %c0_67 = arith.constant 0 : index
      %113 = vector.load %arg21[%c0_66, %c0_67] : memref<8x16xf32, #tpu.memory_space<vmem>>, vector<8x16xf32>
      tpu.vector_store %arg21[%c0_66, %c0_67], %112 {strides = array<i32>} : memref<8x16xf32, #tpu.memory_space<vmem>>, vector<8x16xf32>,
      %c0_68 = arith.constant 0 : index
      %c0_69 = arith.constant 0 : index
      %114 = vector.load %arg15[%c0_68, %c0_69] : memref<8x32xf32, #tpu.memory_space<vmem>>, vector<8x32xf32>
      %c0_70 = arith.constant 0 : index
      %c0_71 = arith.constant 0 : index
      %115 = vector.load %arg18[%c0_70, %c0_71] : memref<32x16xf32, #tpu.memory_space<vmem>>, vector<32x16xf32>
      %cst_72 = arith.constant dense<0.000000e+00> : vector<8x16xf32>
      %116 = tpu.matmul %114, %115, %cst_72 {dimension_numbers = #tpu.dot_dimension_numbers<[1], [0], [0], [1], [0, 0, 1, 1], [], []>} : vector<8x32xf32>, vector<32x16xf32>, vector<8x16xf32> -> vector<8x16xf32>
      %c0_73 = arith.constant 0 : index
      %c0_74 = arith.constant 0 : index
      %117 = vector.load %arg19[%c0_73, %c0_74] : memref<1x16xf32, #tpu.memory_space<vmem>>, vector<1x16xf32>
      %118 = vector.broadcast %117 : vector<1x16xf32> to vector<8x16xf32>
      %119 = arith.addf %116, %118 : vector<8x16xf32>
      %c0_75 = arith.constant 0 : index
      %c0_76 = arith.constant 0 : index
      %120 = vector.load %arg22[%c0_75, %c0_76] : memref<8x16xf32, #tpu.memory_space<vmem>>, vector<8x16xf32>
      tpu.vector_store %arg22[%c0_75, %c0_76], %119 {strides = array<i32>} : memref<8x16xf32, #tpu.memory_space<vmem>>, vector<8x16xf32>,
      %c0_77 = arith.constant 0 : index
      %c0_78 = arith.constant 0 : index
      %c0_79 = arith.constant 0 : index
      %121 = vector.load %arg2[%c0_77, %c0_78, %c0_79] : memref<6x8x32xf32, #tpu.memory_space<vmem>>, vector<1x8x32xf32>
      %122 = vector.shape_cast %121 : vector<1x8x32xf32> to vector<8x32xf32>
      %c0_80 = arith.constant 0 : index
      %c0_81 = arith.constant 0 : index
      %123 = vector.load %arg23[%c0_80, %c0_81] : memref<8x32xf32, #tpu.memory_space<vmem>>, vector<8x32xf32>
      tpu.vector_store %arg23[%c0_80, %c0_81], %122 {strides = array<i32>} : memref<8x32xf32, #tpu.memory_space<vmem>>, vector<8x32xf32>,
    } else {
    }
    %c0 = arith.constant 0 : index
    %c0_1 = arith.constant 0 : index
    %3 = vector.load %arg21[%c0, %c0_1] : memref<8x16xf32, #tpu.memory_space<vmem>>, vector<8x16xf32>
    %c0_2 = arith.constant 0 : index
    %c0_3 = arith.constant 0 : index
    %4 = vector.load %arg22[%c0_2, %c0_3] : memref<8x16xf32, #tpu.memory_space<vmem>>, vector<8x16xf32>
    %c0_4 = arith.constant 0 : index
    %c0_5 = arith.constant 0 : index
    %5 = vector.load %arg23[%c0_4, %c0_5] : memref<8x32xf32, #tpu.memory_space<vmem>>, vector<8x32xf32>
    %c0_6 = arith.constant 0 : index
    %c0_7 = arith.constant 0 : index
    %6 = vector.load %arg5[%c0_6, %c0_7] : memref<32x16xf32, #tpu.memory_space<vmem>>, vector<32x16xf32>
    %cst = arith.constant dense<0.000000e+00> : vector<8x16xf32>
    %7 = tpu.matmul %5, %6, %cst {dimension_numbers = #tpu.dot_dimension_numbers<[1], [0], [0], [1], [0, 0, 1, 1], [], []>} : vector<8x32xf32>, vector<32x16xf32>, vector<8x16xf32> -> vector<8x16xf32>
    %c0_8 = arith.constant 0 : index
    %c0_9 = arith.constant 0 : index
    %8 = vector.load %arg6[%c0_8, %c0_9] : memref<16x1xf32, #tpu.memory_space<vmem>>, vector<16x1xf32>
    %cst_10 = arith.constant dense<0.000000e+00> : vector<8x1xf32>
    %9 = tpu.matmul %3, %8, %cst_10 {dimension_numbers = #tpu.dot_dimension_numbers<[1], [0], [0], [1], [0, 0, 1, 1], [], []>} : vector<8x16xf32>, vector<16x1xf32>, vector<8x1xf32> -> vector<8x1xf32>
    %c0_11 = arith.constant 0 : index
    %c0_12 = arith.constant 0 : index
    %c0_13 = arith.constant 0 : index
    %10 = vector.load %arg4[%c0_11, %c0_12, %c0_13] : memref<8x8x1xf32, #tpu.memory_space<vmem>>, vector<8x8x1xf32>
    %11 = vector.shape_cast %9 : vector<8x1xf32> to vector<1x8x1xf32>
    %12 = vector.broadcast %11 : vector<1x8x1xf32> to vector<8x8x1xf32>
    %13 = arith.addf %10, %12 : vector<8x8x1xf32>
    %c0_14 = arith.constant 0 : index
    %c0_15 = arith.constant 0 : index
    %c0_16 = arith.constant 0 : index
    %14 = vector.load %arg7[%c0_14, %c0_15, %c0_16] : memref<1x1x1xf32, #tpu.memory_space<vmem>>, vector<1x1x1xf32>
    %15 = vector.broadcast %14 : vector<1x1x1xf32> to vector<8x8x1xf32>
    %16 = arith.addf %13, %15 : vector<8x8x1xf32>
    %cst_17 = arith.constant 0.000000e+00 : f32
    %17 = vector.broadcast %cst_17 : f32 to vector<8x8x1xf32>
    %18 = arith.maximumf %16, %17 : vector<8x8x1xf32>
    %cst_18 = arith.constant dense<0xFF800000> : vector<8x1xf32>
    %19 = vector.multi_reduction <maximumf>, %18, %cst_18 [0] : vector<8x8x1xf32> to vector<8x1xf32>
    %20 = vector.shape_cast %19 : vector<8x1xf32> to vector<1x8x1xf32>
    %21 = vector.broadcast %20 : vector<1x8x1xf32> to vector<8x8x1xf32>
    %22 = arith.subf %18, %21 : vector<8x8x1xf32>
    %23 = math.exp %22 : vector<8x8x1xf32>
    %cst_19 = arith.constant dense<0.000000e+00> : vector<8x1xf32>
    %24 = vector.multi_reduction <add>, %23, %cst_19 [0] : vector<8x8x1xf32> to vector<8x1xf32>
    %25 = vector.shape_cast %24 : vector<8x1xf32> to vector<1x8x1xf32>
    %26 = vector.broadcast %25 : vector<1x8x1xf32> to vector<8x8x1xf32>
    %27 = arith.divf %23, %26 : vector<8x8x1xf32>
    %c0_20 = arith.constant 0 : index
    %c0_21 = arith.constant 0 : index
    %c0_22 = arith.constant 0 : index
    %28 = vector.load %arg3[%c0_20, %c0_21, %c0_22] : memref<8x8x32xf32, #tpu.memory_space<vmem>>, vector<8x8x32xf32>
    %29 = vector.broadcast %27 : vector<8x8x1xf32> to vector<8x8x32xf32>
    %30 = arith.mulf %29, %28 : vector<8x8x32xf32>
    %cst_23 = arith.constant dense<0.000000e+00> : vector<8x32xf32>
    %31 = vector.multi_reduction <add>, %30, %cst_23 [0] : vector<8x8x32xf32> to vector<8x32xf32>
    %c0_24 = arith.constant 0 : index
    %c0_25 = arith.constant 0 : index
    %32 = vector.load %arg8[%c0_24, %c0_25] : memref<32x64xf32, #tpu.memory_space<vmem>>, vector<32x64xf32>
    %cst_26 = arith.constant dense<0.000000e+00> : vector<8x64xf32>
    %33 = tpu.matmul %31, %32, %cst_26 {dimension_numbers = #tpu.dot_dimension_numbers<[1], [0], [0], [1], [0, 0, 1, 1], [], []>} : vector<8x32xf32>, vector<32x64xf32>, vector<8x64xf32> -> vector<8x64xf32>
    %c0_27 = arith.constant 0 : index
    %c0_28 = arith.constant 0 : index
    %34 = vector.load %arg9[%c0_27, %c0_28] : memref<16x64xf32, #tpu.memory_space<vmem>>, vector<16x64xf32>
    %cst_29 = arith.constant dense<0.000000e+00> : vector<8x64xf32>
    %35 = tpu.matmul %7, %34, %cst_29 {dimension_numbers = #tpu.dot_dimension_numbers<[1], [0], [0], [1], [0, 0, 1, 1], [], []>} : vector<8x16xf32>, vector<16x64xf32>, vector<8x64xf32> -> vector<8x64xf32>
    %36 = arith.addf %33, %35 : vector<8x64xf32>
    %c0_30 = arith.constant 0 : index
    %c0_31 = arith.constant 0 : index
    %37 = vector.load %arg10[%c0_30, %c0_31] : memref<16x64xf32, #tpu.memory_space<vmem>>, vector<16x64xf32>
    %cst_32 = arith.constant dense<0.000000e+00> : vector<8x64xf32>
    %38 = tpu.matmul %3, %37, %cst_32 {dimension_numbers = #tpu.dot_dimension_numbers<[1], [0], [0], [1], [0, 0, 1, 1], [], []>} : vector<8x16xf32>, vector<16x64xf32>, vector<8x64xf32> -> vector<8x64xf32>
    %39 = arith.addf %36, %38 : vector<8x64xf32>
    %c0_33 = arith.constant 0 : index
    %c0_34 = arith.constant 0 : index
    %40 = vector.load %arg11[%c0_33, %c0_34] : memref<1x64xf32, #tpu.memory_space<vmem>>, vector<1x64xf32>
    %41 = vector.broadcast %40 : vector<1x64xf32> to vector<8x64xf32>
    %42 = arith.addf %39, %41 : vector<8x64xf32>
    %43 = vector.extract_strided_slice %42 {offsets = [0, 0], sizes = [8, 16], strides = [1, 1]} : vector<8x64xf32> to vector<8x16xf32>
    %44 = arith.negf %43 : vector<8x16xf32>
    %45 = math.exp %44 : vector<8x16xf32>
    %cst_35 = arith.constant 1.000000e+00 : f32
    %46 = vector.broadcast %cst_35 : f32 to vector<8x16xf32>
    %47 = arith.addf %46, %45 : vector<8x16xf32>
    %48 = arith.divf %46, %47 : vector<8x16xf32>
    %49 = vector.extract_strided_slice %42 {offsets = [0, 16], sizes = [8, 16], strides = [1, 1]} : vector<8x64xf32> to vector<8x16xf32>
    %50 = arith.negf %49 : vector<8x16xf32>
    %51 = math.exp %50 : vector<8x16xf32>
    %cst_36 = arith.constant 1.000000e+00 : f32
    %52 = vector.broadcast %cst_36 : f32 to vector<8x16xf32>
    %53 = arith.addf %52, %51 : vector<8x16xf32>
    %54 = arith.divf %52, %53 : vector<8x16xf32>
    %55 = vector.extract_strided_slice %42 {offsets = [0, 32], sizes = [8, 16], strides = [1, 1]} : vector<8x64xf32> to vector<8x16xf32>
    %56 = math.tanh %55 : vector<8x16xf32>
    %57 = vector.extract_strided_slice %42 {offsets = [0, 48], sizes = [8, 16], strides = [1, 1]} : vector<8x64xf32> to vector<8x16xf32>
    %58 = arith.negf %57 : vector<8x16xf32>
    %59 = math.exp %58 : vector<8x16xf32>
    %cst_37 = arith.constant 1.000000e+00 : f32
    %60 = vector.broadcast %cst_37 : f32 to vector<8x16xf32>
    %61 = arith.addf %60, %59 : vector<8x16xf32>
    %62 = arith.divf %60, %61 : vector<8x16xf32>
    %63 = arith.mulf %54, %4 : vector<8x16xf32>
    %64 = arith.mulf %48, %56 : vector<8x16xf32>
    %65 = arith.addf %63, %64 : vector<8x16xf32>
    %66 = math.tanh %65 : vector<8x16xf32>
    %67 = arith.mulf %62, %66 : vector<8x16xf32>
    %c0_38 = arith.constant 0 : index
    %c0_39 = arith.constant 0 : index
    %68 = vector.load %arg21[%c0_38, %c0_39] : memref<8x16xf32, #tpu.memory_space<vmem>>, vector<8x16xf32>
    tpu.vector_store %arg21[%c0_38, %c0_39], %67 {strides = array<i32>} : memref<8x16xf32, #tpu.memory_space<vmem>>, vector<8x16xf32>,
    %c0_40 = arith.constant 0 : index
    %c0_41 = arith.constant 0 : index
    %69 = vector.load %arg22[%c0_40, %c0_41] : memref<8x16xf32, #tpu.memory_space<vmem>>, vector<8x16xf32>
    tpu.vector_store %arg22[%c0_40, %c0_41], %65 {strides = array<i32>} : memref<8x16xf32, #tpu.memory_space<vmem>>, vector<8x16xf32>,
    %c0_42 = arith.constant 0 : index
    %c0_43 = arith.constant 0 : index
    %70 = vector.load %arg12[%c0_42, %c0_43] : memref<16x32xf32, #tpu.memory_space<vmem>>, vector<16x32xf32>
    %cst_44 = arith.constant dense<0.000000e+00> : vector<8x32xf32>
    %71 = tpu.matmul %67, %70, %cst_44 {dimension_numbers = #tpu.dot_dimension_numbers<[1], [0], [0], [1], [0, 0, 1, 1], [], []>} : vector<8x16xf32>, vector<16x32xf32>, vector<8x32xf32> -> vector<8x32xf32>
    %c0_45 = arith.constant 0 : index
    %c0_46 = arith.constant 0 : index
    %72 = vector.load %arg13[%c0_45, %c0_46] : memref<1x32xf32, #tpu.memory_space<vmem>>, vector<1x32xf32>
    %73 = vector.broadcast %72 : vector<1x32xf32> to vector<8x32xf32>
    %74 = arith.addf %71, %73 : vector<8x32xf32>
    %75 = vector.shape_cast %74 : vector<8x32xf32> to vector<1x8x32xf32>
    %c0_47 = arith.constant 0 : index
    %c0_48 = arith.constant 0 : index
    %c0_49 = arith.constant 0 : index
    %76 = vector.load %arg20[%c0_47, %c0_48, %c0_49] : memref<1x8x32xf32, #tpu.memory_space<vmem>>, vector<1x8x32xf32>
    tpu.vector_store %arg20[%c0_47, %c0_48, %c0_49], %75 {strides = array<i32>} : memref<1x8x32xf32, #tpu.memory_space<vmem>>, vector<1x8x32xf32>,
    %cst_50 = arith.constant dense<0xFF800000> : vector<8xf32>
    %77 = vector.multi_reduction <maximumf>, %74, %cst_50 [1] : vector<8x32xf32> to vector<8xf32>
    %78 = vector.shape_cast %77 : vector<8xf32> to vector<8x1xf32>
    %79 = tpu.iota {dimensions = array<i32: 1>} : vector<8x32xi32>
    %80 = vector.broadcast %78 : vector<8x1xf32> to vector<8x32xf32>
    %81 = arith.cmpf oeq, %74, %80 : vector<8x32xf32>
    %c32_i32 = arith.constant 32 : i32
    %82 = vector.broadcast %c32_i32 : i32 to vector<8x32xi32>
    %83 = arith.select %81, %79, %82 : vector<8x32xi1>, vector<8x32xi32>
    %cst_51 = arith.constant dense<2147483647> : vector<8xi32>
    %84 = vector.multi_reduction <minsi>, %83, %cst_51 [1] : vector<8x32xi32> to vector<8xi32>
    %85 = vector.shape_cast %84 : vector<8xi32> to vector<8x1xi32>
    %86 = vector.broadcast %85 : vector<8x1xi32> to vector<8x32xi32>
    %87 = arith.cmpi eq, %79, %86 : vector<8x32xi32>
    %88 = arith.extui %87 : vector<8x32xi1> to vector<8x32xi32>
    %89 = arith.sitofp %88 : vector<8x32xi32> to vector<8x32xf32>
    %c1_i32 = arith.constant 1 : i32
    %90 = arith.addi %arg0, %c1_i32 : i32
    %91 = arith.index_cast %90 : i32 to index
    %92 = memref.load %arg1[%91] : memref<6xi32, #tpu.memory_space<smem>>
    %c1_i32_52 = arith.constant 1 : i32
    %93 = arith.cmpi eq, %92, %c1_i32_52 : i32
    %94 = arith.extui %93 : i1 to i32
    %95 = arith.sitofp %94 : i32 to f32
    %c1_i32_53 = arith.constant 1 : i32
    %96 = arith.addi %arg0, %c1_i32_53 : i32
    %97 = arith.index_cast %96 : i32 to index
    %c0_54 = arith.constant 0 : index
    %c0_55 = arith.constant 0 : index
    %98 = vector.load %arg2[%97, %c0_54, %c0_55] : memref<6x8x32xf32, #tpu.memory_space<vmem>>, vector<1x8x32xf32>
    %99 = vector.shape_cast %98 : vector<1x8x32xf32> to vector<8x32xf32>
    %100 = vector.broadcast %95 : f32 to vector<8x32xf32>
    %101 = arith.mulf %100, %99 : vector<8x32xf32>
    %cst_56 = arith.constant 1.000000e+00 : f32
    %102 = arith.subf %cst_56, %95 : f32
    %103 = vector.broadcast %102 : f32 to vector<8x32xf32>
    %104 = arith.mulf %103, %89 : vector<8x32xf32>
    %105 = arith.addf %101, %104 : vector<8x32xf32>
    %c0_57 = arith.constant 0 : index
    %c0_58 = arith.constant 0 : index
    %106 = vector.load %arg23[%c0_57, %c0_58] : memref<8x32xf32, #tpu.memory_space<vmem>>, vector<8x32xf32>
    tpu.vector_store %arg23[%c0_57, %c0_58], %105 {strides = array<i32>} : memref<8x32xf32, #tpu.memory_space<vmem>>, vector<8x32xf32>,
    return
  }
  func.func @transform_0(%arg0: i32, %arg1: memref<6xi32, #tpu.memory_space<smem>>) -> (i32, i32, i32) {
    %c0_i32 = arith.constant 0 : i32
    %c0_i32_0 = arith.constant 0 : i32
    %c0_i32_1 = arith.constant 0 : i32
    %c0_i32_2 = arith.constant 0 : i32
    return %c0_i32, %c0_i32_0, %c0_i32_1 : i32, i32, i32
  }
  func.func @transform_1(%arg0: i32, %arg1: memref<6xi32, #tpu.memory_space<smem>>) -> (i32, i32, i32) {
    %c0_i32 = arith.constant 0 : i32
    %c0_i32_0 = arith.constant 0 : i32
    %c0_i32_1 = arith.constant 0 : i32
    %c0_i32_2 = arith.constant 0 : i32
    return %c0_i32, %c0_i32_0, %c0_i32_1 : i32, i32, i32
  }
  func.func @transform_2(%arg0: i32, %arg1: memref<6xi32, #tpu.memory_space<smem>>) -> (i32, i32, i32) {
    %c0_i32 = arith.constant 0 : i32
    %c0_i32_0 = arith.constant 0 : i32
    %c0_i32_1 = arith.constant 0 : i32
    %c0_i32_2 = arith.constant 0 : i32
    return %c0_i32, %c0_i32_0, %c0_i32_1 : i32, i32, i32
  }
  func.func @transform_3(%arg0: i32, %arg1: memref<6xi32, #tpu.memory_space<smem>>) -> (i32, i32) {
    %c0_i32 = arith.constant 0 : i32
    %c0_i32_0 = arith.constant 0 : i32
    %c0_i32_1 = arith.constant 0 : i32
    return %c0_i32, %c0_i32_0 : i32, i32
  }
  func.func @transform_4(%arg0: i32, %arg1: memref<6xi32, #tpu.memory_space<smem>>) -> (i32, i32) {
    %c0_i32 = arith.constant 0 : i32
    %c0_i32_0 = arith.constant 0 : i32
    %c0_i32_1 = arith.constant 0 : i32
    return %c0_i32, %c0_i32_0 : i32, i32
  }
  func.func @transform_5(%arg0: i32, %arg1: memref<6xi32, #tpu.memory_space<smem>>) -> (i32, i32, i32) {
    %c0_i32 = arith.constant 0 : i32
    %c0_i32_0 = arith.constant 0 : i32
    %c0_i32_1 = arith.constant 0 : i32
    %c0_i32_2 = arith.constant 0 : i32
    return %c0_i32, %c0_i32_0, %c0_i32_1 : i32, i32, i32
  }
  func.func @transform_6(%arg0: i32, %arg1: memref<6xi32, #tpu.memory_space<smem>>) -> (i32, i32) {
    %c0_i32 = arith.constant 0 : i32
    %c0_i32_0 = arith.constant 0 : i32
    %c0_i32_1 = arith.constant 0 : i32
    return %c0_i32, %c0_i32_0 : i32, i32
  }
  func.func @transform_7(%arg0: i32, %arg1: memref<6xi32, #tpu.memory_space<smem>>) -> (i32, i32) {
    %c0_i32 = arith.constant 0 : i32
    %c0_i32_0 = arith.constant 0 : i32
    %c0_i32_1 = arith.constant 0 : i32
    return %c0_i32, %c0_i32_0 : i32, i32
  }
  func.func @transform_8(%arg0: i32, %arg1: memref<6xi32, #tpu.memory_space<smem>>) -> (i32, i32) {
    %c0_i32 = arith.constant 0 : i32
    %c0_i32_0 = arith.constant 0 : i32
    %c0_i32_1 = arith.constant 0 : i32
    return %c0_i32, %c0_i32_0 : i32, i32
  }
  func.func @transform_9(%arg0: i32, %arg1: memref<6xi32, #tpu.memory_space<smem>>) -> (i32, i32) {
    %c0_i32 = arith.constant 0 : i32
    %c0_i32_0 = arith.constant 0 : i32
    %c0_i32_1 = arith.constant 0 : i32
    return %c0_i32, %c0_i32_0 : i32, i32
  }
  func.func @transform_10(%arg0: i32, %arg1: memref<6xi32, #tpu.memory_space<smem>>) -> (i32, i32) {
    %c0_i32 = arith.constant 0 : i32
    %c0_i32_0 = arith.constant 0 : i32
    %c0_i32_1 = arith.constant 0 : i32
    return %c0_i32, %c0_i32_0 : i32, i32
  }
  func.func @transform_11(%arg0: i32, %arg1: memref<6xi32, #tpu.memory_space<smem>>) -> (i32, i32) {
    %c0_i32 = arith.constant 0 : i32
    %c0_i32_0 = arith.constant 0 : i32
    %c0_i32_1 = arith.constant 0 : i32
    return %c0_i32, %c0_i32_0 : i32, i32
  }
  func.func @transform_12(%arg0: i32, %arg1: memref<6xi32, #tpu.memory_space<smem>>) -> (i32, i32) {
    %c0_i32 = arith.constant 0 : i32
    %c0_i32_0 = arith.constant 0 : i32
    %c0_i32_1 = arith.constant 0 : i32
    return %c0_i32, %c0_i32_0 : i32, i32
  }
  func.func @transform_13(%arg0: i32, %arg1: memref<6xi32, #tpu.memory_space<smem>>) -> (i32, i32) {
    %c0_i32 = arith.constant 0 : i32
    %c0_i32_0 = arith.constant 0 : i32
    %c0_i32_1 = arith.constant 0 : i32
    return %c0_i32, %c0_i32_0 : i32, i32
  }
  func.func @transform_14(%arg0: i32, %arg1: memref<6xi32, #tpu.memory_space<smem>>) -> (i32, i32) {
    %c0_i32 = arith.constant 0 : i32
    %c0_i32_0 = arith.constant 0 : i32
    %c0_i32_1 = arith.constant 0 : i32
    return %c0_i32, %c0_i32_0 : i32, i32
  }
  func.func @transform_15(%arg0: i32, %arg1: memref<6xi32, #tpu.memory_space<smem>>) -> (i32, i32) {
    %c0_i32 = arith.constant 0 : i32
    %c0_i32_0 = arith.constant 0 : i32
    %c0_i32_1 = arith.constant 0 : i32
    return %c0_i32, %c0_i32_0 : i32, i32
  }
  func.func @transform_16(%arg0: i32, %arg1: memref<6xi32, #tpu.memory_space<smem>>) -> (i32, i32) {
    %c0_i32 = arith.constant 0 : i32
    %c0_i32_0 = arith.constant 0 : i32
    %c0_i32_1 = arith.constant 0 : i32
    return %c0_i32, %c0_i32_0 : i32, i32
  }
  func.func @transform_17(%arg0: i32, %arg1: memref<6xi32, #tpu.memory_space<smem>>) -> (i32, i32) {
    %c0_i32 = arith.constant 0 : i32
    %c0_i32_0 = arith.constant 0 : i32
    %c0_i32_1 = arith.constant 0 : i32
    return %c0_i32, %c0_i32_0 : i32, i32
  }
  func.func @transform_18(%arg0: i32, %arg1: memref<6xi32, #tpu.memory_space<smem>>) -> (i32, i32, i32) {
    %c0_i32 = arith.constant 0 : i32
    %c0_i32_0 = arith.constant 0 : i32
    %c0_i32_1 = arith.constant 0 : i32
    return %arg0, %c0_i32, %c0_i32_0 : i32, i32, i32
  }
}

</mosaic_0001>

<llo_original>
// kernel: seq2seq_forward.3
$region0: #{seq2seq_forward.3}
  #allocation0 [shape = 'u32[]', space=smem, size = 0x4, offset = 0x4, fixed_abs, tag = 'smem constant byte address 0x4 - core index']
  #allocation1 [shape = 'u32[144,128]{1,0:T(1,128)}', space=vmem, size = 0x12000, scoped, tag = 'internal scratch']
  %s0 = inlined_call_operand.vmem [shape: f32[64,16], index: 0, kind: input, shape index: {}]
  %s1 = inlined_call_operand.vmem [shape: f32[16,128], index: 1, kind: input, shape index: {}]
  %s2 = inlined_call_operand.vmem [shape: f32[1,128], index: 2, kind: input, shape index: {}]
  %s3 = inlined_call_operand.vmem [shape: f32[64,128], index: 3, kind: output, shape index: {}]
  %s4 = sld [smem:[#allocation0]]
  $region22: #{seq2seq_forward.3} parent=0
    _
  %s6 = ssub.s32 1, %s4
  %s7 = scalar_select 0, %s6, %s4
  // Predicated region
  $region2: #{seq2seq_forward.3} parent=0 // pred_check
    _
  $region3: #{seq2seq_forward.3} parent=0 // pred_check_branch
    %9 = sbr.rel (0) target = $region5
  $region4: #{seq2seq_forward.3} parent=0 // pred_region
    _
  $region5: #{seq2seq_forward.3} parent=0 // pred_fallthru
    _
  // Predicated region
  $region6: #{seq2seq_forward.3} parent=0 // pred_check
    _
  $region7: #{seq2seq_forward.3} parent=0 // pred_check_branch
    %11 = sbr.rel (0) target = $region9
  $region8: #{seq2seq_forward.3} parent=0 // pred_region
    _
  $region9: #{seq2seq_forward.3} parent=0 // pred_fallthru
    _
  // Predicated region
  $region10: #{seq2seq_forward.3} parent=0 // pred_check
    _
  $region11: #{seq2seq_forward.3} parent=0 // pred_check_branch
    %13 = sbr.rel (0) target = $region13
  $region12: #{seq2seq_forward.3} parent=0 // pred_region
    _
  $region13: #{seq2seq_forward.3} parent=0 // pred_fallthru
    _
  %v14 = vld [vmem:[%s0] sm:$0xff]
  %v15 = vld [vmem:[%s0 + $0x8] sm:$0xff]
  %v16 = vld [vmem:[%s0 + $0x10] sm:$0xff]
  %v17 = vld [vmem:[%s0 + $0x18] sm:$0xff]
  %v18 = vld [vmem:[%s0 + $0x20] sm:$0xff]
  %v19 = vld [vmem:[%s0 + $0x28] sm:$0xff]
  %v20 = vld [vmem:[%s0 + $0x30] sm:$0xff]
  %v21 = vld [vmem:[%s0 + $0x38] sm:$0xff]
  %v22 = vld [vmem:[%s1] sm:$0xff]
  %v23 = vld [vmem:[%s1 + $0x8] sm:$0xff]
  %v24 = vld [vmem:[%s2] sm:$0x1]
  %v26 = vlaneseq
  %v27 = vshrl.u32 %v26, 7
  %v28 = vsub.s32 0, %v27
  %v29 = vrot.slane %v24, %v28
  %vm31 = vcmask 130048
  %v33 = vsel %vm31, %v14, 0
  %v36 = vsel %vm31, %v15, 0
  %v39 = vsel %vm31, %v16, 0
  %v42 = vsel %vm31, %v17, 0
  %v45 = vsel %vm31, %v18, 0
  %v48 = vsel %vm31, %v19, 0
  %v51 = vsel %vm31, %v20, 0
  %v54 = vsel %vm31, %v21, 0
  %56 = vmatprep.subr.mxu0 0.0
  %57 = vmatpush1.msra.mxu0 %v22
  %58 = vmatprep.subr.mxu0 0.0
  %59 = vmatpush1.msra.mxu0 %v23
  %60 = vmatprep.subr.mxu0 0.0
  %61 = vmatpush1.msra.mxu0 0.0
  %62 = vmatprep.subr.mxu0 0.0
  %63 = vmatpush1.msra.mxu0 0.0
  %64 = vmatprep.subr.mxu0 0.0
  %65 = vmatpush1.msra.mxu0 0.0
  %66 = vmatprep.subr.mxu0 0.0
  %67 = vmatpush1.msra.mxu0 0.0
  %68 = vmatprep.subr.mxu0 0.0
  %69 = vmatpush1.msra.mxu0 0.0
  %70 = vmatprep.subr.mxu0 0.0
  %71 = vmatpush1.msra.mxu0 0.0
  %72 = vmatprep.subr.mxu0 0.0
  %73 = vmatpush1.msra.mxu0 0.0
  %74 = vmatprep.subr.mxu0 0.0
  %75 = vmatpush1.msra.mxu0 0.0
  %76 = vmatprep.subr.mxu0 0.0
  %77 = vmatpush1.msra.mxu0 0.0
  %78 = vmatprep.subr.mxu0 0.0
  %79 = vmatpush1.msra.mxu0 0.0
  %80 = vmatprep.subr.mxu0 0.0
  %81 = vmatpush1.msra.mxu0 0.0
  %82 = vmatprep.subr.mxu0 0.0
  %83 = vmatpush1.msra.mxu0 0.0
  %84 = vmatprep.subr.mxu0 0.0
  %85 = vmatpush1.msra.mxu0 0.0
  %86 = vmatprep.subr.mxu0 0.0
  %87 = vmatpush1.msra.mxu0 0.0
  %88 = vmatprep.subr.mxu0 0.0
  %89 = vmatpush1.msra.mxu0 0.0
  %90 = vmatprep.subr.mxu0 0.0
  %91 = vmatpush1.msra.mxu0 0.0
  %92 = vmatprep.subr.mxu0 0.0
  %93 = vmatpush1.msra.mxu0 0.0
  %94 = vmatprep.subr.mxu0 0.0
  %95 = vmatpush1.msra.mxu0 0.0
  %96 = vmatprep.subr.mxu0 0.0
  %97 = vmatpush1.msra.mxu0 0.0
  %98 = vmatprep.subr.mxu0 0.0
  %99 = vmatpush1.msra.mxu0 0.0
  %100 = vmatprep.subr.mxu0 0.0
  %101 = vmatpush1.msra.mxu0 0.0
  %102 = vmatprep.subr.mxu0 0.0
  %103 = vmatpush1.msra.mxu0 0.0
  %104 = vmatprep.subr.mxu0 0.0
  %105 = vmatpush1.msra.mxu0 0.0
  %106 = vmatprep.subr.mxu0 0.0
  %107 = vmatpush1.msra.mxu0 0.0
  %108 = vmatprep.subr.mxu0 0.0
  %109 = vmatpush1.msra.mxu0 0.0
  %110 = vmatprep.subr.mxu0 0.0
  %111 = vmatpush1.msra.mxu0 0.0
  %112 = vmatprep.subr.mxu0 0.0
  %113 = vmatpush1.msra.mxu0 0.0
  %114 = vmatprep.subr.mxu0 0.0
  %115 = vmatpush1.msra.mxu0 0.0
  %116 = vmatprep.subr.mxu0 0.0
  %117 = vmatpush1.msra.mxu0 0.0
  %118 = vmatprep.subr.mxu0 0.0
  %119 = vmatpush1.msra.mxu0 0.0
  %120 = vmatprep.mubr.f32.mxu0 0.0
  %121 = vmatmul.mubr.f32.gmra.mrb[0].mxu0 %v33
  %v122 = vpop.f32.mrb[0].mxu0
  %v123 = vadd.f32 %v29, %v122
  %v124 = vpop.f32.mrb[0].mxu0
  %125 = vmatprep.mubr.f32.mxu0 0.0
  %126 = vmatmul.mubr.f32.gmra.mrb[0].mxu0 %v36
  %v127 = vpop.f32.mrb[0].mxu0
  %v128 = vadd.f32 %v29, %v127
  %v129 = vpop.f32.mrb[0].mxu0
  %130 = vmatprep.mubr.f32.mxu0 0.0
  %131 = vmatmul.mubr.f32.gmra.mrb[0].mxu0 %v39
  %v132 = vpop.f32.mrb[0].mxu0
  %v133 = vadd.f32 %v29, %v132
  %v134 = vpop.f32.mrb[0].mxu0
  %135 = vmatprep.mubr.f32.mxu0 0.0
  %136 = vmatmul.mubr.f32.gmra.mrb[0].mxu0 %v42
  %v137 = vpop.f32.mrb[0].mxu0
  %v138 = vadd.f32 %v29, %v137
  %v139 = vpop.f32.mrb[0].mxu0
  %140 = vmatprep.mubr.f32.mxu0 0.0
  %141 = vmatmul.mubr.f32.gmra.mrb[0].mxu0 %v45
  %v142 = vpop.f32.mrb[0].mxu0
  %v143 = vadd.f32 %v29, %v142
  %v144 = vpop.f32.mrb[0].mxu0
  %145 = vmatprep.mubr.f32.mxu0 0.0
  %146 = vmatmul.mubr.f32.gmra.mrb[0].mxu0 %v48
  %v147 = vpop.f32.mrb[0].mxu0
  %v148 = vadd.f32 %v29, %v147
  %v149 = vpop.f32.mrb[0].mxu0
  %150 = vmatprep.mubr.f32.mxu0 0.0
  %151 = vmatmul.mubr.f32.gmra.mrb[0].mxu0 %v51
  %v152 = vpop.f32.mrb[0].mxu0
  %v153 = vadd.f32 %v29, %v152
  %v154 = vpop.f32.mrb[0].mxu0
  %155 = vmatprep.mubr.f32.mxu0 0.0
  %156 = vmatmul.mubr.f32.gmra.mrb[0].mxu0 %v54
  %v157 = vpop.f32.mrb[0].mxu0
  %v158 = vadd.f32 %v29, %v157
  %v159 = vpop.f32.mrb[0].mxu0
  %160 = vdwg.mxu0
  %161 = vst [vmem:[%s3] sm:$0xff] %v123
  %162 = vst [vmem:[%s3 + $0x8] sm:$0xff] %v128
  %163 = vst [vmem:[%s3 + $0x10] sm:$0xff] %v133
  %164 = vst [vmem:[%s3 + $0x18] sm:$0xff] %v138
  %165 = vst [vmem:[%s3 + $0x20] sm:$0xff] %v143
  %166 = vst [vmem:[%s3 + $0x28] sm:$0xff] %v148
  %167 = vst [vmem:[%s3 + $0x30] sm:$0xff] %v153
  %168 = vst [vmem:[%s3 + $0x38] sm:$0xff] %v158
  // Predicated region
  $region14: #{seq2seq_forward.3} parent=0 // pred_check
    _
  $region15: #{seq2seq_forward.3} parent=0 // pred_check_branch
    %170 = sbr.rel (0) target = $region17
  $region16: #{seq2seq_forward.3} parent=0 // pred_region
    _
  $region17: #{seq2seq_forward.3} parent=0 // pred_fallthru
    _
  // Predicated region
  $region18: #{seq2seq_forward.3} parent=0 // pred_check
    _
  $region19: #{seq2seq_forward.3} parent=0 // pred_check_branch
    %172 = sbr.rel (0) target = $region21
  $region20: #{seq2seq_forward.3} parent=0 // pred_region
    _
  $region21: #{seq2seq_forward.3} parent=0 // pred_fallthru
    _

// kernel: seq2seq_forward.4
$region0: #{seq2seq_forward.4}
  #allocation0 [shape = 'u32[]', space=smem, size = 0x4, offset = 0x4, fixed_abs, tag = 'smem constant byte address 0x4 - core index']
  #allocation1 [shape = 'u32[144,128]{1,0:T(1,128)}', space=vmem, size = 0x12000, scoped, tag = 'internal scratch']
  %s0 = inlined_call_operand.vmem [shape: f32[8,8,64], index: 0, kind: input, shape index: {}]
  %s1 = inlined_call_operand.vmem [shape: f32[8,8,64], index: 1, kind: input, shape index: {}]
  %s2 = inlined_call_operand.vmem [shape: f32[16,64], index: 2, kind: input, shape index: {}]
  %s3 = inlined_call_operand.vmem [shape: f32[16,64], index: 3, kind: input, shape index: {}]
  %s4 = inlined_call_operand.vmem [shape: f32[8,8,16], index: 4, kind: output, shape index: {0}]
  %s5 = inlined_call_operand.vmem [shape: f32[8,8,16], index: 5, kind: output, shape index: {1}]
  %s6 = inlined_call_operand.vmem [shape: f32[2,8,16], index: 6, kind: output, shape index: {2}]
  %s7 = inlined_call_operand.vmem [shape: f32[2,8,16], index: 7, kind: output, shape index: {3}]
  %8 = xla_tuple %s4, %s5, %s6, %s7
  %s9 = sld [smem:[#allocation0]]
  $region77: #{seq2seq_forward.4} parent=0
    _
  %s11 = ssub.s32 1, %s9
  %s12 = scalar_select 0, %s11, %s9
  loop: start=0, step=1, limit=10
  $region2: #{seq2seq_forward.4} parent=0 // loop_pre_header
    _
  $region3: #{seq2seq_forward.4} parent=0 // loop_header
    %s14 = sphi 0, %s18
    %p15 = scmp.ge.s32.totalorder %s14, 10
    %s24 = sphi 0, %s26
    %s27 = sphi 0, %s24
    %s28 = sphi 0, %s27
    %s44 = sphi 0, %s28
    %s52 = sphi 0, %s54
    %s55 = sphi 0, %s52
    %s56 = sphi 0, %s55
    %s72 = sphi 0, %s56
    %s76 = sphi 0, %s76
    %s78 = sphi 0, %s76
    %s79 = sphi 0, %s78
    %s93 = sphi 0, %s79
    %s97 = sphi 0, %s97
    %s99 = sphi 0, %s97
    %s100 = sphi 0, %s99
    %s114 = sphi 0, %s100
    %s120 = sphi 0, %s122
    %s123 = sphi 0, %s120
    %s124 = sphi 0, %s123
    %s140 = sphi 0, %s124
    %s148 = sphi 0, %s150
    %s151 = sphi 0, %s148
    %s152 = sphi 0, %s151
    %s168 = sphi 0, %s152
    %s172 = sphi 0, %s172
    %s174 = sphi 0, %s172
    %s175 = sphi 0, %s174
    %s189 = sphi 0, %s175
    %s193 = sphi 0, %s193
    %s195 = sphi 0, %s193
    %s196 = sphi 0, %s195
    %s210 = sphi 0, %s196
  $region4: #{seq2seq_forward.4} parent=0 // loop_header_branch
    %17 = sbr.rel (%p15) target = $region8
  $region5: #{seq2seq_forward.4} parent=0 // loop_body
    %s19 = ssub.s32 %s14, 1
    %s20 = ssub.s32 %s14, 2
    %s21 = sadd.s32 %s14, 1
    %s22 = ssub.s32 %s14, %s21
    %p23 = scmp.eq.s32.totalorder %s22, 0
    %s25 = sadd.s32 %s24, 1
    %s26 = scalar_select %p23, %s24, %s25
    %p29 = pneg %p23
    %p30 = scmp.eq.s32.totalorder %s14, 7
    %p31 = por %p29, %p30
    %p32 = scmp.ne.s32.totalorder %s24, %s27
    %p33 = scmp.eq.s32.totalorder %s14, 0
    %p34 = por %p32, %p33
    %p35 = scmp.ne.s32.totalorder %s24, %s27
    %p36 = scmp.eq.s32.totalorder %s19, 7
    %p37 = por %p35, %p36
    %p38 = scmp.ne.s32.totalorder %s27, %s28
    %p39 = scmp.eq.s32.totalorder %s19, 0
    %p40 = por %p38, %p39
    %p41 = scmp.ne.s32.totalorder %s27, %s28
    %p42 = scmp.eq.s32.totalorder %s20, 7
    %p43 = por %p41, %p42
    %p45 = scmp.ne.s32.totalorder %s28, %s44
    %p46 = scmp.eq.s32.totalorder %s20, 0
    %p47 = por %p45, %p46
    %s48 = ssub.s32 7, %s14
    %s49 = ssub.s32 7, %s21
    %s50 = ssub.s32 %s48, %s49
    %p51 = scmp.eq.s32.totalorder %s50, 0
    %s53 = sadd.s32 %s52, 1
    %s54 = scalar_select %p51, %s52, %s53
    %p57 = pneg %p51
    %p58 = scmp.eq.s32.totalorder %s14, 7
    %p59 = por %p57, %p58
    %p60 = scmp.ne.s32.totalorder %s52, %s55
    %p61 = scmp.eq.s32.totalorder %s14, 0
    %p62 = por %p60, %p61
    %p63 = scmp.ne.s32.totalorder %s52, %s55
    %p64 = scmp.eq.s32.totalorder %s19, 7
    %p65 = por %p63, %p64
    %p66 = scmp.ne.s32.totalorder %s55, %s56
    %p67 = scmp.eq.s32.totalorder %s19, 0
    %p68 = por %p66, %p67
    %p69 = scmp.ne.s32.totalorder %s55, %s56
    %p70 = scmp.eq.s32.totalorder %s20, 7
    %p71 = por %p69, %p70
    %p73 = scmp.ne.s32.totalorder %s56, %s72
    %p74 = scmp.eq.s32.totalorder %s20, 0
    %p75 = por %p73, %p74
    %s77 = sadd.s32 %s76, 1
    %p80 = scmp.eq.s32.totalorder %s14, 7
    %p81 = scmp.ne.s32.totalorder %s76, %s78
    %p82 = scmp.eq.s32.totalorder %s14, 0
    %p83 = por %p81, %p82
    %p84 = scmp.ne.s32.totalorder %s76, %s78
    %p85 = scmp.eq.s32.totalorder %s19, 7
    %p86 = por %p84, %p85
    %p87 = scmp.ne.s32.totalorder %s78, %s79
    %p88 = scmp.eq.s32.totalorder %s19, 0
    %p89 = por %p87, %p88
    %p90 = scmp.ne.s32.totalorder %s78, %s79
    %p91 = scmp.eq.s32.totalorder %s20, 7
    %p92 = por %p90, %p91
    %p94 = scmp.ne.s32.totalorder %s79, %s93
    %p95 = scmp.eq.s32.totalorder %s20, 0
    %p96 = por %p94, %p95
    %s98 = sadd.s32 %s97, 1
    %p101 = scmp.eq.s32.totalorder %s14, 7
    %p102 = scmp.ne.s32.totalorder %s97, %s99
    %p103 = scmp.eq.s32.totalorder %s14, 0
    %p104 = por %p102, %p103
    %p105 = scmp.ne.s32.totalorder %s97, %s99
    %p106 = scmp.eq.s32.totalorder %s19, 7
    %p107 = por %p105, %p106
    %p108 = scmp.ne.s32.totalorder %s99, %s100
    %p109 = scmp.eq.s32.totalorder %s19, 0
    %p110 = por %p108, %p109
    %p111 = scmp.ne.s32.totalorder %s99, %s100
    %p112 = scmp.eq.s32.totalorder %s20, 7
    %p113 = por %p111, %p112
    %p115 = scmp.ne.s32.totalorder %s100, %s114
    %p116 = scmp.eq.s32.totalorder %s20, 0
    %p117 = por %p115, %p116
    %s118 = ssub.s32 %s14, %s21
    %p119 = scmp.eq.s32.totalorder %s118, 0
    %s121 = sadd.s32 %s120, 1
    %s122 = scalar_select %p119, %s120, %s121
    %p125 = pneg %p119
    %p126 = scmp.eq.s32.totalorder %s14, 7
    %p127 = por %p125, %p126
    %p128 = scmp.ne.s32.totalorder %s120, %s123
    %p129 = scmp.eq.s32.totalorder %s14, 0
    %p130 = por %p128, %p129
    %p131 = scmp.ne.s32.totalorder %s120, %s123
    %p132 = scmp.eq.s32.totalorder %s19, 7
    %p133 = por %p131, %p132
    %p134 = scmp.ne.s32.totalorder %s123, %s124
    %p135 = scmp.eq.s32.totalorder %s19, 0
    %p136 = por %p134, %p135
    %p137 = scmp.ne.s32.totalorder %s123, %s124
    %p138 = scmp.eq.s32.totalorder %s20, 7
    %p139 = por %p137, %p138
    %p141 = scmp.ne.s32.totalorder %s124, %s140
    %p142 = scmp.eq.s32.totalorder %s20, 0
    %p143 = por %p141, %p142
    %s144 = ssub.s32 7, %s14
    %s145 = ssub.s32 7, %s21
    %s146 = ssub.s32 %s144, %s145
    %p147 = scmp.eq.s32.totalorder %s146, 0
    %s149 = sadd.s32 %s148, 1
    %s150 = scalar_select %p147, %s148, %s149
    %p153 = pneg %p147
    %p154 = scmp.eq.s32.totalorder %s14, 7
    %p155 = por %p153, %p154
    %p156 = scmp.ne.s32.totalorder %s148, %s151
    %p157 = scmp.eq.s32.totalorder %s14, 0
    %p158 = por %p156, %p157
    %p159 = scmp.ne.s32.totalorder %s148, %s151
    %p160 = scmp.eq.s32.totalorder %s19, 7
    %p161 = por %p159, %p160
    %p162 = scmp.ne.s32.totalorder %s151, %s152
    %p163 = scmp.eq.s32.totalorder %s19, 0
    %p164 = por %p162, %p163
    %p165 = scmp.ne.s32.totalorder %s151, %s152
    %p166 = scmp.eq.s32.totalorder %s20, 7
    %p167 = por %p165, %p166
    %p169 = scmp.ne.s32.totalorder %s152, %s168
    %p170 = scmp.eq.s32.totalorder %s20, 0
    %p171 = por %p169, %p170
    %s173 = sadd.s32 %s172, 1
    %p176 = scmp.eq.s32.totalorder %s14, 7
    %p177 = scmp.ne.s32.totalorder %s172, %s174
    %p178 = scmp.eq.s32.totalorder %s14, 0
    %p179 = por %p177, %p178
    %p180 = scmp.ne.s32.totalorder %s172, %s174
    %p181 = scmp.eq.s32.totalorder %s19, 7
    %p182 = por %p180, %p181
    %p183 = scmp.ne.s32.totalorder %s174, %s175
    %p184 = scmp.eq.s32.totalorder %s19, 0
    %p185 = por %p183, %p184
    %p186 = scmp.ne.s32.totalorder %s174, %s175
    %p187 = scmp.eq.s32.totalorder %s20, 7
    %p188 = por %p186, %p187
    %p190 = scmp.ne.s32.totalorder %s175, %s189
    %p191 = scmp.eq.s32.totalorder %s20, 0
    %p192 = por %p190, %p191
    %s194 = sadd.s32 %s193, 1
    %p197 = scmp.eq.s32.totalorder %s14, 7
    %p198 = scmp.ne.s32.totalorder %s193, %s195
    %p199 = scmp.eq.s32.totalorder %s14, 0
    %p200 = por %p198, %p199
    %p201 = scmp.ne.s32.totalorder %s193, %s195
    %p202 = scmp.eq.s32.totalorder %s19, 7
    %p203 = por %p201, %p202
    %p204 = scmp.ne.s32.totalorder %s195, %s196
    %p205 = scmp.eq.s32.totalorder %s19, 0
    %p206 = por %p204, %p205
    %p207 = scmp.ne.s32.totalorder %s195, %s196
    %p208 = scmp.eq.s32.totalorder %s20, 7
    %p209 = por %p207, %p208
    %p211 = scmp.ne.s32.totalorder %s196, %s210
    %p212 = scmp.eq.s32.totalorder %s20, 0
    %p213 = por %p211, %p212
    %p214 = scmp.le.s32.totalorder 1, %s14
    %p215 = scmp.lt.s32.totalorder %s14, 9
    %p216 = pnand %p214, %p215
    %p217 = pneg %p216
    // Predicated region
    $region9: #{seq2seq_forward.4} parent=5 // pred_check
      _
    $region10: #{seq2seq_forward.4} parent=5 // pred_check_branch
      %219 = sbr.rel (%p216) target = $region12
    $region11: #{seq2seq_forward.4} parent=5 // pred_region
      %s220 = ssub.s32 %s14, 1
      // Predicated region
      $region13: #{seq2seq_forward.4} parent=11 // pred_check
        %p221 = pneg %p89
      $region14: #{seq2seq_forward.4} parent=11 // pred_check_branch
        %223 = sbr.rel (%p221) target = $region16
      $region15: #{seq2seq_forward.4} parent=11 // pred_region
        _
      $region16: #{seq2seq_forward.4} parent=11 // pred_fallthru
        _
      // Predicated region
      $region17: #{seq2seq_forward.4} parent=11 // pred_check
        %p224 = pneg %p110
      $region18: #{seq2seq_forward.4} parent=11 // pred_check_branch
        %226 = sbr.rel (%p224) target = $region20
      $region19: #{seq2seq_forward.4} parent=11 // pred_region
        _
      $region20: #{seq2seq_forward.4} parent=11 // pred_fallthru
        _
    $region12: #{seq2seq_forward.4} parent=5 // pred_fallthru
      _
    %p227 = scmp.lt.s32.totalorder %s14, 8
    // Predicated region
    $region21: #{seq2seq_forward.4} parent=5 // pred_check
      %p228 = pneg %p227
    $region22: #{seq2seq_forward.4} parent=5 // pred_check_branch
      %230 = sbr.rel (%p228) target = $region24
    $region23: #{seq2seq_forward.4} parent=5 // pred_region
      // Predicated region
      $region25: #{seq2seq_forward.4} parent=23 // pred_check
        %p231 = pneg %p34
      $region26: #{seq2seq_forward.4} parent=23 // pred_check_branch
        %233 = sbr.rel (%p231) target = $region28
      $region27: #{seq2seq_forward.4} parent=23 // pred_region
        %p234 = scmp.lt.s32.totalorder %s14, 7
        %s235 = scalar_select %p234, %s14, 7
        %s236 = smul.addr %s235, 8
        %s237 = scalar_lea.vmem %s0, %s236
      $region28: #{seq2seq_forward.4} parent=23 // pred_fallthru
        _
      // Predicated region
      $region29: #{seq2seq_forward.4} parent=23 // pred_check
        %p238 = pneg %p62
      $region30: #{seq2seq_forward.4} parent=23 // pred_check_branch
        %240 = sbr.rel (%p238) target = $region32
      $region31: #{seq2seq_forward.4} parent=23 // pred_region
        %s241 = ssub.s32 7, %s14
        %p242 = scmp.lt.s32.totalorder %s241, 7
        %s243 = scalar_select %p242, %s241, 7
        %s244 = smul.addr %s243, 8
        %s245 = scalar_lea.vmem %s1, %s244
        %s246 = ssub.s32 7, %s14
      $region32: #{seq2seq_forward.4} parent=23 // pred_fallthru
        _
    $region24: #{seq2seq_forward.4} parent=5 // pred_fallthru
      _
    %p247 = scmp.le.s32.totalorder 1, %s14
    %p248 = scmp.lt.s32.totalorder %s14, 9
    %p249 = pnand %p247, %p248
    %p250 = pneg %p249
    // Predicated region
    $region33: #{seq2seq_forward.4} parent=5 // pred_check
      _
    $region34: #{seq2seq_forward.4} parent=5 // pred_check_branch
      %252 = sbr.rel (%p249) target = $region36
    $region35: #{seq2seq_forward.4} parent=5 // pred_region
      %s253 = ssub.s32 %s14, 1
      %p254 = scmp.lt.s32.totalorder %s19, 7
      %s255 = scalar_select %p254, %s19, 7
      %s256 = smul.addr %s255, 8
      %s257 = scalar_lea.vmem %s0, %s256
      %p258 = pneg %p40
      %p259 = pneg %p37
      %s260 = ssub.s32 7, %s19
      %p261 = scmp.lt.s32.totalorder %s260, 7
      %s262 = scalar_select %p261, %s260, 7
      %s263 = smul.addr %s262, 8
      %s264 = scalar_lea.vmem %s1, %s263
      %p265 = pneg %p68
      %p266 = pneg %p65
      %p267 = pneg %p89
      %p268 = pneg %p86
      %p269 = pneg %p110
      %p270 = pneg %p107
      %p271 = pneg %p136
      %p272 = pneg %p133
      %p273 = scmp.lt.s32.totalorder %s19, 7
      %s274 = scalar_select %p273, %s19, 7
      %s275 = smul.addr %s274, 8
      %s276 = scalar_lea.vmem %s4, %s275
      %p277 = pneg %p164
      %p278 = pneg %p161
      %s279 = ssub.s32 7, %s19
      %p280 = scmp.lt.s32.totalorder %s279, 7
      %s281 = scalar_select %p280, %s279, 7
      %s282 = smul.addr %s281, 8
      %s283 = scalar_lea.vmem %s5, %s282
      %p284 = pneg %p185
      %p285 = pneg %p182
      %p286 = pneg %p206
      %p287 = pneg %p203
      %p288 = scmp.lt.s32.totalorder %s19, 7
      %s289 = scalar_select %p288, %s19, 7
      %s290 = smul.addr %s289, 8
      %s291 = scalar_lea.vmem %s0, %s290
      %s292 = ssub.s32 7, %s19
      %p293 = scmp.lt.s32.totalorder %s292, 7
      %s294 = scalar_select %p293, %s292, 7
      %s295 = smul.addr %s294, 8
      %s296 = scalar_lea.vmem %s1, %s295
      %s297 = ssub.s32 7, %s19
      %p298 = scmp.lt.s32.totalorder %s19, 7
      %s299 = scalar_select %p298, %s19, 7
      %s300 = smul.addr %s299, 8
      %s301 = scalar_lea.vmem %s4, %s300
      %s302 = ssub.s32 7, %s19
      %p303 = scmp.lt.s32.totalorder %s302, 7
      %s304 = scalar_select %p303, %s302, 7
      %s305 = smul.addr %s304, 8
      %s306 = scalar_lea.vmem %s5, %s305
      %s307 = ssub.s32 7, %s19
      %p308 = scmp.eq.s32.totalorder %s19, 0
      // Predicated region
      $region37: #{seq2seq_forward.4} parent=35 // pred_check
        %p309 = pneg %p308
      $region38: #{seq2seq_forward.4} parent=35 // pred_check_branch
        %311 = sbr.rel (%p309) target = $region40
      $region39: #{seq2seq_forward.4} parent=35 // pred_region
        %vm312 = vcmask 130048
        %313 = vst.msk [vmem:[%s6] sm:$0xff] %vm312, 0.0
        %314 = vst.msk [vmem:[%s6 + $0x8] sm:$0xff] %vm312, 0.0
        %315 = vst.msk [vmem:[%s7] sm:$0xff] %vm312, 0.0
        %316 = vst.msk [vmem:[%s7 + $0x8] sm:$0xff] %vm312, 0.0
      $region40: #{seq2seq_forward.4} parent=35 // pred_fallthru
        _
      %v317 = vld [vmem:[%s291] sm:$0xff]
      %v318 = vld [vmem:[%s6] sm:$0xff]
      %v319 = vld [vmem:[%s2] sm:$0xff]
      %v320 = vld [vmem:[%s2 + $0x8] sm:$0xff]
      %vm321 = vcmask 130048
      %v323 = vsel %vm321, %v318, 0
      %325 = vmatprep.subr.mxu0 0.0
      %326 = vmatpush1.msra.mxu0 %v319
      %327 = vmatprep.subr.mxu0 0.0
      %328 = vmatpush1.msra.mxu0 %v320
      %329 = vmatprep.subr.mxu0 0.0
      %330 = vmatpush1.msra.mxu0 0.0
      %331 = vmatprep.subr.mxu0 0.0
      %332 = vmatpush1.msra.mxu0 0.0
      %333 = vmatprep.subr.mxu0 0.0
      %334 = vmatpush1.msra.mxu0 0.0
      %335 = vmatprep.subr.mxu0 0.0
      %336 = vmatpush1.msra.mxu0 0.0
      %337 = vmatprep.subr.mxu0 0.0
      %338 = vmatpush1.msra.mxu0 0.0
      %339 = vmatprep.subr.mxu0 0.0
      %340 = vmatpush1.msra.mxu0 0.0
      %341 = vmatprep.subr.mxu0 0.0
      %342 = vmatpush1.msra.mxu0 0.0
      %343 = vmatprep.subr.mxu0 0.0
      %344 = vmatpush1.msra.mxu0 0.0
      %345 = vmatprep.subr.mxu0 0.0
      %346 = vmatpush1.msra.mxu0 0.0
      %347 = vmatprep.subr.mxu0 0.0
      %348 = vmatpush1.msra.mxu0 0.0
      %349 = vmatprep.subr.mxu0 0.0
      %350 = vmatpush1.msra.mxu0 0.0
      %351 = vmatprep.subr.mxu0 0.0
      %352 = vmatpush1.msra.mxu0 0.0
      %353 = vmatprep.subr.mxu0 0.0
      %354 = vmatpush1.msra.mxu0 0.0
      %355 = vmatprep.subr.mxu0 0.0
      %356 = vmatpush1.msra.mxu0 0.0
      %357 = vmatprep.subr.mxu0 0.0
      %358 = vmatpush1.msra.mxu0 0.0
      %359 = vmatprep.subr.mxu0 0.0
      %360 = vmatpush1.msra.mxu0 0.0
      %361 = vmatprep.subr.mxu0 0.0
      %362 = vmatpush1.msra.mxu0 0.0
      %363 = vmatprep.subr.mxu0 0.0
      %364 = vmatpush1.msra.mxu0 0.0
      %365 = vmatprep.subr.mxu0 0.0
      %366 = vmatpush1.msra.mxu0 0.0
      %367 = vmatprep.subr.mxu0 0.0
      %368 = vmatpush1.msra.mxu0 0.0
      %369 = vmatprep.subr.mxu0 0.0
      %370 = vmatpush1.msra.mxu0 0.0
      %371 = vmatprep.subr.mxu0 0.0
      %372 = vmatpush1.msra.mxu0 0.0
      %373 = vmatprep.subr.mxu0 0.0
      %374 = vmatpush1.msra.mxu0 0.0
      %375 = vmatprep.subr.mxu0 0.0
      %376 = vmatpush1.msra.mxu0 0.0
      %377 = vmatprep.subr.mxu0 0.0
      %378 = vmatpush1.msra.mxu0 0.0
      %379 = vmatprep.subr.mxu0 0.0
      %380 = vmatpush1.msra.mxu0 0.0
      %381 = vmatprep.subr.mxu0 0.0
      %382 = vmatpush1.msra.mxu0 0.0
      %383 = vmatprep.subr.mxu0 0.0
      %384 = vmatpush1.msra.mxu0 0.0
      %385 = vmatprep.subr.mxu0 0.0
      %386 = vmatpush1.msra.mxu0 0.0
      %387 = vmatprep.subr.mxu0 0.0
      %388 = vmatpush1.msra.mxu0 0.0
      %389 = vmatprep.mubr.f32.mxu0 0.0
      %390 = vmatmul.mubr.f32.gmra.mrb[0].mxu0 %v323
      %v391 = vpop.f32.mrb[0].mxu0
      %v392 = vadd.f32 0.0, %v391
      %v393 = vpop.f32.mrb[0].mxu0
      %394 = vdwg.mxu0
      %v395 = vadd.f32 %v317, %v392
      %v396 = vld [vmem:[%s7] sm:$0xff]
      %v397 = vxor.u32 %v395, 2147483648
      %v398 = vmul.f32 %v397, 1.442695
      %v399 = vpow.pop %v398
      %v400 = vadd.f32 %v399, 1.0
      %v401 = vrcp.pop %v400
      %v402 = vmul.f32 1.0, %v401
      %v403 = vtanh.pop %v395
      %405 = vrot.lane.b32.xlu0 %v396, 16
      %v406 = vpop.permute.xlu0 %405
      %v408 = vmul.f32 %v402, %v406
      %410 = vrot.lane.b32.xlu0 %v403, 96
      %v411 = vpop.permute.xlu0 %410
      %v413 = vmul.f32 %v402, %v411
      %415 = vrot.lane.b32.xlu0 %v413, 16
      %v416 = vpop.permute.xlu0 %415
      %v418 = vadd.f32 %v408, %v416
      %v419 = vtanh.pop %v418
      %421 = vrot.lane.b32.xlu0 %v419, 32
      %v422 = vpop.permute.xlu0 %421
      %v424 = vmul.f32 %v402, %v422
      %v425 = vld [vmem:[%s296] sm:$0xff]
      %s426 = scalar_lea.vmem %s6, 8
      %v427 = vld [vmem:[%s426] sm:$0xff]
      %v428 = vld [vmem:[%s3] sm:$0xff]
      %v429 = vld [vmem:[%s3 + $0x8] sm:$0xff]
      %v431 = vsel %vm321, %v427, 0
      %433 = vmatprep.subr.mxu0 0.0
      %434 = vmatpush1.msra.mxu0 %v428
      %435 = vmatprep.subr.mxu0 0.0
      %436 = vmatpush1.msra.mxu0 %v429
      %437 = vmatprep.subr.mxu0 0.0
      %438 = vmatpush1.msra.mxu0 0.0
      %439 = vmatprep.subr.mxu0 0.0
      %440 = vmatpush1.msra.mxu0 0.0
      %441 = vmatprep.subr.mxu0 0.0
      %442 = vmatpush1.msra.mxu0 0.0
      %443 = vmatprep.subr.mxu0 0.0
      %444 = vmatpush1.msra.mxu0 0.0
      %445 = vmatprep.subr.mxu0 0.0
      %446 = vmatpush1.msra.mxu0 0.0
      %447 = vmatprep.subr.mxu0 0.0
      %448 = vmatpush1.msra.mxu0 0.0
      %449 = vmatprep.subr.mxu0 0.0
      %450 = vmatpush1.msra.mxu0 0.0
      %451 = vmatprep.subr.mxu0 0.0
      %452 = vmatpush1.msra.mxu0 0.0
      %453 = vmatprep.subr.mxu0 0.0
      %454 = vmatpush1.msra.mxu0 0.0
      %455 = vmatprep.subr.mxu0 0.0
      %456 = vmatpush1.msra.mxu0 0.0
      %457 = vmatprep.subr.mxu0 0.0
      %458 = vmatpush1.msra.mxu0 0.0
      %459 = vmatprep.subr.mxu0 0.0
      %460 = vmatpush1.msra.mxu0 0.0
      %461 = vmatprep.subr.mxu0 0.0
      %462 = vmatpush1.msra.mxu0 0.0
      %463 = vmatprep.subr.mxu0 0.0
      %464 = vmatpush1.msra.mxu0 0.0
      %465 = vmatprep.subr.mxu0 0.0
      %466 = vmatpush1.msra.mxu0 0.0
      %467 = vmatprep.subr.mxu0 0.0
      %468 = vmatpush1.msra.mxu0 0.0
      %469 = vmatprep.subr.mxu0 0.0
      %470 = vmatpush1.msra.mxu0 0.0
      %471 = vmatprep.subr.mxu0 0.0
      %472 = vmatpush1.msra.mxu0 0.0
      %473 = vmatprep.subr.mxu0 0.0
      %474 = vmatpush1.msra.mxu0 0.0
      %475 = vmatprep.subr.mxu0 0.0
      %476 = vmatpush1.msra.mxu0 0.0
      %477 = vmatprep.subr.mxu0 0.0
      %478 = vmatpush1.msra.mxu0 0.0
      %479 = vmatprep.subr.mxu0 0.0
      %480 = vmatpush1.msra.mxu0 0.0
      %481 = vmatprep.subr.mxu0 0.0
      %482 = vmatpush1.msra.mxu0 0.0
      %483 = vmatprep.subr.mxu0 0.0
      %484 = vmatpush1.msra.mxu0 0.0
      %485 = vmatprep.subr.mxu0 0.0
      %486 = vmatpush1.msra.mxu0 0.0
      %487 = vmatprep.subr.mxu0 0.0
      %488 = vmatpush1.msra.mxu0 0.0
      %489 = vmatprep.subr.mxu0 0.0
      %490 = vmatpush1.msra.mxu0 0.0
      %491 = vmatprep.subr.mxu0 0.0
      %492 = vmatpush1.msra.mxu0 0.0
      %493 = vmatprep.subr.mxu0 0.0
      %494 = vmatpush1.msra.mxu0 0.0
      %495 = vmatprep.subr.mxu0 0.0
      %496 = vmatpush1.msra.mxu0 0.0
      %497 = vmatprep.mubr.f32.mxu0 0.0
      %498 = vmatmul.mubr.f32.gmra.mrb[0].mxu0 %v431
      %v499 = vpop.f32.mrb[0].mxu0
      %v500 = vadd.f32 0.0, %v499
      %v501 = vpop.f32.mrb[0].mxu0
      %502 = vdwg.mxu0
      %v503 = vadd.f32 %v425, %v500
      %s504 = scalar_lea.vmem %s7, 8
      %v505 = vld [vmem:[%s504] sm:$0xff]
      %v506 = vxor.u32 %v503, 2147483648
      %v507 = vmul.f32 %v506, 1.442695
      %v508 = vpow.pop %v507
      %v509 = vadd.f32 %v508, 1.0
      %v510 = vrcp.pop %v509
      %v511 = vmul.f32 1.0, %v510
      %v512 = vtanh.pop %v503
      %514 = vrot.lane.b32.xlu0 %v505, 16
      %v515 = vpop.permute.xlu0 %514
      %v517 = vmul.f32 %v511, %v515
      %519 = vrot.lane.b32.xlu0 %v512, 96
      %v520 = vpop.permute.xlu0 %519
      %v522 = vmul.f32 %v511, %v520
      %524 = vrot.lane.b32.xlu0 %v522, 16
      %v525 = vpop.permute.xlu0 %524
      %v527 = vadd.f32 %v517, %v525
      %v528 = vtanh.pop %v527
      %530 = vrot.lane.b32.xlu0 %v528, 32
      %v531 = vpop.permute.xlu0 %530
      %v533 = vmul.f32 %v511, %v531
      %535 = vrot.lane.b32.xlu0 %v424, 80
      %v536 = vpop.permute.xlu0 %535
      %538 = vst.msk [vmem:[%s6] sm:$0xff] %vm321, %v536
      %540 = vrot.lane.b32.xlu0 %v418, 112
      %v541 = vpop.permute.xlu0 %540
      %543 = vst.msk [vmem:[%s7] sm:$0xff] %vm321, %v541
      %545 = vrot.lane.b32.xlu0 %v533, 80
      %v546 = vpop.permute.xlu0 %545
      %548 = vst.msk [vmem:[%s426] sm:$0xff] %vm321, %v546
      %550 = vrot.lane.b32.xlu0 %v527, 112
      %v551 = vpop.permute.xlu0 %550
      %553 = vst.msk [vmem:[%s504] sm:$0xff] %vm321, %v551
      %554 = vst.msk [vmem:[%s301] sm:$0xff] %vm321, %v536
      %555 = vst.msk [vmem:[%s306] sm:$0xff] %vm321, %v546
      %p556 = scmp.lt.s32.totalorder %s19, 7
      %s557 = scalar_select %p556, %s19, 7
      %s558 = smul.addr %s557, 8
      %s559 = scalar_lea.vmem %s4, %s558
      %s560 = ssub.s32 7, %s19
      %p561 = scmp.lt.s32.totalorder %s560, 7
      %s562 = scalar_select %p561, %s560, 7
      %s563 = smul.addr %s562, 8
      %s564 = scalar_lea.vmem %s5, %s563
      // Predicated region
      $region41: #{seq2seq_forward.4} parent=35 // pred_check
        %p565 = pneg %p133
      $region42: #{seq2seq_forward.4} parent=35 // pred_check_branch
        %567 = sbr.rel (%p565) target = $region44
      $region43: #{seq2seq_forward.4} parent=35 // pred_region
        _
      $region44: #{seq2seq_forward.4} parent=35 // pred_fallthru
        _
      // Predicated region
      $region45: #{seq2seq_forward.4} parent=35 // pred_check
        %p568 = pneg %p161
      $region46: #{seq2seq_forward.4} parent=35 // pred_check_branch
        %570 = sbr.rel (%p568) target = $region48
      $region47: #{seq2seq_forward.4} parent=35 // pred_region
        %s571 = ssub.s32 7, %s19
      $region48: #{seq2seq_forward.4} parent=35 // pred_fallthru
        _
      // Predicated region
      $region49: #{seq2seq_forward.4} parent=35 // pred_check
        %p572 = pneg %p182
      $region50: #{seq2seq_forward.4} parent=35 // pred_check_branch
        %574 = sbr.rel (%p572) target = $region52
      $region51: #{seq2seq_forward.4} parent=35 // pred_region
        _
      $region52: #{seq2seq_forward.4} parent=35 // pred_fallthru
        _
      // Predicated region
      $region53: #{seq2seq_forward.4} parent=35 // pred_check
        %p575 = pneg %p203
      $region54: #{seq2seq_forward.4} parent=35 // pred_check_branch
        %577 = sbr.rel (%p575) target = $region56
      $region55: #{seq2seq_forward.4} parent=35 // pred_region
        _
      $region56: #{seq2seq_forward.4} parent=35 // pred_fallthru
        _
      // Predicated region
      $region57: #{seq2seq_forward.4} parent=35 // pred_check
        %p578 = pneg %p182
      $region58: #{seq2seq_forward.4} parent=35 // pred_check_branch
        %580 = sbr.rel (%p578) target = $region60
      $region59: #{seq2seq_forward.4} parent=35 // pred_region
        _
      $region60: #{seq2seq_forward.4} parent=35 // pred_fallthru
        _
      // Predicated region
      $region61: #{seq2seq_forward.4} parent=35 // pred_check
        %p581 = pneg %p203
      $region62: #{seq2seq_forward.4} parent=35 // pred_check_branch
        %583 = sbr.rel (%p581) target = $region64
      $region63: #{seq2seq_forward.4} parent=35 // pred_region
        _
      $region64: #{seq2seq_forward.4} parent=35 // pred_fallthru
        _
    $region36: #{seq2seq_forward.4} parent=5 // pred_fallthru
      _
    %p584 = scmp.le.s32.totalorder 2, %s14
    // Predicated region
    $region65: #{seq2seq_forward.4} parent=5 // pred_check
      %p585 = pneg %p584
    $region66: #{seq2seq_forward.4} parent=5 // pred_check_branch
      %587 = sbr.rel (%p585) target = $region68
    $region67: #{seq2seq_forward.4} parent=5 // pred_region
      %s588 = ssub.s32 %s14, 2
      // Predicated region
      $region69: #{seq2seq_forward.4} parent=67 // pred_check
        %p589 = pneg %p139
      $region70: #{seq2seq_forward.4} parent=67 // pred_check_branch
        %591 = sbr.rel (%p589) target = $region72
      $region71: #{seq2seq_forward.4} parent=67 // pred_region
        %p592 = scmp.lt.s32.totalorder %s20, 7
        %s593 = scalar_select %p592, %s20, 7
        %s594 = smul.addr %s593, 8
        %s595 = scalar_lea.vmem %s4, %s594
      $region72: #{seq2seq_forward.4} parent=67 // pred_fallthru
        _
      // Predicated region
      $region73: #{seq2seq_forward.4} parent=67 // pred_check
        %p596 = pneg %p167
      $region74: #{seq2seq_forward.4} parent=67 // pred_check_branch
        %598 = sbr.rel (%p596) target = $region76
      $region75: #{seq2seq_forward.4} parent=67 // pred_region
        %s599 = ssub.s32 7, %s20
        %p600 = scmp.lt.s32.totalorder %s599, 7
        %s601 = scalar_select %p600, %s599, 7
        %s602 = smul.addr %s601, 8
        %s603 = scalar_lea.vmem %s5, %s602
      $region76: #{seq2seq_forward.4} parent=67 // pred_fallthru
        _
    $region68: #{seq2seq_forward.4} parent=5 // pred_fallthru
      _
  $region6: #{seq2seq_forward.4} parent=0 // loop_footer
    %s18 = sadd.s32 1, %s14
  $region7: #{seq2seq_forward.4} parent=0 // loop_footer_branch
    %13 = sbr.rel target = $region3
  $region8: #{seq2seq_forward.4} parent=0 // loop_exit
    _

// kernel: seq2seq_forward.5
$region0: #{seq2seq_forward.5}
  #allocation0 [shape = 'u32[]', space=smem, size = 0x4, offset = 0x4, fixed_abs, tag = 'smem constant byte address 0x4 - core index']
  #allocation1 [shape = 'u32[144,128]{1,0:T(1,128)}', space=vmem, size = 0x12000, scoped, tag = 'internal scratch']
  #allocation2 [shape = 'f32[8,16]{1,0:T(8,128)}', space=vmem, size = 0x1000, scoped, tag = 'scratch operand']
  #allocation3 [shape = 'f32[8,16]{1,0:T(8,128)}', space=vmem, size = 0x1000, scoped, tag = 'scratch operand']
  #allocation4 [shape = 'f32[8,32]{1,0:T(8,128)}', space=vmem, size = 0x1000, scoped, tag = 'scratch operand']
  #allocation5 [shape = 's32[1]{0}', space=sflag, size = 0x4, scoped, tag = 'scoped memory for seq2seq_forward.5']
  #allocation6 [shape = 'u8[512]{0}', space=smem, size = 0x200, scoped, tag = 'prefetched SMEM operand 0']
  #allocation7 [shape = 'f32[1,1,1]{2,1,0:T(1,128)S(1)}', space=vmem, size = 0x200, scoped, tag = 'scoped memory for seq2seq_forward.5']
  %s0 = inlined_call_operand.vmem [shape: s32[6], index: 0, kind: input, shape index: {}]
  %s1 = inlined_call_operand.vmem [shape: f32[6,8,32], index: 1, kind: input, shape index: {}]
  %s2 = inlined_call_operand.vmem [shape: f32[8,8,32], index: 2, kind: input, shape index: {}]
  %s3 = inlined_call_operand.vmem [shape: f32[8,8,1], index: 3, kind: input, shape index: {}]
  %s4 = inlined_call_operand.vmem [shape: f32[32,16], index: 4, kind: input, shape index: {}]
  %s5 = inlined_call_operand.vmem [shape: f32[16,1], index: 5, kind: input, shape index: {}]
  %s6 = inlined_call_operand.<no memory space> [shape: f32[1,1,1], index: 6, kind: input, shape index: {}]
  %s7 = inlined_call_operand.vmem [shape: f32[32,64], index: 7, kind: input, shape index: {}]
  %s8 = inlined_call_operand.vmem [shape: f32[16,64], index: 8, kind: input, shape index: {}]
  %s9 = inlined_call_operand.vmem [shape: f32[16,64], index: 9, kind: input, shape index: {}]
  %s10 = inlined_call_operand.vmem [shape: f32[1,64], index: 10, kind: input, shape index: {}]
  %s11 = inlined_call_operand.vmem [shape: f32[16,32], index: 11, kind: input, shape index: {}]
  %s12 = inlined_call_operand.vmem [shape: f32[1,32], index: 12, kind: input, shape index: {}]
  %s13 = inlined_call_operand.vmem [shape: f32[8,32], index: 13, kind: input, shape index: {}]
  %s14 = inlined_call_operand.vmem [shape: f32[8,32], index: 14, kind: input, shape index: {}]
  %s15 = inlined_call_operand.vmem [shape: f32[32,16], index: 15, kind: input, shape index: {}]
  %s16 = inlined_call_operand.vmem [shape: f32[1,16], index: 16, kind: input, shape index: {}]
  %s17 = inlined_call_operand.vmem [shape: f32[32,16], index: 17, kind: input, shape index: {}]
  %s18 = inlined_call_operand.vmem [shape: f32[1,16], index: 18, kind: input, shape index: {}]
  %s19 = inlined_call_operand.vmem [shape: f32[5,8,32], index: 19, kind: output, shape index: {}]
  %s20 = sld [smem:[#allocation0]]
  $region109: #{seq2seq_forward.5} parent=0
    _
  %s22 = ssub.s32 1, %s20
  %s23 = scalar_select 0, %s22, %s20
  %s24 = sshll.u32 %s0, 4
  %s25 = int_to_ptr.vmem [resolvable:$true] %s24
  %27 = dma.vmem_to_smem %s25, 16, [#allocation6], [#allocation5]
  %v28 = vstv %s6
  %29 = vst [vmem:[#allocation7] sm:$0x1] %v28
  %30 = dma.done [#allocation5], 16
  %31 = sfence
  loop: start=0, step=1, limit=7
  $region2: #{seq2seq_forward.5} parent=0 // loop_pre_header
    _
  $region3: #{seq2seq_forward.5} parent=0 // loop_header
    %s33 = sphi 0, %s37
    %p34 = scmp.ge.s32.totalorder %s33, 7
    %s41 = sphi 0, %s41
    %s43 = sphi 0, %s41
    %s44 = sphi 0, %s43
    %s58 = sphi 0, %s44
    %s62 = sphi 0, %s62
    %s64 = sphi 0, %s62
    %s65 = sphi 0, %s64
    %s79 = sphi 0, %s65
    %s83 = sphi 0, %s83
    %s85 = sphi 0, %s83
    %s86 = sphi 0, %s85
    %s100 = sphi 0, %s86
    %s104 = sphi 0, %s104
    %s106 = sphi 0, %s104
    %s107 = sphi 0, %s106
    %s121 = sphi 0, %s107
    %s125 = sphi 0, %s125
    %s127 = sphi 0, %s125
    %s128 = sphi 0, %s127
    %s142 = sphi 0, %s128
    %s146 = sphi 0, %s146
    %s148 = sphi 0, %s146
    %s149 = sphi 0, %s148
    %s163 = sphi 0, %s149
    %s167 = sphi 0, %s167
    %s169 = sphi 0, %s167
    %s170 = sphi 0, %s169
    %s184 = sphi 0, %s170
    %s188 = sphi 0, %s188
    %s190 = sphi 0, %s188
    %s191 = sphi 0, %s190
    %s205 = sphi 0, %s191
    %s209 = sphi 0, %s209
    %s211 = sphi 0, %s209
    %s212 = sphi 0, %s211
    %s226 = sphi 0, %s212
    %s230 = sphi 0, %s230
    %s232 = sphi 0, %s230
    %s233 = sphi 0, %s232
    %s247 = sphi 0, %s233
    %s251 = sphi 0, %s251
    %s253 = sphi 0, %s251
    %s254 = sphi 0, %s253
    %s268 = sphi 0, %s254
    %s272 = sphi 0, %s272
    %s274 = sphi 0, %s272
    %s275 = sphi 0, %s274
    %s289 = sphi 0, %s275
    %s293 = sphi 0, %s293
    %s295 = sphi 0, %s293
    %s296 = sphi 0, %s295
    %s310 = sphi 0, %s296
    %s314 = sphi 0, %s314
    %s316 = sphi 0, %s314
    %s317 = sphi 0, %s316
    %s331 = sphi 0, %s317
    %s335 = sphi 0, %s335
    %s337 = sphi 0, %s335
    %s338 = sphi 0, %s337
    %s352 = sphi 0, %s338
    %s356 = sphi 0, %s356
    %s358 = sphi 0, %s356
    %s359 = sphi 0, %s358
    %s373 = sphi 0, %s359
    %s377 = sphi 0, %s377
    %s379 = sphi 0, %s377
    %s380 = sphi 0, %s379
    %s394 = sphi 0, %s380
    %s398 = sphi 0, %s398
    %s400 = sphi 0, %s398
    %s401 = sphi 0, %s400
    %s415 = sphi 0, %s401
    %s421 = sphi 0, %s423
    %s424 = sphi 0, %s421
    %s425 = sphi 0, %s424
    %s441 = sphi 0, %s425
  $region4: #{seq2seq_forward.5} parent=0 // loop_header_branch
    %36 = sbr.rel (%p34) target = $region8
  $region5: #{seq2seq_forward.5} parent=0 // loop_body
    %s38 = ssub.s32 %s33, 1
    %s39 = ssub.s32 %s33, 2
    %s40 = sadd.s32 %s33, 1
    %s42 = sadd.s32 %s41, 1
    %p45 = scmp.eq.s32.totalorder %s33, 4
    %p46 = scmp.ne.s32.totalorder %s41, %s43
    %p47 = scmp.eq.s32.totalorder %s33, 0
    %p48 = por %p46, %p47
    %p49 = scmp.ne.s32.totalorder %s41, %s43
    %p50 = scmp.eq.s32.totalorder %s38, 4
    %p51 = por %p49, %p50
    %p52 = scmp.ne.s32.totalorder %s43, %s44
    %p53 = scmp.eq.s32.totalorder %s38, 0
    %p54 = por %p52, %p53
    %p55 = scmp.ne.s32.totalorder %s43, %s44
    %p56 = scmp.eq.s32.totalorder %s39, 4
    %p57 = por %p55, %p56
    %p59 = scmp.ne.s32.totalorder %s44, %s58
    %p60 = scmp.eq.s32.totalorder %s39, 0
    %p61 = por %p59, %p60
    %s63 = sadd.s32 %s62, 1
    %p66 = scmp.eq.s32.totalorder %s33, 4
    %p67 = scmp.ne.s32.totalorder %s62, %s64
    %p68 = scmp.eq.s32.totalorder %s33, 0
    %p69 = por %p67, %p68
    %p70 = scmp.ne.s32.totalorder %s62, %s64
    %p71 = scmp.eq.s32.totalorder %s38, 4
    %p72 = por %p70, %p71
    %p73 = scmp.ne.s32.totalorder %s64, %s65
    %p74 = scmp.eq.s32.totalorder %s38, 0
    %p75 = por %p73, %p74
    %p76 = scmp.ne.s32.totalorder %s64, %s65
    %p77 = scmp.eq.s32.totalorder %s39, 4
    %p78 = por %p76, %p77
    %p80 = scmp.ne.s32.totalorder %s65, %s79
    %p81 = scmp.eq.s32.totalorder %s39, 0
    %p82 = por %p80, %p81
    %s84 = sadd.s32 %s83, 1
    %p87 = scmp.eq.s32.totalorder %s33, 4
    %p88 = scmp.ne.s32.totalorder %s83, %s85
    %p89 = scmp.eq.s32.totalorder %s33, 0
    %p90 = por %p88, %p89
    %p91 = scmp.ne.s32.totalorder %s83, %s85
    %p92 = scmp.eq.s32.totalorder %s38, 4
    %p93 = por %p91, %p92
    %p94 = scmp.ne.s32.totalorder %s85, %s86
    %p95 = scmp.eq.s32.totalorder %s38, 0
    %p96 = por %p94, %p95
    %p97 = scmp.ne.s32.totalorder %s85, %s86
    %p98 = scmp.eq.s32.totalorder %s39, 4
    %p99 = por %p97, %p98
    %p101 = scmp.ne.s32.totalorder %s86, %s100
    %p102 = scmp.eq.s32.totalorder %s39, 0
    %p103 = por %p101, %p102
    %s105 = sadd.s32 %s104, 1
    %p108 = scmp.eq.s32.totalorder %s33, 4
    %p109 = scmp.ne.s32.totalorder %s104, %s106
    %p110 = scmp.eq.s32.totalorder %s33, 0
    %p111 = por %p109, %p110
    %p112 = scmp.ne.s32.totalorder %s104, %s106
    %p113 = scmp.eq.s32.totalorder %s38, 4
    %p114 = por %p112, %p113
    %p115 = scmp.ne.s32.totalorder %s106, %s107
    %p116 = scmp.eq.s32.totalorder %s38, 0
    %p117 = por %p115, %p116
    %p118 = scmp.ne.s32.totalorder %s106, %s107
    %p119 = scmp.eq.s32.totalorder %s39, 4
    %p120 = por %p118, %p119
    %p122 = scmp.ne.s32.totalorder %s107, %s121
    %p123 = scmp.eq.s32.totalorder %s39, 0
    %p124 = por %p122, %p123
    %s126 = sadd.s32 %s125, 1
    %p129 = scmp.eq.s32.totalorder %s33, 4
    %p130 = scmp.ne.s32.totalorder %s125, %s127
    %p131 = scmp.eq.s32.totalorder %s33, 0
    %p132 = por %p130, %p131
    %p133 = scmp.ne.s32.totalorder %s125, %s127
    %p134 = scmp.eq.s32.totalorder %s38, 4
    %p135 = por %p133, %p134
    %p136 = scmp.ne.s32.totalorder %s127, %s128
    %p137 = scmp.eq.s32.totalorder %s38, 0
    %p138 = por %p136, %p137
    %p139 = scmp.ne.s32.totalorder %s127, %s128
    %p140 = scmp.eq.s32.totalorder %s39, 4
    %p141 = por %p139, %p140
    %p143 = scmp.ne.s32.totalorder %s128, %s142
    %p144 = scmp.eq.s32.totalorder %s39, 0
    %p145 = por %p143, %p144
    %s147 = sadd.s32 %s146, 1
    %p150 = scmp.eq.s32.totalorder %s33, 4
    %p151 = scmp.ne.s32.totalorder %s146, %s148
    %p152 = scmp.eq.s32.totalorder %s33, 0
    %p153 = por %p151, %p152
    %p154 = scmp.ne.s32.totalorder %s146, %s148
    %p155 = scmp.eq.s32.totalorder %s38, 4
    %p156 = por %p154, %p155
    %p157 = scmp.ne.s32.totalorder %s148, %s149
    %p158 = scmp.eq.s32.totalorder %s38, 0
    %p159 = por %p157, %p158
    %p160 = scmp.ne.s32.totalorder %s148, %s149
    %p161 = scmp.eq.s32.totalorder %s39, 4
    %p162 = por %p160, %p161
    %p164 = scmp.ne.s32.totalorder %s149, %s163
    %p165 = scmp.eq.s32.totalorder %s39, 0
    %p166 = por %p164, %p165
    %s168 = sadd.s32 %s167, 1
    %p171 = scmp.eq.s32.totalorder %s33, 4
    %p172 = scmp.ne.s32.totalorder %s167, %s169
    %p173 = scmp.eq.s32.totalorder %s33, 0
    %p174 = por %p172, %p173
    %p175 = scmp.ne.s32.totalorder %s167, %s169
    %p176 = scmp.eq.s32.totalorder %s38, 4
    %p177 = por %p175, %p176
    %p178 = scmp.ne.s32.totalorder %s169, %s170
    %p179 = scmp.eq.s32.totalorder %s38, 0
    %p180 = por %p178, %p179
    %p181 = scmp.ne.s32.totalorder %s169, %s170
    %p182 = scmp.eq.s32.totalorder %s39, 4
    %p183 = por %p181, %p182
    %p185 = scmp.ne.s32.totalorder %s170, %s184
    %p186 = scmp.eq.s32.totalorder %s39, 0
    %p187 = por %p185, %p186
    %s189 = sadd.s32 %s188, 1
    %p192 = scmp.eq.s32.totalorder %s33, 4
    %p193 = scmp.ne.s32.totalorder %s188, %s190
    %p194 = scmp.eq.s32.totalorder %s33, 0
    %p195 = por %p193, %p194
    %p196 = scmp.ne.s32.totalorder %s188, %s190
    %p197 = scmp.eq.s32.totalorder %s38, 4
    %p198 = por %p196, %p197
    %p199 = scmp.ne.s32.totalorder %s190, %s191
    %p200 = scmp.eq.s32.totalorder %s38, 0
    %p201 = por %p199, %p200
    %p202 = scmp.ne.s32.totalorder %s190, %s191
    %p203 = scmp.eq.s32.totalorder %s39, 4
    %p204 = por %p202, %p203
    %p206 = scmp.ne.s32.totalorder %s191, %s205
    %p207 = scmp.eq.s32.totalorder %s39, 0
    %p208 = por %p206, %p207
    %s210 = sadd.s32 %s209, 1
    %p213 = scmp.eq.s32.totalorder %s33, 4
    %p214 = scmp.ne.s32.totalorder %s209, %s211
    %p215 = scmp.eq.s32.totalorder %s33, 0
    %p216 = por %p214, %p215
    %p217 = scmp.ne.s32.totalorder %s209, %s211
    %p218 = scmp.eq.s32.totalorder %s38, 4
    %p219 = por %p217, %p218
    %p220 = scmp.ne.s32.totalorder %s211, %s212
    %p221 = scmp.eq.s32.totalorder %s38, 0
    %p222 = por %p220, %p221
    %p223 = scmp.ne.s32.totalorder %s211, %s212
    %p224 = scmp.eq.s32.totalorder %s39, 4
    %p225 = por %p223, %p224
    %p227 = scmp.ne.s32.totalorder %s212, %s226
    %p228 = scmp.eq.s32.totalorder %s39, 0
    %p229 = por %p227, %p228
    %s231 = sadd.s32 %s230, 1
    %p234 = scmp.eq.s32.totalorder %s33, 4
    %p235 = scmp.ne.s32.totalorder %s230, %s232
    %p236 = scmp.eq.s32.totalorder %s33, 0
    %p237 = por %p235, %p236
    %p238 = scmp.ne.s32.totalorder %s230, %s232
    %p239 = scmp.eq.s32.totalorder %s38, 4
    %p240 = por %p238, %p239
    %p241 = scmp.ne.s32.totalorder %s232, %s233
    %p242 = scmp.eq.s32.totalorder %s38, 0
    %p243 = por %p241, %p242
    %p244 = scmp.ne.s32.totalorder %s232, %s233
    %p245 = scmp.eq.s32.totalorder %s39, 4
    %p246 = por %p244, %p245
    %p248 = scmp.ne.s32.totalorder %s233, %s247
    %p249 = scmp.eq.s32.totalorder %s39, 0
    %p250 = por %p248, %p249
    %s252 = sadd.s32 %s251, 1
    %p255 = scmp.eq.s32.totalorder %s33, 4
    %p256 = scmp.ne.s32.totalorder %s251, %s253
    %p257 = scmp.eq.s32.totalorder %s33, 0
    %p258 = por %p256, %p257
    %p259 = scmp.ne.s32.totalorder %s251, %s253
    %p260 = scmp.eq.s32.totalorder %s38, 4
    %p261 = por %p259, %p260
    %p262 = scmp.ne.s32.totalorder %s253, %s254
    %p263 = scmp.eq.s32.totalorder %s38, 0
    %p264 = por %p262, %p263
    %p265 = scmp.ne.s32.totalorder %s253, %s254
    %p266 = scmp.eq.s32.totalorder %s39, 4
    %p267 = por %p265, %p266
    %p269 = scmp.ne.s32.totalorder %s254, %s268
    %p270 = scmp.eq.s32.totalorder %s39, 0
    %p271 = por %p269, %p270
    %s273 = sadd.s32 %s272, 1
    %p276 = scmp.eq.s32.totalorder %s33, 4
    %p277 = scmp.ne.s32.totalorder %s272, %s274
    %p278 = scmp.eq.s32.totalorder %s33, 0
    %p279 = por %p277, %p278
    %p280 = scmp.ne.s32.totalorder %s272, %s274
    %p281 = scmp.eq.s32.totalorder %s38, 4
    %p282 = por %p280, %p281
    %p283 = scmp.ne.s32.totalorder %s274, %s275
    %p284 = scmp.eq.s32.totalorder %s38, 0
    %p285 = por %p283, %p284
    %p286 = scmp.ne.s32.totalorder %s274, %s275
    %p287 = scmp.eq.s32.totalorder %s39, 4
    %p288 = por %p286, %p287
    %p290 = scmp.ne.s32.totalorder %s275, %s289
    %p291 = scmp.eq.s32.totalorder %s39, 0
    %p292 = por %p290, %p291
    %s294 = sadd.s32 %s293, 1
    %p297 = scmp.eq.s32.totalorder %s33, 4
    %p298 = scmp.ne.s32.totalorder %s293, %s295
    %p299 = scmp.eq.s32.totalorder %s33, 0
    %p300 = por %p298, %p299
    %p301 = scmp.ne.s32.totalorder %s293, %s295
    %p302 = scmp.eq.s32.totalorder %s38, 4
    %p303 = por %p301, %p302
    %p304 = scmp.ne.s32.totalorder %s295, %s296
    %p305 = scmp.eq.s32.totalorder %s38, 0
    %p306 = por %p304, %p305
    %p307 = scmp.ne.s32.totalorder %s295, %s296
    %p308 = scmp.eq.s32.totalorder %s39, 4
    %p309 = por %p307, %p308
    %p311 = scmp.ne.s32.totalorder %s296, %s310
    %p312 = scmp.eq.s32.totalorder %s39, 0
    %p313 = por %p311, %p312
    %s315 = sadd.s32 %s314, 1
    %p318 = scmp.eq.s32.totalorder %s33, 4
    %p319 = scmp.ne.s32.totalorder %s314, %s316
    %p320 = scmp.eq.s32.totalorder %s33, 0
    %p321 = por %p319, %p320
    %p322 = scmp.ne.s32.totalorder %s314, %s316
    %p323 = scmp.eq.s32.totalorder %s38, 4
    %p324 = por %p322, %p323
    %p325 = scmp.ne.s32.totalorder %s316, %s317
    %p326 = scmp.eq.s32.totalorder %s38, 0
    %p327 = por %p325, %p326
    %p328 = scmp.ne.s32.totalorder %s316, %s317
    %p329 = scmp.eq.s32.totalorder %s39, 4
    %p330 = por %p328, %p329
    %p332 = scmp.ne.s32.totalorder %s317, %s331
    %p333 = scmp.eq.s32.totalorder %s39, 0
    %p334 = por %p332, %p333
    %s336 = sadd.s32 %s335, 1
    %p339 = scmp.eq.s32.totalorder %s33, 4
    %p340 = scmp.ne.s32.totalorder %s335, %s337
    %p341 = scmp.eq.s32.totalorder %s33, 0
    %p342 = por %p340, %p341
    %p343 = scmp.ne.s32.totalorder %s335, %s337
    %p344 = scmp.eq.s32.totalorder %s38, 4
    %p345 = por %p343, %p344
    %p346 = scmp.ne.s32.totalorder %s337, %s338
    %p347 = scmp.eq.s32.totalorder %s38, 0
    %p348 = por %p346, %p347
    %p349 = scmp.ne.s32.totalorder %s337, %s338
    %p350 = scmp.eq.s32.totalorder %s39, 4
    %p351 = por %p349, %p350
    %p353 = scmp.ne.s32.totalorder %s338, %s352
    %p354 = scmp.eq.s32.totalorder %s39, 0
    %p355 = por %p353, %p354
    %s357 = sadd.s32 %s356, 1
    %p360 = scmp.eq.s32.totalorder %s33, 4
    %p361 = scmp.ne.s32.totalorder %s356, %s358
    %p362 = scmp.eq.s32.totalorder %s33, 0
    %p363 = por %p361, %p362
    %p364 = scmp.ne.s32.totalorder %s356, %s358
    %p365 = scmp.eq.s32.totalorder %s38, 4
    %p366 = por %p364, %p365
    %p367 = scmp.ne.s32.totalorder %s358, %s359
    %p368 = scmp.eq.s32.totalorder %s38, 0
    %p369 = por %p367, %p368
    %p370 = scmp.ne.s32.totalorder %s358, %s359
    %p371 = scmp.eq.s32.totalorder %s39, 4
    %p372 = por %p370, %p371
    %p374 = scmp.ne.s32.totalorder %s359, %s373
    %p375 = scmp.eq.s32.totalorder %s39, 0
    %p376 = por %p374, %p375
    %s378 = sadd.s32 %s377, 1
    %p381 = scmp.eq.s32.totalorder %s33, 4
    %p382 = scmp.ne.s32.totalorder %s377, %s379
    %p383 = scmp.eq.s32.totalorder %s33, 0
    %p384 = por %p382, %p383
    %p385 = scmp.ne.s32.totalorder %s377, %s379
    %p386 = scmp.eq.s32.totalorder %s38, 4
    %p387 = por %p385, %p386
    %p388 = scmp.ne.s32.totalorder %s379, %s380
    %p389 = scmp.eq.s32.totalorder %s38, 0
    %p390 = por %p388, %p389
    %p391 = scmp.ne.s32.totalorder %s379, %s380
    %p392 = scmp.eq.s32.totalorder %s39, 4
    %p393 = por %p391, %p392
    %p395 = scmp.ne.s32.totalorder %s380, %s394
    %p396 = scmp.eq.s32.totalorder %s39, 0
    %p397 = por %p395, %p396
    %s399 = sadd.s32 %s398, 1
    %p402 = scmp.eq.s32.totalorder %s33, 4
    %p403 = scmp.ne.s32.totalorder %s398, %s400
    %p404 = scmp.eq.s32.totalorder %s33, 0
    %p405 = por %p403, %p404
    %p406 = scmp.ne.s32.totalorder %s398, %s400
    %p407 = scmp.eq.s32.totalorder %s38, 4
    %p408 = por %p406, %p407
    %p409 = scmp.ne.s32.totalorder %s400, %s401
    %p410 = scmp.eq.s32.totalorder %s38, 0
    %p411 = por %p409, %p410
    %p412 = scmp.ne.s32.totalorder %s400, %s401
    %p413 = scmp.eq.s32.totalorder %s39, 4
    %p414 = por %p412, %p413
    %p416 = scmp.ne.s32.totalorder %s401, %s415
    %p417 = scmp.eq.s32.totalorder %s39, 0
    %p418 = por %p416, %p417
    %s419 = ssub.s32 %s33, %s40
    %p420 = scmp.eq.s32.totalorder %s419, 0
    %s422 = sadd.s32 %s421, 1
    %s423 = scalar_select %p420, %s421, %s422
    %p426 = pneg %p420
    %p427 = scmp.eq.s32.totalorder %s33, 4
    %p428 = por %p426, %p427
    %p429 = scmp.ne.s32.totalorder %s421, %s424
    %p430 = scmp.eq.s32.totalorder %s33, 0
    %p431 = por %p429, %p430
    %p432 = scmp.ne.s32.totalorder %s421, %s424
    %p433 = scmp.eq.s32.totalorder %s38, 4
    %p434 = por %p432, %p433
    %p435 = scmp.ne.s32.totalorder %s424, %s425
    %p436 = scmp.eq.s32.totalorder %s38, 0
    %p437 = por %p435, %p436
    %p438 = scmp.ne.s32.totalorder %s424, %s425
    %p439 = scmp.eq.s32.totalorder %s39, 4
    %p440 = por %p438, %p439
    %p442 = scmp.ne.s32.totalorder %s425, %s441
    %p443 = scmp.eq.s32.totalorder %s39, 0
    %p444 = por %p442, %p443
    %p445 = scmp.le.s32.totalorder 1, %s33
    %p446 = scmp.lt.s32.totalorder %s33, 6
    %p447 = pnand %p445, %p446
    %p448 = pneg %p447
    // Predicated region
    $region9: #{seq2seq_forward.5} parent=5 // pred_check
      _
    $region10: #{seq2seq_forward.5} parent=5 // pred_check_branch
      %450 = sbr.rel (%p447) target = $region12
    $region11: #{seq2seq_forward.5} parent=5 // pred_region
      %s451 = ssub.s32 %s33, 1
      // Predicated region
      $region13: #{seq2seq_forward.5} parent=11 // pred_check
        %p452 = pneg %p54
      $region14: #{seq2seq_forward.5} parent=11 // pred_check_branch
        %454 = sbr.rel (%p452) target = $region16
      $region15: #{seq2seq_forward.5} parent=11 // pred_region
        _
      $region16: #{seq2seq_forward.5} parent=11 // pred_fallthru
        _
      // Predicated region
      $region17: #{seq2seq_forward.5} parent=11 // pred_check
        %p455 = pneg %p75
      $region18: #{seq2seq_forward.5} parent=11 // pred_check_branch
        %457 = sbr.rel (%p455) target = $region20
      $region19: #{seq2seq_forward.5} parent=11 // pred_region
        _
      $region20: #{seq2seq_forward.5} parent=11 // pred_fallthru
        _
      // Predicated region
      $region21: #{seq2seq_forward.5} parent=11 // pred_check
        %p458 = pneg %p96
      $region22: #{seq2seq_forward.5} parent=11 // pred_check_branch
        %460 = sbr.rel (%p458) target = $region24
      $region23: #{seq2seq_forward.5} parent=11 // pred_region
        _
      $region24: #{seq2seq_forward.5} parent=11 // pred_fallthru
        _
      // Predicated region
      $region25: #{seq2seq_forward.5} parent=11 // pred_check
        %p461 = pneg %p117
      $region26: #{seq2seq_forward.5} parent=11 // pred_check_branch
        %463 = sbr.rel (%p461) target = $region28
      $region27: #{seq2seq_forward.5} parent=11 // pred_region
        _
      $region28: #{seq2seq_forward.5} parent=11 // pred_fallthru
        _
      // Predicated region
      $region29: #{seq2seq_forward.5} parent=11 // pred_check
        %p464 = pneg %p138
      $region30: #{seq2seq_forward.5} parent=11 // pred_check_branch
        %466 = sbr.rel (%p464) target = $region32
      $region31: #{seq2seq_forward.5} parent=11 // pred_region
        _
      $region32: #{seq2seq_forward.5} parent=11 // pred_fallthru
        _
      // Predicated region
      $region33: #{seq2seq_forward.5} parent=11 // pred_check
        %p467 = pneg %p159
      $region34: #{seq2seq_forward.5} parent=11 // pred_check_branch
        %469 = sbr.rel (%p467) target = $region36
      $region35: #{seq2seq_forward.5} parent=11 // pred_region
        _
      $region36: #{seq2seq_forward.5} parent=11 // pred_fallthru
        _
      // Predicated region
      $region37: #{seq2seq_forward.5} parent=11 // pred_check
        %p470 = pneg %p180
      $region38: #{seq2seq_forward.5} parent=11 // pred_check_branch
        %472 = sbr.rel (%p470) target = $region40
      $region39: #{seq2seq_forward.5} parent=11 // pred_region
        _
      $region40: #{seq2seq_forward.5} parent=11 // pred_fallthru
        _
      // Predicated region
      $region41: #{seq2seq_forward.5} parent=11 // pred_check
        %p473 = pneg %p201
      $region42: #{seq2seq_forward.5} parent=11 // pred_check_branch
        %475 = sbr.rel (%p473) target = $region44
      $region43: #{seq2seq_forward.5} parent=11 // pred_region
        _
      $region44: #{seq2seq_forward.5} parent=11 // pred_fallthru
        _
      // Predicated region
      $region45: #{seq2seq_forward.5} parent=11 // pred_check
        %p476 = pneg %p222
      $region46: #{seq2seq_forward.5} parent=11 // pred_check_branch
        %478 = sbr.rel (%p476) target = $region48
      $region47: #{seq2seq_forward.5} parent=11 // pred_region
        _
      $region48: #{seq2seq_forward.5} parent=11 // pred_fallthru
        _
      // Predicated region
      $region49: #{seq2seq_forward.5} parent=11 // pred_check
        %p479 = pneg %p243
      $region50: #{seq2seq_forward.5} parent=11 // pred_check_branch
        %481 = sbr.rel (%p479) target = $region52
      $region51: #{seq2seq_forward.5} parent=11 // pred_region
        _
      $region52: #{seq2seq_forward.5} parent=11 // pred_fallthru
        _
      // Predicated region
      $region53: #{seq2seq_forward.5} parent=11 // pred_check
        %p482 = pneg %p264
      $region54: #{seq2seq_forward.5} parent=11 // pred_check_branch
        %484 = sbr.rel (%p482) target = $region56
      $region55: #{seq2seq_forward.5} parent=11 // pred_region
        _
      $region56: #{seq2seq_forward.5} parent=11 // pred_fallthru
        _
      // Predicated region
      $region57: #{seq2seq_forward.5} parent=11 // pred_check
        %p485 = pneg %p285
      $region58: #{seq2seq_forward.5} parent=11 // pred_check_branch
        %487 = sbr.rel (%p485) target = $region60
      $region59: #{seq2seq_forward.5} parent=11 // pred_region
        _
      $region60: #{seq2seq_forward.5} parent=11 // pred_fallthru
        _
      // Predicated region
      $region61: #{seq2seq_forward.5} parent=11 // pred_check
        %p488 = pneg %p306
      $region62: #{seq2seq_forward.5} parent=11 // pred_check_branch
        %490 = sbr.rel (%p488) target = $region64
      $region63: #{seq2seq_forward.5} parent=11 // pred_region
        _
      $region64: #{seq2seq_forward.5} parent=11 // pred_fallthru
        _
      // Predicated region
      $region65: #{seq2seq_forward.5} parent=11 // pred_check
        %p491 = pneg %p327
      $region66: #{seq2seq_forward.5} parent=11 // pred_check_branch
        %493 = sbr.rel (%p491) target = $region68
      $region67: #{seq2seq_forward.5} parent=11 // pred_region
        _
      $region68: #{seq2seq_forward.5} parent=11 // pred_fallthru
        _
      // Predicated region
      $region69: #{seq2seq_forward.5} parent=11 // pred_check
        %p494 = pneg %p348
      $region70: #{seq2seq_forward.5} parent=11 // pred_check_branch
        %496 = sbr.rel (%p494) target = $region72
      $region71: #{seq2seq_forward.5} parent=11 // pred_region
        _
      $region72: #{seq2seq_forward.5} parent=11 // pred_fallthru
        _
      // Predicated region
      $region73: #{seq2seq_forward.5} parent=11 // pred_check
        %p497 = pneg %p369
      $region74: #{seq2seq_forward.5} parent=11 // pred_check_branch
        %499 = sbr.rel (%p497) target = $region76
      $region75: #{seq2seq_forward.5} parent=11 // pred_region
        _
      $region76: #{seq2seq_forward.5} parent=11 // pred_fallthru
        _
      // Predicated region
      $region77: #{seq2seq_forward.5} parent=11 // pred_check
        %p500 = pneg %p390
      $region78: #{seq2seq_forward.5} parent=11 // pred_check_branch
        %502 = sbr.rel (%p500) target = $region80
      $region79: #{seq2seq_forward.5} parent=11 // pred_region
        _
      $region80: #{seq2seq_forward.5} parent=11 // pred_fallthru
        _
      // Predicated region
      $region81: #{seq2seq_forward.5} parent=11 // pred_check
        %p503 = pneg %p411
      $region82: #{seq2seq_forward.5} parent=11 // pred_check_branch
        %505 = sbr.rel (%p503) target = $region84
      $region83: #{seq2seq_forward.5} parent=11 // pred_region
        _
      $region84: #{seq2seq_forward.5} parent=11 // pred_fallthru
        _
    $region12: #{seq2seq_forward.5} parent=5 // pred_fallthru
      _
    %p506 = scmp.lt.s32.totalorder %s33, 5
    // Predicated region
    $region85: #{seq2seq_forward.5} parent=5 // pred_check
      %p507 = pneg %p506
    $region86: #{seq2seq_forward.5} parent=5 // pred_check_branch
      %509 = sbr.rel (%p507) target = $region88
    $region87: #{seq2seq_forward.5} parent=5 // pred_region
      _
    $region88: #{seq2seq_forward.5} parent=5 // pred_fallthru
      _
    %p510 = scmp.le.s32.totalorder 1, %s33
    %p511 = scmp.lt.s32.totalorder %s33, 6
    %p512 = pnand %p510, %p511
    %p513 = pneg %p512
    // Predicated region
    $region89: #{seq2seq_forward.5} parent=5 // pred_check
      _
    $region90: #{seq2seq_forward.5} parent=5 // pred_check_branch
      %515 = sbr.rel (%p512) target = $region92
    $region91: #{seq2seq_forward.5} parent=5 // pred_region
      %s516 = ssub.s32 %s33, 1
      %p517 = pneg %p54
      %p518 = pneg %p51
      %p519 = pneg %p75
      %p520 = pneg %p72
      %p521 = pneg %p96
      %p522 = pneg %p93
      %p523 = pneg %p117
      %p524 = pneg %p114
      %p525 = pneg %p138
      %p526 = pneg %p135
      %p527 = pneg %p159
      %p528 = pneg %p156
      %p529 = pneg %p180
      %p530 = pneg %p177
      %p531 = pneg %p201
      %p532 = pneg %p198
      %p533 = pneg %p222
      %p534 = pneg %p219
      %p535 = pneg %p243
      %p536 = pneg %p240
      %p537 = pneg %p264
      %p538 = pneg %p261
      %p539 = pneg %p285
      %p540 = pneg %p282
      %p541 = pneg %p306
      %p542 = pneg %p303
      %p543 = pneg %p327
      %p544 = pneg %p324
      %p545 = pneg %p348
      %p546 = pneg %p345
      %p547 = pneg %p369
      %p548 = pneg %p366
      %p549 = pneg %p390
      %p550 = pneg %p387
      %p551 = pneg %p411
      %p552 = pneg %p408
      %p553 = pneg %p437
      %p554 = pneg %p434
      %p555 = scmp.lt.s32.totalorder %s38, 4
      %s556 = scalar_select %p555, %s38, 4
      %s557 = smul.addr %s556, 8
      %s558 = scalar_lea.vmem %s19, %s557
      %p559 = scmp.lt.s32.totalorder %s38, 4
      %s560 = scalar_select %p559, %s38, 4
      %s561 = smul.addr %s560, 8
      %s562 = scalar_lea.vmem %s19, %s561
      %p563 = scmp.eq.s32.totalorder %s38, 0
      // Predicated region
      $region93: #{seq2seq_forward.5} parent=91 // pred_check
        %p564 = pneg %p563
      $region94: #{seq2seq_forward.5} parent=91 // pred_check_branch
        %566 = sbr.rel (%p564) target = $region96
      $region95: #{seq2seq_forward.5} parent=91 // pred_region
        %v567 = vld [vmem:[%s13] sm:$0xff]
        %v568 = vld [vmem:[%s15] sm:$0xff]
        %v569 = vld [vmem:[%s15 + $0x8] sm:$0xff]
        %v570 = vld [vmem:[%s15 + $0x10] sm:$0xff]
        %v571 = vld [vmem:[%s15 + $0x18] sm:$0xff]
        %v572 = vld [vmem:[%s16] sm:$0x1]
        %v574 = vlaneseq
        %v575 = vshrl.u32 %v574, 7
        %v576 = vsub.s32 0, %v575
        %v577 = vrot.slane %v572, %v576
        %vm579 = vcmask 261120
        %v581 = vsel %vm579, %v567, 0
        %583 = vmatprep.subr.mxu0 0.0
        %584 = vmatpush1.msra.mxu0 %v568
        %585 = vmatprep.subr.mxu0 0.0
        %586 = vmatpush1.msra.mxu0 %v569
        %587 = vmatprep.subr.mxu0 0.0
        %588 = vmatpush1.msra.mxu0 %v570
        %589 = vmatprep.subr.mxu0 0.0
        %590 = vmatpush1.msra.mxu0 %v571
        %591 = vmatprep.subr.mxu0 0.0
        %592 = vmatpush1.msra.mxu0 0.0
        %593 = vmatprep.subr.mxu0 0.0
        %594 = vmatpush1.msra.mxu0 0.0
        %595 = vmatprep.subr.mxu0 0.0
        %596 = vmatpush1.msra.mxu0 0.0
        %597 = vmatprep.subr.mxu0 0.0
        %598 = vmatpush1.msra.mxu0 0.0
        %599 = vmatprep.subr.mxu0 0.0
        %600 = vmatpush1.msra.mxu0 0.0
        %601 = vmatprep.subr.mxu0 0.0
        %602 = vmatpush1.msra.mxu0 0.0
        %603 = vmatprep.subr.mxu0 0.0
        %604 = vmatpush1.msra.mxu0 0.0
        %605 = vmatprep.subr.mxu0 0.0
        %606 = vmatpush1.msra.mxu0 0.0
        %607 = vmatprep.subr.mxu0 0.0
        %608 = vmatpush1.msra.mxu0 0.0
        %609 = vmatprep.subr.mxu0 0.0
        %610 = vmatpush1.msra.mxu0 0.0
        %611 = vmatprep.subr.mxu0 0.0
        %612 = vmatpush1.msra.mxu0 0.0
        %613 = vmatprep.subr.mxu0 0.0
        %614 = vmatpush1.msra.mxu0 0.0
        %615 = vmatprep.subr.mxu0 0.0
        %616 = vmatpush1.msra.mxu0 0.0
        %617 = vmatprep.subr.mxu0 0.0
        %618 = vmatpush1.msra.mxu0 0.0
        %619 = vmatprep.subr.mxu0 0.0
        %620 = vmatpush1.msra.mxu0 0.0
        %621 = vmatprep.subr.mxu0 0.0
        %622 = vmatpush1.msra.mxu0 0.0
        %623 = vmatprep.subr.mxu0 0.0
        %624 = vmatpush1.msra.mxu0 0.0
        %625 = vmatprep.subr.mxu0 0.0
        %626 = vmatpush1.msra.mxu0 0.0
        %627 = vmatprep.subr.mxu0 0.0
        %628 = vmatpush1.msra.mxu0 0.0
        %629 = vmatprep.subr.mxu0 0.0
        %630 = vmatpush1.msra.mxu0 0.0
        %631 = vmatprep.subr.mxu0 0.0
        %632 = vmatpush1.msra.mxu0 0.0
        %633 = vmatprep.subr.mxu0 0.0
        %634 = vmatpush1.msra.mxu0 0.0
        %635 = vmatprep.subr.mxu0 0.0
        %636 = vmatpush1.msra.mxu0 0.0
        %637 = vmatprep.subr.mxu0 0.0
        %638 = vmatpush1.msra.mxu0 0.0
        %639 = vmatprep.subr.mxu0 0.0
        %640 = vmatpush1.msra.mxu0 0.0
        %641 = vmatprep.subr.mxu0 0.0
        %642 = vmatpush1.msra.mxu0 0.0
        %643 = vmatprep.subr.mxu0 0.0
        %644 = vmatpush1.msra.mxu0 0.0
        %645 = vmatprep.subr.mxu0 0.0
        %646 = vmatpush1.msra.mxu0 0.0
        %647 = vmatprep.mubr.f32.mxu0 0.0
        %648 = vmatmul.mubr.f32.gmra.mrb[0].mxu0 %v581
        %v649 = vpop.f32.mrb[0].mxu0
        %v650 = vadd.f32 %v577, %v649
        %v651 = vpop.f32.mrb[0].mxu0
        %652 = vdwg.mxu0
        %vm653 = vcmask 130048
        %654 = vst.msk [vmem:[#allocation2] sm:$0xff] %vm653, %v650
        %v655 = vld [vmem:[%s14] sm:$0xff]
        %v656 = vld [vmem:[%s17] sm:$0xff]
        %v657 = vld [vmem:[%s17 + $0x8] sm:$0xff]
        %v658 = vld [vmem:[%s17 + $0x10] sm:$0xff]
        %v659 = vld [vmem:[%s17 + $0x18] sm:$0xff]
        %v660 = vld [vmem:[%s18] sm:$0x1]
        %v662 = vlaneseq
        %v663 = vshrl.u32 %v662, 7
        %v664 = vsub.s32 0, %v663
        %v665 = vrot.slane %v660, %v664
        %v668 = vsel %vm579, %v655, 0
        %670 = vmatprep.subr.mxu0 0.0
        %671 = vmatpush1.msra.mxu0 %v656
        %672 = vmatprep.subr.mxu0 0.0
        %673 = vmatpush1.msra.mxu0 %v657
        %674 = vmatprep.subr.mxu0 0.0
        %675 = vmatpush1.msra.mxu0 %v658
        %676 = vmatprep.subr.mxu0 0.0
        %677 = vmatpush1.msra.mxu0 %v659
        %678 = vmatprep.subr.mxu0 0.0
        %679 = vmatpush1.msra.mxu0 0.0
        %680 = vmatprep.subr.mxu0 0.0
        %681 = vmatpush1.msra.mxu0 0.0
        %682 = vmatprep.subr.mxu0 0.0
        %683 = vmatpush1.msra.mxu0 0.0
        %684 = vmatprep.subr.mxu0 0.0
        %685 = vmatpush1.msra.mxu0 0.0
        %686 = vmatprep.subr.mxu0 0.0
        %687 = vmatpush1.msra.mxu0 0.0
        %688 = vmatprep.subr.mxu0 0.0
        %689 = vmatpush1.msra.mxu0 0.0
        %690 = vmatprep.subr.mxu0 0.0
        %691 = vmatpush1.msra.mxu0 0.0
        %692 = vmatprep.subr.mxu0 0.0
        %693 = vmatpush1.msra.mxu0 0.0
        %694 = vmatprep.subr.mxu0 0.0
        %695 = vmatpush1.msra.mxu0 0.0
        %696 = vmatprep.subr.mxu0 0.0
        %697 = vmatpush1.msra.mxu0 0.0
        %698 = vmatprep.subr.mxu0 0.0
        %699 = vmatpush1.msra.mxu0 0.0
        %700 = vmatprep.subr.mxu0 0.0
        %701 = vmatpush1.msra.mxu0 0.0
        %702 = vmatprep.subr.mxu0 0.0
        %703 = vmatpush1.msra.mxu0 0.0
        %704 = vmatprep.subr.mxu0 0.0
        %705 = vmatpush1.msra.mxu0 0.0
        %706 = vmatprep.subr.mxu0 0.0
        %707 = vmatpush1.msra.mxu0 0.0
        %708 = vmatprep.subr.mxu0 0.0
        %709 = vmatpush1.msra.mxu0 0.0
        %710 = vmatprep.subr.mxu0 0.0
        %711 = vmatpush1.msra.mxu0 0.0
        %712 = vmatprep.subr.mxu0 0.0
        %713 = vmatpush1.msra.mxu0 0.0
        %714 = vmatprep.subr.mxu0 0.0
        %715 = vmatpush1.msra.mxu0 0.0
        %716 = vmatprep.subr.mxu0 0.0
        %717 = vmatpush1.msra.mxu0 0.0
        %718 = vmatprep.subr.mxu0 0.0
        %719 = vmatpush1.msra.mxu0 0.0
        %720 = vmatprep.subr.mxu0 0.0
        %721 = vmatpush1.msra.mxu0 0.0
        %722 = vmatprep.subr.mxu0 0.0
        %723 = vmatpush1.msra.mxu0 0.0
        %724 = vmatprep.subr.mxu0 0.0
        %725 = vmatpush1.msra.mxu0 0.0
        %726 = vmatprep.subr.mxu0 0.0
        %727 = vmatpush1.msra.mxu0 0.0
        %728 = vmatprep.subr.mxu0 0.0
        %729 = vmatpush1.msra.mxu0 0.0
        %730 = vmatprep.subr.mxu0 0.0
        %731 = vmatpush1.msra.mxu0 0.0
        %732 = vmatprep.subr.mxu0 0.0
        %733 = vmatpush1.msra.mxu0 0.0
        %734 = vmatprep.mubr.f32.mxu0 0.0
        %735 = vmatmul.mubr.f32.gmra.mrb[0].mxu0 %v668
        %v736 = vpop.f32.mrb[0].mxu0
        %v737 = vadd.f32 %v665, %v736
        %v738 = vpop.f32.mrb[0].mxu0
        %739 = vdwg.mxu0
        %740 = vst.msk [vmem:[#allocation3] sm:$0xff] %vm653, %v737
        %v741 = vld [vmem:[%s1] sm:$0xff]
        %742 = vst.msk [vmem:[#allocation4] sm:$0xff] %vm579, %v741
      $region96: #{seq2seq_forward.5} parent=91 // pred_fallthru
        _
      %v743 = vld [vmem:[#allocation2] sm:$0xff]
      %v744 = vld [vmem:[#allocation3] sm:$0xff]
      %v745 = vld [vmem:[#allocation4] sm:$0xff]
      %v746 = vld [vmem:[%s4] sm:$0xff]
      %v747 = vld [vmem:[%s4 + $0x8] sm:$0xff]
      %v748 = vld [vmem:[%s4 + $0x10] sm:$0xff]
      %v749 = vld [vmem:[%s4 + $0x18] sm:$0xff]
      %vm750 = vcmask 261120
      %v752 = vsel %vm750, %v745, 0
      %754 = vmatprep.subr.mxu0 0.0
      %755 = vmatpush1.msra.mxu0 %v746
      %756 = vmatprep.subr.mxu0 0.0
      %757 = vmatpush1.msra.mxu0 %v747
      %758 = vmatprep.subr.mxu0 0.0
      %759 = vmatpush1.msra.mxu0 %v748
      %760 = vmatprep.subr.mxu0 0.0
      %761 = vmatpush1.msra.mxu0 %v749
      %762 = vmatprep.subr.mxu0 0.0
      %763 = vmatpush1.msra.mxu0 0.0
      %764 = vmatprep.subr.mxu0 0.0
      %765 = vmatpush1.msra.mxu0 0.0
      %766 = vmatprep.subr.mxu0 0.0
      %767 = vmatpush1.msra.mxu0 0.0
      %768 = vmatprep.subr.mxu0 0.0
      %769 = vmatpush1.msra.mxu0 0.0
      %770 = vmatprep.subr.mxu0 0.0
      %771 = vmatpush1.msra.mxu0 0.0
      %772 = vmatprep.subr.mxu0 0.0
      %773 = vmatpush1.msra.mxu0 0.0
      %774 = vmatprep.subr.mxu0 0.0
      %775 = vmatpush1.msra.mxu0 0.0
      %776 = vmatprep.subr.mxu0 0.0
      %777 = vmatpush1.msra.mxu0 0.0
      %778 = vmatprep.subr.mxu0 0.0
      %779 = vmatpush1.msra.mxu0 0.0
      %780 = vmatprep.subr.mxu0 0.0
      %781 = vmatpush1.msra.mxu0 0.0
      %782 = vmatprep.subr.mxu0 0.0
      %783 = vmatpush1.msra.mxu0 0.0
      %784 = vmatprep.subr.mxu0 0.0
      %785 = vmatpush1.msra.mxu0 0.0
      %786 = vmatprep.subr.mxu0 0.0
      %787 = vmatpush1.msra.mxu0 0.0
      %788 = vmatprep.subr.mxu0 0.0
      %789 = vmatpush1.msra.mxu0 0.0
      %790 = vmatprep.subr.mxu0 0.0
      %791 = vmatpush1.msra.mxu0 0.0
      %792 = vmatprep.subr.mxu0 0.0
      %793 = vmatpush1.msra.mxu0 0.0
      %794 = vmatprep.subr.mxu0 0.0
      %795 = vmatpush1.msra.mxu0 0.0
      %796 = vmatprep.subr.mxu0 0.0
      %797 = vmatpush1.msra.mxu0 0.0
      %798 = vmatprep.subr.mxu0 0.0
      %799 = vmatpush1.msra.mxu0 0.0
      %800 = vmatprep.subr.mxu0 0.0
      %801 = vmatpush1.msra.mxu0 0.0
      %802 = vmatprep.subr.mxu0 0.0
      %803 = vmatpush1.msra.mxu0 0.0
      %804 = vmatprep.subr.mxu0 0.0
      %805 = vmatpush1.msra.mxu0 0.0
      %806 = vmatprep.subr.mxu0 0.0
      %807 = vmatpush1.msra.mxu0 0.0
      %808 = vmatprep.subr.mxu0 0.0
      %809 = vmatpush1.msra.mxu0 0.0
      %810 = vmatprep.subr.mxu0 0.0
      %811 = vmatpush1.msra.mxu0 0.0
      %812 = vmatprep.subr.mxu0 0.0
      %813 = vmatpush1.msra.mxu0 0.0
      %814 = vmatprep.subr.mxu0 0.0
      %815 = vmatpush1.msra.mxu0 0.0
      %816 = vmatprep.subr.mxu0 0.0
      %817 = vmatpush1.msra.mxu0 0.0
      %818 = vmatprep.mubr.f32.mxu0 0.0
      %819 = vmatmul.mubr.f32.gmra.mrb[0].mxu0 %v752
      %v820 = vpop.f32.mrb[0].mxu0
      %v821 = vadd.f32 0.0, %v820
      %v822 = vpop.f32.mrb[0].mxu0
      %823 = vdwg.mxu0
      %v824 = vld [vmem:[%s5] sm:$0xff]
      %v825 = vld [vmem:[%s5 + $0x8] sm:$0xff]
      %vm826 = vcmask 130048
      %v828 = vsel %vm826, %v743, 0
      %830 = vmatprep.subr.mxu0 0.0
      %831 = vmatpush1.msra.mxu0 %v824
      %832 = vmatprep.subr.mxu0 0.0
      %833 = vmatpush1.msra.mxu0 %v825
      %834 = vmatprep.subr.mxu0 0.0
      %835 = vmatpush1.msra.mxu0 0.0
      %836 = vmatprep.subr.mxu0 0.0
      %837 = vmatpush1.msra.mxu0 0.0
      %838 = vmatprep.subr.mxu0 0.0
      %839 = vmatpush1.msra.mxu0 0.0
      %840 = vmatprep.subr.mxu0 0.0
      %841 = vmatpush1.msra.mxu0 0.0
      %842 = vmatprep.subr.mxu0 0.0
      %843 = vmatpush1.msra.mxu0 0.0
      %844 = vmatprep.subr.mxu0 0.0
      %845 = vmatpush1.msra.mxu0 0.0
      %846 = vmatprep.subr.mxu0 0.0
      %847 = vmatpush1.msra.mxu0 0.0
      %848 = vmatprep.subr.mxu0 0.0
      %849 = vmatpush1.msra.mxu0 0.0
      %850 = vmatprep.subr.mxu0 0.0
      %851 = vmatpush1.msra.mxu0 0.0
      %852 = vmatprep.subr.mxu0 0.0
      %853 = vmatpush1.msra.mxu0 0.0
      %854 = vmatprep.subr.mxu0 0.0
      %855 = vmatpush1.msra.mxu0 0.0
      %856 = vmatprep.subr.mxu0 0.0
      %857 = vmatpush1.msra.mxu0 0.0
      %858 = vmatprep.subr.mxu0 0.0
      %859 = vmatpush1.msra.mxu0 0.0
      %860 = vmatprep.subr.mxu0 0.0
      %861 = vmatpush1.msra.mxu0 0.0
      %862 = vmatprep.subr.mxu0 0.0
      %863 = vmatpush1.msra.mxu0 0.0
      %864 = vmatprep.subr.mxu0 0.0
      %865 = vmatpush1.msra.mxu0 0.0
      %866 = vmatprep.subr.mxu0 0.0
      %867 = vmatpush1.msra.mxu0 0.0
      %868 = vmatprep.subr.mxu0 0.0
      %869 = vmatpush1.msra.mxu0 0.0
      %870 = vmatprep.subr.mxu0 0.0
      %871 = vmatpush1.msra.mxu0 0.0
      %872 = vmatprep.subr.mxu0 0.0
      %873 = vmatpush1.msra.mxu0 0.0
      %874 = vmatprep.subr.mxu0 0.0
      %875 = vmatpush1.msra.mxu0 0.0
      %876 = vmatprep.subr.mxu0 0.0
      %877 = vmatpush1.msra.mxu0 0.0
      %878 = vmatprep.subr.mxu0 0.0
      %879 = vmatpush1.msra.mxu0 0.0
      %880 = vmatprep.subr.mxu0 0.0
      %881 = vmatpush1.msra.mxu0 0.0
      %882 = vmatprep.subr.mxu0 0.0
      %883 = vmatpush1.msra.mxu0 0.0
      %884 = vmatprep.subr.mxu0 0.0
      %885 = vmatpush1.msra.mxu0 0.0
      %886 = vmatprep.subr.mxu0 0.0
      %887 = vmatpush1.msra.mxu0 0.0
      %888 = vmatprep.subr.mxu0 0.0
      %889 = vmatpush1.msra.mxu0 0.0
      %890 = vmatprep.subr.mxu0 0.0
      %891 = vmatpush1.msra.mxu0 0.0
      %892 = vmatprep.subr.mxu0 0.0
      %893 = vmatpush1.msra.mxu0 0.0
      %894 = vmatprep.mubr.f32.mxu0 0.0
      %895 = vmatmul.mubr.f32.gmra.mrb[0].mxu0 %v828
      %v896 = vpop.f32.mrb[0].mxu0
      %v897 = vadd.f32 0.0, %v896
      %v898 = vpop.f32.mrb[0].mxu0
      %899 = vdwg.mxu0
      %v900 = vld [vmem:[%s3] sm:$0xff]
      %v901 = vld [vmem:[%s3 + $0x8] sm:$0xff]
      %v902 = vld [vmem:[%s3 + $0x10] sm:$0xff]
      %v903 = vld [vmem:[%s3 + $0x18] sm:$0xff]
      %v904 = vld [vmem:[%s3 + $0x20] sm:$0xff]
      %v905 = vld [vmem:[%s3 + $0x28] sm:$0xff]
      %v906 = vld [vmem:[%s3 + $0x30] sm:$0xff]
      %v907 = vld [vmem:[%s3 + $0x38] sm:$0xff]
      %v908 = vadd.f32 %v900, %v897
      %v909 = vadd.f32 %v901, %v897
      %v910 = vadd.f32 %v902, %v897
      %v911 = vadd.f32 %v903, %v897
      %v912 = vadd.f32 %v904, %v897
      %v913 = vadd.f32 %v905, %v897
      %v914 = vadd.f32 %v906, %v897
      %v915 = vadd.f32 %v907, %v897
      %v916 = vld [vmem:[#allocation7] sm:$0x1]
      %v918 = vlaneseq
      %v919 = vshrl.u32 %v918, 7
      %v920 = vsub.s32 0, %v919
      %v921 = vrot.slane %v916, %v920
      %v923 = vadd.f32 %v908, %v921
      %v924 = vadd.f32 %v909, %v921
      %v925 = vadd.f32 %v910, %v921
      %v926 = vadd.f32 %v911, %v921
      %v927 = vadd.f32 %v912, %v921
      %v928 = vadd.f32 %v913, %v921
      %v929 = vadd.f32 %v914, %v921
      %v930 = vadd.f32 %v915, %v921
      %v931 = vmax.f32 %v923, 0.0
      %v932 = vmax.f32 %v924, 0.0
      %v933 = vmax.f32 %v925, 0.0
      %v934 = vmax.f32 %v926, 0.0
      %v935 = vmax.f32 %v927, 0.0
      %v936 = vmax.f32 %v928, 0.0
      %v937 = vmax.f32 %v929, 0.0
      %v938 = vmax.f32 %v930, 0.0
      %vm939 = vcmask 7168
      %v940 = vsel %vm939, %v931, -inf
      %v941 = vsel %vm939, %v932, -inf
      %v942 = vsel %vm939, %v933, -inf
      %v943 = vsel %vm939, %v934, -inf
      %v944 = vsel %vm939, %v935, -inf
      %v945 = vmax.f32 %v940, %v944
      %v946 = vsel %vm939, %v936, -inf
      %v947 = vmax.f32 %v941, %v946
      %v948 = vsel %vm939, %v937, -inf
      %v949 = vmax.f32 %v942, %v948
      %v950 = vsel %vm939, %v938, -inf
      %v951 = vmax.f32 %v943, %v950
      %v952 = vmax.f32 %v945, %v947
      %v953 = vmax.f32 %v949, %v951
      %v954 = vmax.f32 %v952, %v953
      %v955 = vsub.f32 %v931, %v954
      %v956 = vsub.f32 %v932, %v954
      %v957 = vsub.f32 %v933, %v954
      %v958 = vsub.f32 %v934, %v954
      %v959 = vsub.f32 %v935, %v954
      %v960 = vsub.f32 %v936, %v954
      %v961 = vsub.f32 %v937, %v954
      %v962 = vsub.f32 %v938, %v954
      %v963 = vmul.f32 %v955, 1.442695
      %v964 = vpow.pop %v963
      %v965 = vmul.f32 %v956, 1.442695
      %v966 = vpow.pop %v965
      %v967 = vmul.f32 %v957, 1.442695
      %v968 = vpow.pop %v967
      %v969 = vmul.f32 %v958, 1.442695
      %v970 = vpow.pop %v969
      %v971 = vmul.f32 %v959, 1.442695
      %v972 = vpow.pop %v971
      %v973 = vmul.f32 %v960, 1.442695
      %v974 = vpow.pop %v973
      %v975 = vmul.f32 %v961, 1.442695
      %v976 = vpow.pop %v975
      %v977 = vmul.f32 %v962, 1.442695
      %v978 = vpow.pop %v977
      %v979 = vsel %vm939, %v964, 0.0
      %v980 = vsel %vm939, %v966, 0.0
      %v981 = vadd.f32 %v979, %v980
      %v982 = vsel %vm939, %v968, 0.0
      %v983 = vadd.f32 %v981, %v982
      %v984 = vsel %vm939, %v970, 0.0
      %v985 = vadd.f32 %v983, %v984
      %v986 = vsel %vm939, %v972, 0.0
      %v987 = vadd.f32 %v985, %v986
      %v988 = vsel %vm939, %v974, 0.0
      %v989 = vadd.f32 %v987, %v988
      %v990 = vsel %vm939, %v976, 0.0
      %v991 = vadd.f32 %v989, %v990
      %v992 = vsel %vm939, %v978, 0.0
      %v993 = vadd.f32 %v991, %v992
      %v994 = vrcp.pop %v993
      %v995 = vmul.f32 %v964, %v994
      %v996 = vmul.f32 %v966, %v994
      %v997 = vmul.f32 %v968, %v994
      %v998 = vmul.f32 %v970, %v994
      %v999 = vmul.f32 %v972, %v994
      %v1000 = vmul.f32 %v974, %v994
      %v1001 = vmul.f32 %v976, %v994
      %v1002 = vmul.f32 %v978, %v994
      %v1003 = vld [vmem:[%s2] sm:$0xff]
      %v1004 = vld [vmem:[%s2 + $0x8] sm:$0xff]
      %v1005 = vld [vmem:[%s2 + $0x10] sm:$0xff]
      %v1006 = vld [vmem:[%s2 + $0x18] sm:$0xff]
      %v1007 = vld [vmem:[%s2 + $0x20] sm:$0xff]
      %v1008 = vld [vmem:[%s2 + $0x28] sm:$0xff]
      %v1009 = vld [vmem:[%s2 + $0x30] sm:$0xff]
      %v1010 = vld [vmem:[%s2 + $0x38] sm:$0xff]
      %1012 = vset.pattern.permute.xlu0 0
      %1013 = vperm.xlu0 %1012, %v995
      %v1014 = vpop.permute.xlu0 %1013
      %1017 = vset.pattern.permute.xlu0 0
      %1018 = vperm.xlu0 %1017, %v996
      %v1019 = vpop.permute.xlu0 %1018
      %1022 = vset.pattern.permute.xlu0 0
      %1023 = vperm.xlu0 %1022, %v997
      %v1024 = vpop.permute.xlu0 %1023
      %1027 = vset.pattern.permute.xlu0 0
      %1028 = vperm.xlu0 %1027, %v998
      %v1029 = vpop.permute.xlu0 %1028
      %1032 = vset.pattern.permute.xlu0 0
      %1033 = vperm.xlu0 %1032, %v999
      %v1034 = vpop.permute.xlu0 %1033
      %1037 = vset.pattern.permute.xlu0 0
      %1038 = vperm.xlu0 %1037, %v1000
      %v1039 = vpop.permute.xlu0 %1038
      %1042 = vset.pattern.permute.xlu0 0
      %1043 = vperm.xlu0 %1042, %v1001
      %v1044 = vpop.permute.xlu0 %1043
      %1047 = vset.pattern.permute.xlu0 0
      %1048 = vperm.xlu0 %1047, %v1002
      %v1049 = vpop.permute.xlu0 %1048
      %v1051 = vmul.f32 %v1014, %v1003
      %v1052 = vmul.f32 %v1019, %v1004
      %v1053 = vmul.f32 %v1024, %v1005
      %v1054 = vmul.f32 %v1029, %v1006
      %v1055 = vmul.f32 %v1034, %v1007
      %v1056 = vmul.f32 %v1039, %v1008
      %v1057 = vmul.f32 %v1044, %v1009
      %v1058 = vmul.f32 %v1049, %v1010
      %v1059 = vsel %vm750, %v1051, 0.0
      %v1060 = vsel %vm750, %v1052, 0.0
      %v1061 = vadd.f32 %v1059, %v1060
      %v1062 = vsel %vm750, %v1053, 0.0
      %v1063 = vadd.f32 %v1061, %v1062
      %v1064 = vsel %vm750, %v1054, 0.0
      %v1065 = vadd.f32 %v1063, %v1064
      %v1066 = vsel %vm750, %v1055, 0.0
      %v1067 = vadd.f32 %v1065, %v1066
      %v1068 = vsel %vm750, %v1056, 0.0
      %v1069 = vadd.f32 %v1067, %v1068
      %v1070 = vsel %vm750, %v1057, 0.0
      %v1071 = vadd.f32 %v1069, %v1070
      %v1072 = vsel %vm750, %v1058, 0.0
      %v1073 = vadd.f32 %v1071, %v1072
      %v1074 = vld [vmem:[%s7] sm:$0xff]
      %v1075 = vld [vmem:[%s7 + $0x8] sm:$0xff]
      %v1076 = vld [vmem:[%s7 + $0x10] sm:$0xff]
      %v1077 = vld [vmem:[%s7 + $0x18] sm:$0xff]
      %v1078 = vld [vmem:[%s8] sm:$0xff]
      %v1079 = vld [vmem:[%s8 + $0x8] sm:$0xff]
      %v1081 = vsel %vm826, %v821, 0
      %1083 = vmatprep.subr.mxu0 0.0
      %1084 = vmatpush1.msra.mxu0 %v1078
      %1085 = vmatprep.subr.mxu0 0.0
      %1086 = vmatpush1.msra.mxu0 %v1079
      %1087 = vmatprep.subr.mxu0 0.0
      %1088 = vmatpush1.msra.mxu0 0.0
      %1089 = vmatprep.subr.mxu0 0.0
      %1090 = vmatpush1.msra.mxu0 0.0
      %1091 = vmatprep.subr.mxu0 0.0
      %1092 = vmatpush1.msra.mxu0 0.0
      %1093 = vmatprep.subr.mxu0 0.0
      %1094 = vmatpush1.msra.mxu0 0.0
      %1095 = vmatprep.subr.mxu0 0.0
      %1096 = vmatpush1.msra.mxu0 0.0
      %1097 = vmatprep.subr.mxu0 0.0
      %1098 = vmatpush1.msra.mxu0 0.0
      %1099 = vmatprep.subr.mxu0 0.0
      %1100 = vmatpush1.msra.mxu0 0.0
      %1101 = vmatprep.subr.mxu0 0.0
      %1102 = vmatpush1.msra.mxu0 0.0
      %1103 = vmatprep.subr.mxu0 0.0
      %1104 = vmatpush1.msra.mxu0 0.0
      %1105 = vmatprep.subr.mxu0 0.0
      %1106 = vmatpush1.msra.mxu0 0.0
      %1107 = vmatprep.subr.mxu0 0.0
      %1108 = vmatpush1.msra.mxu0 0.0
      %1109 = vmatprep.subr.mxu0 0.0
      %1110 = vmatpush1.msra.mxu0 0.0
      %1111 = vmatprep.subr.mxu0 0.0
      %1112 = vmatpush1.msra.mxu0 0.0
      %1113 = vmatprep.subr.mxu0 0.0
      %1114 = vmatpush1.msra.mxu0 0.0
      %1115 = vmatprep.subr.mxu0 0.0
      %1116 = vmatpush1.msra.mxu0 0.0
      %1117 = vmatprep.subr.mxu0 0.0
      %1118 = vmatpush1.msra.mxu0 0.0
      %1119 = vmatprep.subr.mxu0 0.0
      %1120 = vmatpush1.msra.mxu0 0.0
      %1121 = vmatprep.subr.mxu0 0.0
      %1122 = vmatpush1.msra.mxu0 0.0
      %1123 = vmatprep.subr.mxu0 0.0
      %1124 = vmatpush1.msra.mxu0 0.0
      %1125 = vmatprep.subr.mxu0 0.0
      %1126 = vmatpush1.msra.mxu0 0.0
      %1127 = vmatprep.subr.mxu0 0.0
      %1128 = vmatpush1.msra.mxu0 0.0
      %1129 = vmatprep.subr.mxu0 0.0
      %1130 = vmatpush1.msra.mxu0 0.0
      %1131 = vmatprep.subr.mxu0 0.0
      %1132 = vmatpush1.msra.mxu0 0.0
      %1133 = vmatprep.subr.mxu0 0.0
      %1134 = vmatpush1.msra.mxu0 0.0
      %1135 = vmatprep.subr.mxu0 0.0
      %1136 = vmatpush1.msra.mxu0 0.0
      %1137 = vmatprep.subr.mxu0 0.0
      %1138 = vmatpush1.msra.mxu0 0.0
      %1139 = vmatprep.subr.mxu0 0.0
      %1140 = vmatpush1.msra.mxu0 0.0
      %1141 = vmatprep.subr.mxu0 0.0
      %1142 = vmatpush1.msra.mxu0 0.0
      %1143 = vmatprep.subr.mxu0 0.0
      %1144 = vmatpush1.msra.mxu0 0.0
      %1145 = vmatprep.subr.mxu0 0.0
      %1146 = vmatpush1.msra.mxu0 0.0
      %1147 = vmatprep.mubr.f32.mxu0 0.0
      %1148 = vmatmul.mubr.f32.gmra.mrb[0].mxu0 %v1081
      %v1149 = vpop.f32.mrb[0].mxu0
      %v1150 = vadd.f32 0.0, %v1149
      %v1151 = vpop.f32.mrb[0].mxu0
      %1152 = vdwg.mxu0
      %v1154 = vsel %vm750, %v1073, 0
      %1156 = vmatprep.subr.mxu0 0.0
      %1157 = vmatpush1.msra.mxu0 %v1074
      %1158 = vmatprep.subr.mxu0 0.0
      %1159 = vmatpush1.msra.mxu0 %v1075
      %1160 = vmatprep.subr.mxu0 0.0
      %1161 = vmatpush1.msra.mxu0 %v1076
      %1162 = vmatprep.subr.mxu0 0.0
      %1163 = vmatpush1.msra.mxu0 %v1077
      %1164 = vmatprep.subr.mxu0 0.0
      %1165 = vmatpush1.msra.mxu0 0.0
      %1166 = vmatprep.subr.mxu0 0.0
      %1167 = vmatpush1.msra.mxu0 0.0
      %1168 = vmatprep.subr.mxu0 0.0
      %1169 = vmatpush1.msra.mxu0 0.0
      %1170 = vmatprep.subr.mxu0 0.0
      %1171 = vmatpush1.msra.mxu0 0.0
      %1172 = vmatprep.subr.mxu0 0.0
      %1173 = vmatpush1.msra.mxu0 0.0
      %1174 = vmatprep.subr.mxu0 0.0
      %1175 = vmatpush1.msra.mxu0 0.0
      %1176 = vmatprep.subr.mxu0 0.0
      %1177 = vmatpush1.msra.mxu0 0.0
      %1178 = vmatprep.subr.mxu0 0.0
      %1179 = vmatpush1.msra.mxu0 0.0
      %1180 = vmatprep.subr.mxu0 0.0
      %1181 = vmatpush1.msra.mxu0 0.0
      %1182 = vmatprep.subr.mxu0 0.0
      %1183 = vmatpush1.msra.mxu0 0.0
      %1184 = vmatprep.subr.mxu0 0.0
      %1185 = vmatpush1.msra.mxu0 0.0
      %1186 = vmatprep.subr.mxu0 0.0
      %1187 = vmatpush1.msra.mxu0 0.0
      %1188 = vmatprep.subr.mxu0 0.0
      %1189 = vmatpush1.msra.mxu0 0.0
      %1190 = vmatprep.subr.mxu0 0.0
      %1191 = vmatpush1.msra.mxu0 0.0
      %1192 = vmatprep.subr.mxu0 0.0
      %1193 = vmatpush1.msra.mxu0 0.0
      %1194 = vmatprep.subr.mxu0 0.0
      %1195 = vmatpush1.msra.mxu0 0.0
      %1196 = vmatprep.subr.mxu0 0.0
      %1197 = vmatpush1.msra.mxu0 0.0
      %1198 = vmatprep.subr.mxu0 0.0
      %1199 = vmatpush1.msra.mxu0 0.0
      %1200 = vmatprep.subr.mxu0 0.0
      %1201 = vmatpush1.msra.mxu0 0.0
      %1202 = vmatprep.subr.mxu0 0.0
      %1203 = vmatpush1.msra.mxu0 0.0
      %1204 = vmatprep.subr.mxu0 0.0
      %1205 = vmatpush1.msra.mxu0 0.0
      %1206 = vmatprep.subr.mxu0 0.0
      %1207 = vmatpush1.msra.mxu0 0.0
      %1208 = vmatprep.subr.mxu0 0.0
      %1209 = vmatpush1.msra.mxu0 0.0
      %1210 = vmatprep.subr.mxu0 0.0
      %1211 = vmatpush1.msra.mxu0 0.0
      %1212 = vmatprep.subr.mxu0 0.0
      %1213 = vmatpush1.msra.mxu0 0.0
      %1214 = vmatprep.subr.mxu0 0.0
      %1215 = vmatpush1.msra.mxu0 0.0
      %1216 = vmatprep.subr.mxu0 0.0
      %1217 = vmatpush1.msra.mxu0 0.0
      %1218 = vmatprep.subr.mxu0 0.0
      %1219 = vmatpush1.msra.mxu0 0.0
      %1220 = vmatprep.mubr.f32.mxu0 0.0
      %1221 = vmatmul.mubr.f32.gmra.mrb[0].mxu0 %v1154
      %v1222 = vpop.f32.mrb[0].mxu0
      %v1223 = vadd.f32 %v1150, %v1222
      %v1224 = vpop.f32.mrb[0].mxu0
      %1225 = vdwg.mxu0
      %v1226 = vld [vmem:[%s9] sm:$0xff]
      %v1227 = vld [vmem:[%s9 + $0x8] sm:$0xff]
      %1228 = vmatprep.subr.mxu0 0.0
      %1229 = vmatpush1.msra.mxu0 %v1226
      %1230 = vmatprep.subr.mxu0 0.0
      %1231 = vmatpush1.msra.mxu0 %v1227
      %1232 = vmatprep.subr.mxu0 0.0
      %1233 = vmatpush1.msra.mxu0 0.0
      %1234 = vmatprep.subr.mxu0 0.0
      %1235 = vmatpush1.msra.mxu0 0.0
      %1236 = vmatprep.subr.mxu0 0.0
      %1237 = vmatpush1.msra.mxu0 0.0
      %1238 = vmatprep.subr.mxu0 0.0
      %1239 = vmatpush1.msra.mxu0 0.0
      %1240 = vmatprep.subr.mxu0 0.0
      %1241 = vmatpush1.msra.mxu0 0.0
      %1242 = vmatprep.subr.mxu0 0.0
      %1243 = vmatpush1.msra.mxu0 0.0
      %1244 = vmatprep.subr.mxu0 0.0
      %1245 = vmatpush1.msra.mxu0 0.0
      %1246 = vmatprep.subr.mxu0 0.0
      %1247 = vmatpush1.msra.mxu0 0.0
      %1248 = vmatprep.subr.mxu0 0.0
      %1249 = vmatpush1.msra.mxu0 0.0
      %1250 = vmatprep.subr.mxu0 0.0
      %1251 = vmatpush1.msra.mxu0 0.0
      %1252 = vmatprep.subr.mxu0 0.0
      %1253 = vmatpush1.msra.mxu0 0.0
      %1254 = vmatprep.subr.mxu0 0.0
      %1255 = vmatpush1.msra.mxu0 0.0
      %1256 = vmatprep.subr.mxu0 0.0
      %1257 = vmatpush1.msra.mxu0 0.0
      %1258 = vmatprep.subr.mxu0 0.0
      %1259 = vmatpush1.msra.mxu0 0.0
      %1260 = vmatprep.subr.mxu0 0.0
      %1261 = vmatpush1.msra.mxu0 0.0
      %1262 = vmatprep.subr.mxu0 0.0
      %1263 = vmatpush1.msra.mxu0 0.0
      %1264 = vmatprep.subr.mxu0 0.0
      %1265 = vmatpush1.msra.mxu0 0.0
      %1266 = vmatprep.subr.mxu0 0.0
      %1267 = vmatpush1.msra.mxu0 0.0
      %1268 = vmatprep.subr.mxu0 0.0
      %1269 = vmatpush1.msra.mxu0 0.0
      %1270 = vmatprep.subr.mxu0 0.0
      %1271 = vmatpush1.msra.mxu0 0.0
      %1272 = vmatprep.subr.mxu0 0.0
      %1273 = vmatpush1.msra.mxu0 0.0
      %1274 = vmatprep.subr.mxu0 0.0
      %1275 = vmatpush1.msra.mxu0 0.0
      %1276 = vmatprep.subr.mxu0 0.0
      %1277 = vmatpush1.msra.mxu0 0.0
      %1278 = vmatprep.subr.mxu0 0.0
      %1279 = vmatpush1.msra.mxu0 0.0
      %1280 = vmatprep.subr.mxu0 0.0
      %1281 = vmatpush1.msra.mxu0 0.0
      %1282 = vmatprep.subr.mxu0 0.0
      %1283 = vmatpush1.msra.mxu0 0.0
      %1284 = vmatprep.subr.mxu0 0.0
      %1285 = vmatpush1.msra.mxu0 0.0
      %1286 = vmatprep.subr.mxu0 0.0
      %1287 = vmatpush1.msra.mxu0 0.0
      %1288 = vmatprep.subr.mxu0 0.0
      %1289 = vmatpush1.msra.mxu0 0.0
      %1290 = vmatprep.subr.mxu0 0.0
      %1291 = vmatpush1.msra.mxu0 0.0
      %1292 = vmatprep.mubr.f32.mxu0 0.0
      %1293 = vmatmul.mubr.f32.gmra.mrb[0].mxu0 %v828
      %v1294 = vpop.f32.mrb[0].mxu0
      %v1295 = vadd.f32 0.0, %v1294
      %v1296 = vpop.f32.mrb[0].mxu0
      %1297 = vdwg.mxu0
      %v1298 = vadd.f32 %v1223, %v1295
      %v1299 = vld [vmem:[%s10] sm:$0x1]
      %v1301 = vlaneseq
      %v1302 = vshrl.u32 %v1301, 7
      %v1303 = vsub.s32 0, %v1302
      %v1304 = vrot.slane %v1299, %v1303
      %v1306 = vadd.f32 %v1298, %v1304
      %v1307 = vxor.u32 %v1306, 2147483648
      %v1308 = vmul.f32 %v1307, 1.442695
      %v1309 = vpow.pop %v1308
      %v1310 = vadd.f32 %v1309, 1.0
      %v1311 = vrcp.pop %v1310
      %v1312 = vmul.f32 1.0, %v1311
      %v1313 = vtanh.pop %v1306
      %1315 = vrot.lane.b32.xlu0 %v744, 16
      %v1316 = vpop.permute.xlu0 %1315
      %v1318 = vmul.f32 %v1312, %v1316
      %1320 = vrot.lane.b32.xlu0 %v1313, 96
      %v1321 = vpop.permute.xlu0 %1320
      %v1323 = vmul.f32 %v1312, %v1321
      %1325 = vrot.lane.b32.xlu0 %v1323, 16
      %v1326 = vpop.permute.xlu0 %1325
      %v1328 = vadd.f32 %v1318, %v1326
      %v1329 = vtanh.pop %v1328
      %1331 = vrot.lane.b32.xlu0 %v1329, 32
      %v1332 = vpop.permute.xlu0 %1331
      %v1334 = vmul.f32 %v1312, %v1332
      %1336 = vrot.lane.b32.xlu0 %v1334, 80
      %v1337 = vpop.permute.xlu0 %1336
      %1339 = vst.msk [vmem:[#allocation2] sm:$0xff] %vm826, %v1337
      %1341 = vrot.lane.b32.xlu0 %v1328, 112
      %v1342 = vpop.permute.xlu0 %1341
      %1344 = vst.msk [vmem:[#allocation3] sm:$0xff] %vm826, %v1342
      %v1345 = vld [vmem:[%s11] sm:$0xff]
      %v1346 = vld [vmem:[%s11 + $0x8] sm:$0xff]
      %v1347 = vld [vmem:[%s12] sm:$0x1]
      %v1349 = vlaneseq
      %v1350 = vshrl.u32 %v1349, 7
      %v1351 = vsub.s32 0, %v1350
      %v1352 = vrot.slane %v1347, %v1351
      %v1354 = vsel %vm826, %v1337, 0
      %1356 = vmatprep.subr.mxu0 0.0
      %1357 = vmatpush1.msra.mxu0 %v1345
      %1358 = vmatprep.subr.mxu0 0.0
      %1359 = vmatpush1.msra.mxu0 %v1346
      %1360 = vmatprep.subr.mxu0 0.0
      %1361 = vmatpush1.msra.mxu0 0.0
      %1362 = vmatprep.subr.mxu0 0.0
      %1363 = vmatpush1.msra.mxu0 0.0
      %1364 = vmatprep.subr.mxu0 0.0
      %1365 = vmatpush1.msra.mxu0 0.0
      %1366 = vmatprep.subr.mxu0 0.0
      %1367 = vmatpush1.msra.mxu0 0.0
      %1368 = vmatprep.subr.mxu0 0.0
      %1369 = vmatpush1.msra.mxu0 0.0
      %1370 = vmatprep.subr.mxu0 0.0
      %1371 = vmatpush1.msra.mxu0 0.0
      %1372 = vmatprep.subr.mxu0 0.0
      %1373 = vmatpush1.msra.mxu0 0.0
      %1374 = vmatprep.subr.mxu0 0.0
      %1375 = vmatpush1.msra.mxu0 0.0
      %1376 = vmatprep.subr.mxu0 0.0
      %1377 = vmatpush1.msra.mxu0 0.0
      %1378 = vmatprep.subr.mxu0 0.0
      %1379 = vmatpush1.msra.mxu0 0.0
      %1380 = vmatprep.subr.mxu0 0.0
      %1381 = vmatpush1.msra.mxu0 0.0
      %1382 = vmatprep.subr.mxu0 0.0
      %1383 = vmatpush1.msra.mxu0 0.0
      %1384 = vmatprep.subr.mxu0 0.0
      %1385 = vmatpush1.msra.mxu0 0.0
      %1386 = vmatprep.subr.mxu0 0.0
      %1387 = vmatpush1.msra.mxu0 0.0
      %1388 = vmatprep.subr.mxu0 0.0
      %1389 = vmatpush1.msra.mxu0 0.0
      %1390 = vmatprep.subr.mxu0 0.0
      %1391 = vmatpush1.msra.mxu0 0.0
      %1392 = vmatprep.subr.mxu0 0.0
      %1393 = vmatpush1.msra.mxu0 0.0
      %1394 = vmatprep.subr.mxu0 0.0
      %1395 = vmatpush1.msra.mxu0 0.0
      %1396 = vmatprep.subr.mxu0 0.0
      %1397 = vmatpush1.msra.mxu0 0.0
      %1398 = vmatprep.subr.mxu0 0.0
      %1399 = vmatpush1.msra.mxu0 0.0
      %1400 = vmatprep.subr.mxu0 0.0
      %1401 = vmatpush1.msra.mxu0 0.0
      %1402 = vmatprep.subr.mxu0 0.0
      %1403 = vmatpush1.msra.mxu0 0.0
      %1404 = vmatprep.subr.mxu0 0.0
      %1405 = vmatpush1.msra.mxu0 0.0
      %1406 = vmatprep.subr.mxu0 0.0
      %1407 = vmatpush1.msra.mxu0 0.0
      %1408 = vmatprep.subr.mxu0 0.0
      %1409 = vmatpush1.msra.mxu0 0.0
      %1410 = vmatprep.subr.mxu0 0.0
      %1411 = vmatpush1.msra.mxu0 0.0
      %1412 = vmatprep.subr.mxu0 0.0
      %1413 = vmatpush1.msra.mxu0 0.0
      %1414 = vmatprep.subr.mxu0 0.0
      %1415 = vmatpush1.msra.mxu0 0.0
      %1416 = vmatprep.subr.mxu0 0.0
      %1417 = vmatpush1.msra.mxu0 0.0
      %1418 = vmatprep.subr.mxu0 0.0
      %1419 = vmatpush1.msra.mxu0 0.0
      %1420 = vmatprep.mubr.f32.mxu0 0.0
      %1421 = vmatmul.mubr.f32.gmra.mrb[0].mxu0 %v1354
      %v1422 = vpop.f32.mrb[0].mxu0
      %v1423 = vadd.f32 %v1352, %v1422
      %v1424 = vpop.f32.mrb[0].mxu0
      %1425 = vdwg.mxu0
      %1426 = vst.msk [vmem:[%s562] sm:$0xff] %vm750, %v1423
      %v1427 = vsel %vm750, %v1423, -inf
      %1428 = vmax.xlane.f32.xlu0 %v1427
      %v1429 = vpop.xlane.xlu0 %1428
      %v1430 = vlaneseq
      %v1431 = vand.u32 %v1430, 127
      %vm1432 = vcmp.eq.f32.partialorder %v1423, %v1429
      %v1433 = vsel %vm1432, %v1431, 32
      %v1434 = vsel %vm750, %v1433, 2147483647
      %v1435 = vand.u32 %v1434, 65535
      %v1436 = vshra.s32 %v1434, 16
      %v1437 = vcvt.s32.f32 %v1435
      %v1438 = vcvt.s32.f32 %v1436
      %1439 = vmin.xlane.f32.xlu0 %v1438
      %v1440 = vpop.xlane.xlu0 %1439
      %vm1441 = vcmp.eq.f32.partialorder %v1438, %v1440
      %v1442 = vsel %vm1441, %v1437, inf
      %1443 = vmin.xlane.f32.xlu0 %v1442
      %v1444 = vpop.xlane.xlu0 %1443
      %v1445 = vcvt.f32.s32 %v1444
      %v1446 = vcvt.f32.s32 %v1440
      %v1447 = vshll.u32 %v1446, 16
      %v1448 = vadd.s32 %v1447, %v1445
      %vm1449 = vcmp.eq.s32.totalorder %v1431, %v1448
      %v1450 = vsel %vm1449, 1, 0
      %v1451 = vcvt.s32.f32 %v1450
      %s1452 = sadd.s32 %s38, 1
      %s1453 = sld [smem:[#allocation6 + %s1452]]
      %p1454 = scmp.eq.s32.totalorder %s1453, 1
      %s1455 = scalar_select %p1454, 1, 0
      %s1456 = scvt.s32.f32 %s1455
      %s1457 = smul.u32 %s1452, 8
      %s1458 = scalar_lea.vmem %s1, %s1457
      %v1459 = vld [vmem:[%s1458] sm:$0xff]
      %v1460 = vstv %s1456
      %v1461 = vmul.f32 %v1460, %v1459
      %s1462 = ssub.f32 1.0, %s1456
      %v1463 = vstv %s1462
      %v1464 = vmul.f32 %v1463, %v1451
      %v1465 = vadd.f32 %v1461, %v1464
      %1466 = vst.msk [vmem:[#allocation4] sm:$0xff] %vm750, %v1465
      %p1467 = scmp.lt.s32.totalorder %s38, 4
      %s1468 = scalar_select %p1467, %s38, 4
      %s1469 = smul.addr %s1468, 8
      %s1470 = scalar_lea.vmem %s19, %s1469
      // Predicated region
      $region97: #{seq2seq_forward.5} parent=91 // pred_check
        %p1471 = pneg %p434
      $region98: #{seq2seq_forward.5} parent=91 // pred_check_branch
        %1473 = sbr.rel (%p1471) target = $region100
      $region99: #{seq2seq_forward.5} parent=91 // pred_region
        _
      $region100: #{seq2seq_forward.5} parent=91 // pred_fallthru
        _
    $region92: #{seq2seq_forward.5} parent=5 // pred_fallthru
      _
    %p1474 = scmp.le.s32.totalorder 2, %s33
    // Predicated region
    $region101: #{seq2seq_forward.5} parent=5 // pred_check
      %p1475 = pneg %p1474
    $region102: #{seq2seq_forward.5} parent=5 // pred_check_branch
      %1477 = sbr.rel (%p1475) target = $region104
    $region103: #{seq2seq_forward.5} parent=5 // pred_region
      %s1478 = ssub.s32 %s33, 2
      // Predicated region
      $region105: #{seq2seq_forward.5} parent=103 // pred_check
        %p1479 = pneg %p440
      $region106: #{seq2seq_forward.5} parent=103 // pred_check_branch
        %1481 = sbr.rel (%p1479) target = $region108
      $region107: #{seq2seq_forward.5} parent=103 // pred_region
        %p1482 = scmp.lt.s32.totalorder %s39, 4
        %s1483 = scalar_select %p1482, %s39, 4
        %s1484 = smul.addr %s1483, 8
        %s1485 = scalar_lea.vmem %s19, %s1484
      $region108: #{seq2seq_forward.5} parent=103 // pred_fallthru
        _
    $region104: #{seq2seq_forward.5} parent=5 // pred_fallthru
      _
  $region6: #{seq2seq_forward.5} parent=0 // loop_footer
    %s37 = sadd.s32 1, %s33
  $region7: #{seq2seq_forward.5} parent=0 // loop_footer_branch
    %32 = sbr.rel target = $region3
  $region8: #{seq2seq_forward.5} parent=0 // loop_exit
    _

</llo_original>
